<compile_context>
chip_gen: v7x
topology: tpu7x:2x2x1
jax: 0.10.0
libtpu: 0.0.40
codegen_flags: <defaults>
</compile_context>

<pallas_src>
import functools

import jax
import jax.numpy as jnp
from jax.experimental import pallas as pl
from jax.experimental.pallas import tpu as pltpu

EPS = 1e-5
LANE = 128


def _round_up(n, m=LANE):
    return (n + m - 1) // m * m


def _sigmoid(x):
    # exp on the EUP; approx reciprocal also routes to the EUP slot.
    # (Set approx=False for exact 1/(1+e^-x).)
    return pl.reciprocal(1.0 + jnp.exp(-x), approx=True)


# ----------------------------------------------------------------------------
# Fused kernel: conv1+bn1+relu -> conv2(3x3 im2col)+bn2+relu -> conv3+bn3 ->
#               CBAM channel attn -> CBAM spatial attn -> +residual -> relu
# One grid step processes one image; weights use constant index_maps.
# ----------------------------------------------------------------------------
def _bottleneck_cbam_fused_kernel(
        x_ref,
        w1_ref, s1_ref, b1_ref,
        w2_ref, s2_ref, b2_ref,
        w3_ref, s3_ref, b3_ref,
        fc1w_ref, fc1b_ref, fc2w_ref, fc2b_ref,
        w7_ref, b7_ref,
        o_ref,
        xp_ref,
        *, c_real):
    _, H, W, C = o_ref.shape            # C = padded channel count (lane dense)
    P = w1_ref.shape[1]                 # padded bottleneck width
    HW = H * W
    f32 = jnp.float32
    bf16 = jnp.bfloat16

    # ---- conv1 (1x1) + bn1 + relu  (bf16 MXU, f32 accumulate) ----------------
    x_mm = x_ref[0].reshape(HW, C).astype(bf16)
    y1 = jnp.dot(x_mm, w1_ref[...], preferred_element_type=f32)
    y1 = jnp.maximum(y1 * s1_ref[...] + b1_ref[...], 0.0)           # (HW, P)

    # ---- conv2 (3x3, stride 1, pad 1) as ONE im2col matmul, K = 9*P ----------
    # Zero only the 1-element halo border (interior is overwritten each step);
    # no full-scratch zero and no full readback.
    zrow = jnp.zeros((1, W + 2, P), f32)
    zcol = jnp.zeros((H + 2, 1, P), f32)
    xp_ref[0:1, :, :] = zrow
    xp_ref[H + 1:H + 2, :, :] = zrow
    xp_ref[:, 0:1, :] = zcol
    xp_ref[:, W + 1:W + 2, :] = zcol
    xp_ref[1:H + 1, 1:W + 1, :] = y1.reshape(H, W, P)

    taps = [xp_ref[ky:ky + H, kx:kx + W, :]          # (H, W, P) slabs
            for ky in range(3) for kx in range(3)]
    patches = jnp.concatenate(taps, axis=2).reshape(HW, 9 * P).astype(bf16)
    y2 = jnp.dot(patches, w2_ref[...], preferred_element_type=f32)   # (HW, P)
    y2 = jnp.maximum(y2 * s2_ref[...] + b2_ref[...], 0.0)

    # ---- conv3 (1x1) + bn3 (no relu before CBAM) -----------------------------
    y3 = jnp.dot(y2.astype(bf16), w3_ref[...], preferred_element_type=f32)
    y3 = y3 * s3_ref[...] + b3_ref[...]                              # (HW, C)

    # ---- CBAM channel attention: avg & max paths batched into one MLP --------
    stats = jnp.concatenate(
        [jnp.mean(y3, axis=0, keepdims=True),
         jnp.max(y3, axis=0, keepdims=True)], axis=0)                # (2, C)
    h = jnp.dot(stats.astype(bf16), fc1w_ref[...], preferred_element_type=f32)
    h = jnp.maximum(h + fc1b_ref[...], 0.0)
    z = jnp.dot(h.astype(bf16), fc2w_ref[...], preferred_element_type=f32)
    z = z + fc2b_ref[...]
    att_c = _sigmoid(z[0:1, :] + z[1:2, :])                          # (1, C)
    xca = y3 * att_c                                                 # (HW, C)
    xca3 = xca.reshape(H, W, C)

    # ---- CBAM spatial attention (7x7 conv over channel mean/max maps) --------
    # Channel padding correction: sum/real-C for the mean, mask for the max.
    stat_avg = jnp.sum(xca3, axis=2) * jnp.float32(1.0 / c_real)     # (H, W)
    if c_real != C:
        ch = jax.lax.broadcasted_iota(jnp.int32, (H, W, C), 2)
        stat_max = jnp.max(
            jnp.where(ch < c_real, xca3, jnp.float32(-1e30)), axis=2)
    else:
        stat_max = jnp.max(xca3, axis=2)

    # Zero-pad to (H+6, W+6) with plain zero-block concatenation (no iota /
    # selection matmuls, no scratch round-trip).
    zr = jnp.zeros((3, W), f32)
    zc = jnp.zeros((H + 6, 3), f32)

    def pad_hw(m):
        m = jnp.concatenate([zr, m, zr], axis=0)      # (H+6, W)
        return jnp.concatenate([zc, m, zc], axis=1)   # (H+6, W+6)

    ap = pad_hw(stat_avg)
    mp = pad_hw(stat_max)

    acc_s = jnp.zeros((H, W), f32)
    for ky in range(7):
        arow = ap[ky:ky + H, :]
        mrow = mp[ky:ky + H, :]
        for kx in range(7):
            acc_s = acc_s + arow[:, kx:kx + W] * w7_ref[ky * 7 + kx]
            acc_s = acc_s + mrow[:, kx:kx + W] * w7_ref[49 + ky * 7 + kx]
    att_s = _sigmoid(acc_s + b7_ref[0])                              # (H, W)

    # ---- spatial scale + residual (re-read resident input block) + relu ------
    out = xca3 * att_s[:, :, None] + x_ref[0].astype(f32)
    o_ref[...] = jnp.maximum(out, 0.0)[None].astype(o_ref.dtype)


# ----------------------------------------------------------------------------
# Wrapper: pads channel dims to multiples of 128 (lane dense), ships matmul
# weights as bf16, launches one fused pallas_call with grid over batch.
# ----------------------------------------------------------------------------
def bottleneck_cbam_forward(x, params):
    # x: (N, H, W, inplanes); stride=1, downsample=None -> inplanes == 4*planes
    N, H, W, Cin = x.shape
    P = params["w1"].shape[1]
    C = 4 * P
    Cr = params["fc1_w"].shape[1]
    if Cin != C:
        raise ValueError("residual path requires inplanes == 4*planes (no downsample)")

    f32, bf16 = jnp.float32, jnp.bfloat16
    P_pad, C_pad, Cr_pad = _round_up(P), _round_up(C), _round_up(Cr)

    def padax(a, tgt, axis):
        d = tgt - a.shape[axis]
        if d == 0:
            return a
        widths = [(0, 0)] * a.ndim
        widths[axis] = (0, d)
        return jnp.pad(a, widths)

    def padvec(v, tgt):
        return padax(v.astype(f32), tgt, 0).reshape(1, tgt)

    x_p = padax(x.astype(f32), C_pad, 3)                              # (N,H,W,C_pad)

    w1 = padax(padax(params["w1"], C_pad, 0), P_pad, 1).astype(bf16)  # (C_pad, P_pad)
    w2 = padax(padax(params["w2"], P_pad, 2), P_pad, 3)               # (3,3,P_pad,P_pad)
    w2 = w2.reshape(9 * P_pad, P_pad).astype(bf16)                    # (9*P_pad, P_pad)
    w3 = padax(padax(params["w3"], P_pad, 0), C_pad, 1).astype(bf16)  # (P_pad, C_pad)
    fc1w = padax(padax(params["fc1_w"], C_pad, 0), Cr_pad, 1).astype(bf16)
    fc2w = padax(padax(params["fc2_w"], Cr_pad, 0), C_pad, 1).astype(bf16)

    s1, b1 = padvec(params["bn1_scale"], P_pad), padvec(params["bn1_bias"], P_pad)
    s2, b2 = padvec(params["bn2_scale"], P_pad), padvec(params["bn2_bias"], P_pad)
    s3, b3 = padvec(params["bn3_scale"], C_pad), padvec(params["bn3_bias"], C_pad)
    fc1b = padvec(params["fc1_b"], Cr_pad)
    fc2b = padvec(params["fc2_b"], C_pad)

    def _const_spec(shape):
        nd = len(shape)
        return pl.BlockSpec(shape, lambda n: (0,) * nd)

    in_specs = [
        pl.BlockSpec((1, H, W, C_pad), lambda n: (n, 0, 0, 0)),   # x / residual
        _const_spec((C_pad, P_pad)),                              # w1 (bf16)
        _const_spec((1, P_pad)), _const_spec((1, P_pad)),         # bn1 scale/bias
        _const_spec((9 * P_pad, P_pad)),                          # w2 im2col (bf16)
        _const_spec((1, P_pad)), _const_spec((1, P_pad)),         # bn2 scale/bias
        _const_spec((P_pad, C_pad)),                              # w3 (bf16)
        _const_spec((1, C_pad)), _const_spec((1, C_pad)),         # bn3 scale/bias
        _const_spec((C_pad, Cr_pad)), _const_spec((1, Cr_pad)),   # fc1 w/b
        _const_spec((Cr_pad, C_pad)), _const_spec((1, C_pad)),    # fc2 w/b
        pl.BlockSpec(memory_space=pltpu.MemorySpace.SMEM),        # w7 (98,)
        pl.BlockSpec(memory_space=pltpu.MemorySpace.SMEM),        # b7 (1,)
    ]

    out_pad = pl.pallas_call(
        functools.partial(_bottleneck_cbam_fused_kernel, c_real=C),
        out_shape=jax.ShapeDtypeStruct((N, H, W, C_pad), jnp.float32),
        grid=(N,),
        in_specs=in_specs,
        out_specs=pl.BlockSpec((1, H, W, C_pad), lambda n: (n, 0, 0, 0)),
        scratch_shapes=[pltpu.VMEM((H + 2, W + 2, P_pad), jnp.float32)],
        compiler_params=pltpu.CompilerParams(
            dimension_semantics=("parallel",),
            vmem_limit_bytes=48 * 1024 * 1024),
    )(
        x_p,
        w1, s1, b1,
        w2, s2, b2,
        w3, s3, b3,
        fc1w, fc1b, fc2w, fc2b,
        params["w7"].astype(f32), params["b7"].astype(f32),
    )
    return out_pad[..., :C]


# ----------------------------------------------------------------------------
# Pure-JAX reference (eval-mode BN folded, exact sigmoid) for sanity checking.
# ----------------------------------------------------------------------------
def reference_forward(x, params):
    f32 = jnp.float32
    N, H, W, _ = x.shape
    P = params["w1"].shape[1]
    x = x.astype(f32)

    y = jnp.einsum("nhwc,cp->nhwp", x, params["w1"])
    y = jax.nn.relu(y * params["bn1_scale"] + params["bn1_bias"])
    yp = jnp.pad(y, ((0, 0), (1, 1), (1, 1), (0, 0)))
    acc = jnp.zeros((N, H, W, P), f32)
    for ky in range(3):
        for kx in range(3):
            acc = acc + jnp.einsum("nhwc,cp->nhwp",
                                   yp[:, ky:ky + H, kx:kx + W, :],
                                   params["w2"][ky, kx])
    y = jax.nn.relu(acc * params["bn2_scale"] + params["bn2_bias"])
    y = jnp.einsum("nhwp,pc->nhwc", y, params["w3"])
    y = y * params["bn3_scale"] + params["bn3_bias"]

    avg = jnp.mean(y, axis=(1, 2))
    mx = jnp.max(y, axis=(1, 2))

    def mlp(v):
        h = jax.nn.relu(v @ params["fc1_w"] + params["fc1_b"])
        return h @ params["fc2_w"] + params["fc2_b"]

    att_c = jax.nn.sigmoid(mlp(avg) + mlp(mx))
    xca = y * att_c[:, None, None, :]

    savg = jnp.mean(xca, axis=3)
    smax = jnp.max(xca, axis=3)
    sp = jnp.pad(jnp.stack([savg, smax], axis=-1),
                 ((0, 0), (3, 3), (3, 3), (0, 0)))
    w7 = params["w7"].reshape(2, 7, 7)
    accs = jnp.zeros((N, H, W), f32)
    for ky in range(7):
        for kx in range(7):
            accs = accs + sp[:, ky:ky + H, kx:kx + W, 0] * w7[0, ky, kx]
            accs = accs + sp[:, ky:ky + H, kx:kx + W, 1] * w7[1, ky, kx]
    att_s = jax.nn.sigmoid(accs + params["b7"][0])
    out = xca * att_s[..., None] + x
    return jax.nn.relu(out)


# ----------------------------------------------------------------------------
# Deterministic synthetic parameters (shapes match the PyTorch module);
# BN folded generally from (gamma, beta, running_mean, running_var).
# ----------------------------------------------------------------------------
def init_params(key, inplanes, planes, reduction):
    C = planes * 4
    Cr = max(C // reduction, 1)
    ks = jax.random.split(key, 20)

    def nrm(k, shape, scale=0.1):
        return (scale * jax.random.normal(k, shape)).astype(jnp.float32)

    def bn_fold(kg, kb, km, kv, n):
        gamma = 1.0 + 0.1 * jax.random.normal(kg, (n,))
        beta = 0.1 * jax.random.normal(kb, (n,))
        mean = 0.1 * jax.random.normal(km, (n,))
        var = 1.0 + 0.1 * jax.random.uniform(kv, (n,))
        scale = gamma / jnp.sqrt(var + EPS)
        bias = beta - mean * scale
        return scale.astype(jnp.float32), bias.astype(jnp.float32)

    p = {}
    p["w1"] = nrm(ks[0], (inplanes, planes))                   # conv1 1x1 (Cin,Cout)
    p["bn1_scale"], p["bn1_bias"] = bn_fold(ks[1], ks[2], ks[3], ks[4], planes)
    p["w2"] = nrm(ks[5], (3, 3, planes, planes))               # conv2 3x3 (kh,kw,Cin,Cout)
    p["bn2_scale"], p["bn2_bias"] = bn_fold(ks[6], ks[7], ks[8], ks[9], planes)
    p["w3"] = nrm(ks[10], (planes, C))                         # conv3 1x1
    p["bn3_scale"], p["bn3_bias"] = bn_fold(ks[11], ks[12], ks[13], ks[14], C)
    p["fc1_w"] = nrm(ks[15], (C, Cr))                          # CBAM fc1
    p["fc1_b"] = (0.05 * jax.random.normal(ks[16], (Cr,))).astype(jnp.float32)
    p["fc2_w"] = nrm(ks[17], (Cr, C))                          # CBAM fc2
    p["fc2_b"] = (0.05 * jax.random.normal(ks[18], (C,))).astype(jnp.float32)
    p["w7"] = nrm(ks[19], (2 * 7 * 7,))                        # CBAM 7x7, flat [avg|max]
    p["b7"] = jnp.zeros((1,), jnp.float32)
    return p


if __name__ == "__main__":
    key = jax.random.PRNGKey(0)
    kx_, kp = jax.random.split(key)

    N, H, W = 2, 8, 8
    planes, reduction = 16, 16
    inplanes = planes * 4   # residual add requires inplanes == planes*4 (no downsample)

    x = jax.random.normal(kx_, (N, H, W, inplanes), dtype=jnp.float32)
    params = init_params(kp, inplanes, planes, reduction)

    out = jax.jit(bottleneck_cbam_forward)(x, params)
    jax.block_until_ready(out)

    assert out.shape == (N, H, W, planes * 4)
    assert bool(jnp.all(out >= 0.0))              # final ReLU
    assert bool(jnp.all(jnp.isfinite(out)))

    # Loose tolerance: kernel uses bf16 MXU operands + approx EUP reciprocal.
    ref = reference_forward(x, params)
    max_err = float(jnp.max(jnp.abs(out - ref)))
    assert max_err < 1e-1, f"kernel deviates from reference: max_err={max_err}"

    print("KERNEL_OK")
</pallas_src>

<mosaic_0001>
module attributes {stable_mosaic.version = 11 : i64} {
  func.func @_bottleneck_cbam_fused_kernel(%arg0: i32, %arg1: memref<1x8x8x128xf32, #tpu.memory_space<vmem>>, %arg2: memref<128x128xbf16, #tpu.memory_space<vmem>>, %arg3: memref<1x128xf32, #tpu.memory_space<vmem>>, %arg4: memref<1x128xf32, #tpu.memory_space<vmem>>, %arg5: memref<1152x128xbf16, #tpu.memory_space<vmem>>, %arg6: memref<1x128xf32, #tpu.memory_space<vmem>>, %arg7: memref<1x128xf32, #tpu.memory_space<vmem>>, %arg8: memref<128x128xbf16, #tpu.memory_space<vmem>>, %arg9: memref<1x128xf32, #tpu.memory_space<vmem>>, %arg10: memref<1x128xf32, #tpu.memory_space<vmem>>, %arg11: memref<128x128xbf16, #tpu.memory_space<vmem>>, %arg12: memref<1x128xf32, #tpu.memory_space<vmem>>, %arg13: memref<128x128xbf16, #tpu.memory_space<vmem>>, %arg14: memref<1x128xf32, #tpu.memory_space<vmem>>, %arg15: memref<98xf32, #tpu.memory_space<smem>>, %arg16: memref<1xf32, #tpu.memory_space<smem>>, %arg17: memref<1x8x8x128xf32, #tpu.memory_space<vmem>>, %arg18: memref<10x10x128xf32, #tpu.memory_space<vmem>>) attributes {dimension_semantics = [#tpu.dimension_semantics<parallel>], iteration_bounds = array<i64: 2>, scalar_prefetch = 0 : i64, scratch_operands = 1 : i64, tpu.core_type = #tpu.core_type<tc>, window_params = [{transform_indices = @transform_0, window_bounds = array<i64: 1, 8, 8, 128>}, {pipeline_mode = #tpu.pipeline_mode<synchronous>, transform_indices = @transform_1, window_bounds = array<i64: 128, 128>}, {pipeline_mode = #tpu.pipeline_mode<synchronous>, transform_indices = @transform_2, window_bounds = array<i64: 1, 128>}, {pipeline_mode = #tpu.pipeline_mode<synchronous>, transform_indices = @transform_3, window_bounds = array<i64: 1, 128>}, {pipeline_mode = #tpu.pipeline_mode<synchronous>, transform_indices = @transform_4, window_bounds = array<i64: 1152, 128>}, {pipeline_mode = #tpu.pipeline_mode<synchronous>, transform_indices = @transform_5, window_bounds = array<i64: 1, 128>}, {pipeline_mode = #tpu.pipeline_mode<synchronous>, transform_indices = @transform_6, window_bounds = array<i64: 1, 128>}, {pipeline_mode = #tpu.pipeline_mode<synchronous>, transform_indices = @transform_7, window_bounds = array<i64: 128, 128>}, {pipeline_mode = #tpu.pipeline_mode<synchronous>, transform_indices = @transform_8, window_bounds = array<i64: 1, 128>}, {pipeline_mode = #tpu.pipeline_mode<synchronous>, transform_indices = @transform_9, window_bounds = array<i64: 1, 128>}, {pipeline_mode = #tpu.pipeline_mode<synchronous>, transform_indices = @transform_10, window_bounds = array<i64: 128, 128>}, {pipeline_mode = #tpu.pipeline_mode<synchronous>, transform_indices = @transform_11, window_bounds = array<i64: 1, 128>}, {pipeline_mode = #tpu.pipeline_mode<synchronous>, transform_indices = @transform_12, window_bounds = array<i64: 128, 128>}, {pipeline_mode = #tpu.pipeline_mode<synchronous>, transform_indices = @transform_13, window_bounds = array<i64: 1, 128>}, {transform_indices = @transform_14, window_bounds = array<i64: 98>}, {transform_indices = @transform_15, window_bounds = array<i64: 1>}, {transform_indices = @transform_16, window_bounds = array<i64: 1, 8, 8, 128>}]} {
    %c0 = arith.constant 0 : index
    %c0_0 = arith.constant 0 : index
    %c0_1 = arith.constant 0 : index
    %c0_2 = arith.constant 0 : index
    %0 = vector.load %arg1[%c0, %c0_0, %c0_1, %c0_2] : memref<1x8x8x128xf32, #tpu.memory_space<vmem>>, vector<1x8x8x128xf32>
    %1 = vector.shape_cast %0 : vector<1x8x8x128xf32> to vector<8x8x128xf32>
    %2 = vector.shape_cast %1 : vector<8x8x128xf32> to vector<64x128xf32>
    %3 = arith.truncf %2 : vector<64x128xf32> to vector<64x128xbf16>
    %c0_3 = arith.constant 0 : index
    %c0_4 = arith.constant 0 : index
    %4 = vector.load %arg2[%c0_3, %c0_4] : memref<128x128xbf16, #tpu.memory_space<vmem>>, vector<128x128xbf16>
    %cst = arith.constant dense<0.000000e+00> : vector<64x128xf32>
    %5 = tpu.matmul %3, %4, %cst {dimension_numbers = #tpu.dot_dimension_numbers<[1], [0], [0], [1], [0, 0, 1, 1], [], []>} : vector<64x128xbf16>, vector<128x128xbf16>, vector<64x128xf32> -> vector<64x128xf32>
    %c0_5 = arith.constant 0 : index
    %c0_6 = arith.constant 0 : index
    %6 = vector.load %arg3[%c0_5, %c0_6] : memref<1x128xf32, #tpu.memory_space<vmem>>, vector<1x128xf32>
    %7 = vector.broadcast %6 : vector<1x128xf32> to vector<64x128xf32>
    %8 = arith.mulf %5, %7 : vector<64x128xf32>
    %c0_7 = arith.constant 0 : index
    %c0_8 = arith.constant 0 : index
    %9 = vector.load %arg4[%c0_7, %c0_8] : memref<1x128xf32, #tpu.memory_space<vmem>>, vector<1x128xf32>
    %10 = vector.broadcast %9 : vector<1x128xf32> to vector<64x128xf32>
    %11 = arith.addf %8, %10 : vector<64x128xf32>
    %cst_9 = arith.constant 0.000000e+00 : f32
    %12 = vector.broadcast %cst_9 : f32 to vector<64x128xf32>
    %13 = arith.maximumf %11, %12 : vector<64x128xf32>
    %cst_10 = arith.constant 0.000000e+00 : f32
    %14 = vector.broadcast %cst_10 : f32 to vector<1x10x128xf32>
    %cst_11 = arith.constant 0.000000e+00 : f32
    %15 = vector.broadcast %cst_11 : f32 to vector<10x1x128xf32>
    %c0_12 = arith.constant 0 : index
    %c0_13 = arith.constant 0 : index
    %c0_14 = arith.constant 0 : index
    %16 = vector.load %arg18[%c0_12, %c0_13, %c0_14] : memref<10x10x128xf32, #tpu.memory_space<vmem>>, vector<1x10x128xf32>
    tpu.vector_store %arg18[%c0_12, %c0_13, %c0_14], %14 {strides = array<i32>} : memref<10x10x128xf32, #tpu.memory_space<vmem>>, vector<1x10x128xf32>,
    %c9 = arith.constant 9 : index
    %c0_15 = arith.constant 0 : index
    %c0_16 = arith.constant 0 : index
    %17 = vector.load %arg18[%c9, %c0_15, %c0_16] : memref<10x10x128xf32, #tpu.memory_space<vmem>>, vector<1x10x128xf32>
    tpu.vector_store %arg18[%c9, %c0_15, %c0_16], %14 {strides = array<i32>} : memref<10x10x128xf32, #tpu.memory_space<vmem>>, vector<1x10x128xf32>,
    %c0_17 = arith.constant 0 : index
    %c0_18 = arith.constant 0 : index
    %c0_19 = arith.constant 0 : index
    %18 = vector.load %arg18[%c0_17, %c0_18, %c0_19] : memref<10x10x128xf32, #tpu.memory_space<vmem>>, vector<10x1x128xf32>
    tpu.vector_store %arg18[%c0_17, %c0_18, %c0_19], %15 {strides = array<i32>} : memref<10x10x128xf32, #tpu.memory_space<vmem>>, vector<10x1x128xf32>,
    %c0_20 = arith.constant 0 : index
    %c9_21 = arith.constant 9 : index
    %c0_22 = arith.constant 0 : index
    %19 = vector.load %arg18[%c0_20, %c9_21, %c0_22] : memref<10x10x128xf32, #tpu.memory_space<vmem>>, vector<10x1x128xf32>
    tpu.vector_store %arg18[%c0_20, %c9_21, %c0_22], %15 {strides = array<i32>} : memref<10x10x128xf32, #tpu.memory_space<vmem>>, vector<10x1x128xf32>,
    %20 = vector.shape_cast %13 : vector<64x128xf32> to vector<8x8x128xf32>
    %c1 = arith.constant 1 : index
    %c1_23 = arith.constant 1 : index
    %c0_24 = arith.constant 0 : index
    %21 = vector.load %arg18[%c1, %c1_23, %c0_24] : memref<10x10x128xf32, #tpu.memory_space<vmem>>, vector<8x8x128xf32>
    tpu.vector_store %arg18[%c1, %c1_23, %c0_24], %20 {strides = array<i32>} : memref<10x10x128xf32, #tpu.memory_space<vmem>>, vector<8x8x128xf32>,
    %c0_25 = arith.constant 0 : index
    %c0_26 = arith.constant 0 : index
    %c0_27 = arith.constant 0 : index
    %22 = vector.load %arg18[%c0_25, %c0_26, %c0_27] : memref<10x10x128xf32, #tpu.memory_space<vmem>>, vector<8x8x128xf32>
    %c0_28 = arith.constant 0 : index
    %c1_29 = arith.constant 1 : index
    %c0_30 = arith.constant 0 : index
    %23 = vector.load %arg18[%c0_28, %c1_29, %c0_30] : memref<10x10x128xf32, #tpu.memory_space<vmem>>, vector<8x8x128xf32>
    %c0_31 = arith.constant 0 : index
    %c2 = arith.constant 2 : index
    %c0_32 = arith.constant 0 : index
    %24 = vector.load %arg18[%c0_31, %c2, %c0_32] : memref<10x10x128xf32, #tpu.memory_space<vmem>>, vector<8x8x128xf32>
    %c1_33 = arith.constant 1 : index
    %c0_34 = arith.constant 0 : index
    %c0_35 = arith.constant 0 : index
    %25 = vector.load %arg18[%c1_33, %c0_34, %c0_35] : memref<10x10x128xf32, #tpu.memory_space<vmem>>, vector<8x8x128xf32>
    %c1_36 = arith.constant 1 : index
    %c1_37 = arith.constant 1 : index
    %c0_38 = arith.constant 0 : index
    %26 = vector.load %arg18[%c1_36, %c1_37, %c0_38] : memref<10x10x128xf32, #tpu.memory_space<vmem>>, vector<8x8x128xf32>
    %c1_39 = arith.constant 1 : index
    %c2_40 = arith.constant 2 : index
    %c0_41 = arith.constant 0 : index
    %27 = vector.load %arg18[%c1_39, %c2_40, %c0_41] : memref<10x10x128xf32, #tpu.memory_space<vmem>>, vector<8x8x128xf32>
    %c2_42 = arith.constant 2 : index
    %c0_43 = arith.constant 0 : index
    %c0_44 = arith.constant 0 : index
    %28 = vector.load %arg18[%c2_42, %c0_43, %c0_44] : memref<10x10x128xf32, #tpu.memory_space<vmem>>, vector<8x8x128xf32>
    %c2_45 = arith.constant 2 : index
    %c1_46 = arith.constant 1 : index
    %c0_47 = arith.constant 0 : index
    %29 = vector.load %arg18[%c2_45, %c1_46, %c0_47] : memref<10x10x128xf32, #tpu.memory_space<vmem>>, vector<8x8x128xf32>
    %c2_48 = arith.constant 2 : index
    %c2_49 = arith.constant 2 : index
    %c0_50 = arith.constant 0 : index
    %30 = vector.load %arg18[%c2_48, %c2_49, %c0_50] : memref<10x10x128xf32, #tpu.memory_space<vmem>>, vector<8x8x128xf32>
    %31 = tpu.concatenate %22, %23, %24, %25, %26, %27, %28, %29, %30 in 2 : vector<8x8x128xf32>, vector<8x8x128xf32>, vector<8x8x128xf32>, vector<8x8x128xf32>, vector<8x8x128xf32>, vector<8x8x128xf32>, vector<8x8x128xf32>, vector<8x8x128xf32>, vector<8x8x128xf32> -> vector<8x8x1152xf32>
    %32 = vector.shape_cast %31 : vector<8x8x1152xf32> to vector<64x1152xf32>
    %33 = arith.truncf %32 : vector<64x1152xf32> to vector<64x1152xbf16>
    %c0_51 = arith.constant 0 : index
    %c0_52 = arith.constant 0 : index
    %34 = vector.load %arg5[%c0_51, %c0_52] : memref<1152x128xbf16, #tpu.memory_space<vmem>>, vector<1152x128xbf16>
    %cst_53 = arith.constant dense<0.000000e+00> : vector<64x128xf32>
    %35 = tpu.matmul %33, %34, %cst_53 {dimension_numbers = #tpu.dot_dimension_numbers<[1], [0], [0], [1], [0, 0, 1, 1], [], []>} : vector<64x1152xbf16>, vector<1152x128xbf16>, vector<64x128xf32> -> vector<64x128xf32>
    %c0_54 = arith.constant 0 : index
    %c0_55 = arith.constant 0 : index
    %36 = vector.load %arg6[%c0_54, %c0_55] : memref<1x128xf32, #tpu.memory_space<vmem>>, vector<1x128xf32>
    %37 = vector.broadcast %36 : vector<1x128xf32> to vector<64x128xf32>
    %38 = arith.mulf %35, %37 : vector<64x128xf32>
    %c0_56 = arith.constant 0 : index
    %c0_57 = arith.constant 0 : index
    %39 = vector.load %arg7[%c0_56, %c0_57] : memref<1x128xf32, #tpu.memory_space<vmem>>, vector<1x128xf32>
    %40 = vector.broadcast %39 : vector<1x128xf32> to vector<64x128xf32>
    %41 = arith.addf %38, %40 : vector<64x128xf32>
    %cst_58 = arith.constant 0.000000e+00 : f32
    %42 = vector.broadcast %cst_58 : f32 to vector<64x128xf32>
    %43 = arith.maximumf %41, %42 : vector<64x128xf32>
    %44 = arith.truncf %43 : vector<64x128xf32> to vector<64x128xbf16>
    %c0_59 = arith.constant 0 : index
    %c0_60 = arith.constant 0 : index
    %45 = vector.load %arg8[%c0_59, %c0_60] : memref<128x128xbf16, #tpu.memory_space<vmem>>, vector<128x128xbf16>
    %cst_61 = arith.constant dense<0.000000e+00> : vector<64x128xf32>
    %46 = tpu.matmul %44, %45, %cst_61 {dimension_numbers = #tpu.dot_dimension_numbers<[1], [0], [0], [1], [0, 0, 1, 1], [], []>} : vector<64x128xbf16>, vector<128x128xbf16>, vector<64x128xf32> -> vector<64x128xf32>
    %c0_62 = arith.constant 0 : index
    %c0_63 = arith.constant 0 : index
    %47 = vector.load %arg9[%c0_62, %c0_63] : memref<1x128xf32, #tpu.memory_space<vmem>>, vector<1x128xf32>
    %48 = vector.broadcast %47 : vector<1x128xf32> to vector<64x128xf32>
    %49 = arith.mulf %46, %48 : vector<64x128xf32>
    %c0_64 = arith.constant 0 : index
    %c0_65 = arith.constant 0 : index
    %50 = vector.load %arg10[%c0_64, %c0_65] : memref<1x128xf32, #tpu.memory_space<vmem>>, vector<1x128xf32>
    %51 = vector.broadcast %50 : vector<1x128xf32> to vector<64x128xf32>
    %52 = arith.addf %49, %51 : vector<64x128xf32>
    %cst_66 = arith.constant dense<0.000000e+00> : vector<128xf32>
    %53 = vector.multi_reduction <add>, %52, %cst_66 [0] : vector<64x128xf32> to vector<128xf32>
    %54 = vector.shape_cast %53 : vector<128xf32> to vector<1x128xf32>
    %cst_67 = arith.constant 6.400000e+01 : f32
    %55 = vector.broadcast %cst_67 : f32 to vector<1x128xf32>
    %56 = arith.divf %54, %55 : vector<1x128xf32>
    %cst_68 = arith.constant dense<0xFF800000> : vector<128xf32>
    %57 = vector.multi_reduction <maximumf>, %52, %cst_68 [0] : vector<64x128xf32> to vector<128xf32>
    %58 = vector.shape_cast %57 : vector<128xf32> to vector<1x128xf32>
    %59 = tpu.concatenate %56, %58 in 0 : vector<1x128xf32>, vector<1x128xf32> -> vector<2x128xf32>
    %60 = arith.truncf %59 : vector<2x128xf32> to vector<2x128xbf16>
    %c0_69 = arith.constant 0 : index
    %c0_70 = arith.constant 0 : index
    %61 = vector.load %arg11[%c0_69, %c0_70] : memref<128x128xbf16, #tpu.memory_space<vmem>>, vector<128x128xbf16>
    %cst_71 = arith.constant dense<0.000000e+00> : vector<2x128xf32>
    %62 = tpu.matmul %60, %61, %cst_71 {dimension_numbers = #tpu.dot_dimension_numbers<[1], [0], [0], [1], [0, 0, 1, 1], [], []>} : vector<2x128xbf16>, vector<128x128xbf16>, vector<2x128xf32> -> vector<2x128xf32>
    %c0_72 = arith.constant 0 : index
    %c0_73 = arith.constant 0 : index
    %63 = vector.load %arg12[%c0_72, %c0_73] : memref<1x128xf32, #tpu.memory_space<vmem>>, vector<1x128xf32>
    %64 = vector.broadcast %63 : vector<1x128xf32> to vector<2x128xf32>
    %65 = arith.addf %62, %64 : vector<2x128xf32>
    %cst_74 = arith.constant 0.000000e+00 : f32
    %66 = vector.broadcast %cst_74 : f32 to vector<2x128xf32>
    %67 = arith.maximumf %65, %66 : vector<2x128xf32>
    %68 = arith.truncf %67 : vector<2x128xf32> to vector<2x128xbf16>
    %c0_75 = arith.constant 0 : index
    %c0_76 = arith.constant 0 : index
    %69 = vector.load %arg13[%c0_75, %c0_76] : memref<128x128xbf16, #tpu.memory_space<vmem>>, vector<128x128xbf16>
    %cst_77 = arith.constant dense<0.000000e+00> : vector<2x128xf32>
    %70 = tpu.matmul %68, %69, %cst_77 {dimension_numbers = #tpu.dot_dimension_numbers<[1], [0], [0], [1], [0, 0, 1, 1], [], []>} : vector<2x128xbf16>, vector<128x128xbf16>, vector<2x128xf32> -> vector<2x128xf32>
    %c0_78 = arith.constant 0 : index
    %c0_79 = arith.constant 0 : index
    %71 = vector.load %arg14[%c0_78, %c0_79] : memref<1x128xf32, #tpu.memory_space<vmem>>, vector<1x128xf32>
    %72 = vector.broadcast %71 : vector<1x128xf32> to vector<2x128xf32>
    %73 = arith.addf %70, %72 : vector<2x128xf32>
    %74 = vector.extract_strided_slice %73 {offsets = [0, 0], sizes = [1, 128], strides = [1, 1]} : vector<2x128xf32> to vector<1x128xf32>
    %75 = vector.extract_strided_slice %73 {offsets = [1, 0], sizes = [1, 128], strides = [1, 1]} : vector<2x128xf32> to vector<1x128xf32>
    %76 = arith.addf %74, %75 : vector<1x128xf32>
    %cst_80 = arith.constant 0.000000e+00 : f32
    %77 = vector.broadcast %cst_80 : f32 to vector<1x128xf32>
    %78 = arith.subf %77, %76 : vector<1x128xf32>
    %79 = math.exp %78 : vector<1x128xf32>
    %cst_81 = arith.constant 1.000000e+00 : f32
    %80 = vector.broadcast %cst_81 : f32 to vector<1x128xf32>
    %81 = arith.addf %80, %79 : vector<1x128xf32>
    %82 = tpu.reciprocal %81 {approx = true} : vector<1x128xf32> -> vector<1x128xf32>
    %83 = vector.broadcast %82 : vector<1x128xf32> to vector<64x128xf32>
    %84 = arith.mulf %52, %83 : vector<64x128xf32>
    %85 = vector.shape_cast %84 : vector<64x128xf32> to vector<8x8x128xf32>
    %cst_82 = arith.constant dense<0.000000e+00> : vector<8x8xf32>
    %86 = vector.multi_reduction <add>, %85, %cst_82 [2] : vector<8x8x128xf32> to vector<8x8xf32>
    %cst_83 = arith.constant 1.562500e-02 : f32
    %87 = vector.broadcast %cst_83 : f32 to vector<8x8xf32>
    %88 = arith.mulf %86, %87 : vector<8x8xf32>
    %89 = tpu.iota {dimensions = array<i32: 2>} : vector<8x8x128xi32>
    %c64_i32 = arith.constant 64 : i32
    %90 = vector.broadcast %c64_i32 : i32 to vector<8x8x128xi32>
    %91 = arith.cmpi slt, %89, %90 : vector<8x8x128xi32>
    %cst_84 = arith.constant -1.000000e+30 : f32
    %92 = vector.broadcast %cst_84 : f32 to vector<8x8x128xf32>
    %93 = arith.select %91, %85, %92 : vector<8x8x128xi1>, vector<8x8x128xf32>
    %cst_85 = arith.constant dense<0xFF800000> : vector<8x8xf32>
    %94 = vector.multi_reduction <maximumf>, %93, %cst_85 [2] : vector<8x8x128xf32> to vector<8x8xf32>
    %cst_86 = arith.constant 0.000000e+00 : f32
    %95 = vector.broadcast %cst_86 : f32 to vector<3x8xf32>
    %cst_87 = arith.constant 0.000000e+00 : f32
    %96 = vector.broadcast %cst_87 : f32 to vector<14x3xf32>
    %97 = tpu.concatenate %95, %88, %95 in 0 : vector<3x8xf32>, vector<8x8xf32>, vector<3x8xf32> -> vector<14x8xf32>
    %98 = tpu.concatenate %96, %97, %96 in 1 : vector<14x3xf32>, vector<14x8xf32>, vector<14x3xf32> -> vector<14x14xf32>
    %99 = tpu.concatenate %95, %94, %95 in 0 : vector<3x8xf32>, vector<8x8xf32>, vector<3x8xf32> -> vector<14x8xf32>
    %100 = tpu.concatenate %96, %99, %96 in 1 : vector<14x3xf32>, vector<14x8xf32>, vector<14x3xf32> -> vector<14x14xf32>
    %cst_88 = arith.constant 0.000000e+00 : f32
    %101 = vector.broadcast %cst_88 : f32 to vector<8x8xf32>
    %102 = vector.extract_strided_slice %98 {offsets = [0, 0], sizes = [8, 14], strides = [1, 1]} : vector<14x14xf32> to vector<8x14xf32>
    %103 = vector.extract_strided_slice %100 {offsets = [0, 0], sizes = [8, 14], strides = [1, 1]} : vector<14x14xf32> to vector<8x14xf32>
    %104 = vector.extract_strided_slice %102 {offsets = [0, 0], sizes = [8, 8], strides = [1, 1]} : vector<8x14xf32> to vector<8x8xf32>
    %c0_89 = arith.constant 0 : index
    %105 = memref.load %arg15[%c0_89] : memref<98xf32, #tpu.memory_space<smem>>
    %106 = vector.broadcast %105 : f32 to vector<8x8xf32>
    %107 = arith.mulf %104, %106 : vector<8x8xf32>
    %108 = arith.addf %101, %107 : vector<8x8xf32>
    %109 = vector.extract_strided_slice %103 {offsets = [0, 0], sizes = [8, 8], strides = [1, 1]} : vector<8x14xf32> to vector<8x8xf32>
    %c49 = arith.constant 49 : index
    %110 = memref.load %arg15[%c49] : memref<98xf32, #tpu.memory_space<smem>>
    %111 = vector.broadcast %110 : f32 to vector<8x8xf32>
    %112 = arith.mulf %109, %111 : vector<8x8xf32>
    %113 = arith.addf %108, %112 : vector<8x8xf32>
    %114 = vector.extract_strided_slice %102 {offsets = [0, 1], sizes = [8, 8], strides = [1, 1]} : vector<8x14xf32> to vector<8x8xf32>
    %c1_90 = arith.constant 1 : index
    %115 = memref.load %arg15[%c1_90] : memref<98xf32, #tpu.memory_space<smem>>
    %116 = vector.broadcast %115 : f32 to vector<8x8xf32>
    %117 = arith.mulf %114, %116 : vector<8x8xf32>
    %118 = arith.addf %113, %117 : vector<8x8xf32>
    %119 = vector.extract_strided_slice %103 {offsets = [0, 1], sizes = [8, 8], strides = [1, 1]} : vector<8x14xf32> to vector<8x8xf32>
    %c50 = arith.constant 50 : index
    %120 = memref.load %arg15[%c50] : memref<98xf32, #tpu.memory_space<smem>>
    %121 = vector.broadcast %120 : f32 to vector<8x8xf32>
    %122 = arith.mulf %119, %121 : vector<8x8xf32>
    %123 = arith.addf %118, %122 : vector<8x8xf32>
    %124 = vector.extract_strided_slice %102 {offsets = [0, 2], sizes = [8, 8], strides = [1, 1]} : vector<8x14xf32> to vector<8x8xf32>
    %c2_91 = arith.constant 2 : index
    %125 = memref.load %arg15[%c2_91] : memref<98xf32, #tpu.memory_space<smem>>
    %126 = vector.broadcast %125 : f32 to vector<8x8xf32>
    %127 = arith.mulf %124, %126 : vector<8x8xf32>
    %128 = arith.addf %123, %127 : vector<8x8xf32>
    %129 = vector.extract_strided_slice %103 {offsets = [0, 2], sizes = [8, 8], strides = [1, 1]} : vector<8x14xf32> to vector<8x8xf32>
    %c51 = arith.constant 51 : index
    %130 = memref.load %arg15[%c51] : memref<98xf32, #tpu.memory_space<smem>>
    %131 = vector.broadcast %130 : f32 to vector<8x8xf32>
    %132 = arith.mulf %129, %131 : vector<8x8xf32>
    %133 = arith.addf %128, %132 : vector<8x8xf32>
    %134 = vector.extract_strided_slice %102 {offsets = [0, 3], sizes = [8, 8], strides = [1, 1]} : vector<8x14xf32> to vector<8x8xf32>
    %c3 = arith.constant 3 : index
    %135 = memref.load %arg15[%c3] : memref<98xf32, #tpu.memory_space<smem>>
    %136 = vector.broadcast %135 : f32 to vector<8x8xf32>
    %137 = arith.mulf %134, %136 : vector<8x8xf32>
    %138 = arith.addf %133, %137 : vector<8x8xf32>
    %139 = vector.extract_strided_slice %103 {offsets = [0, 3], sizes = [8, 8], strides = [1, 1]} : vector<8x14xf32> to vector<8x8xf32>
    %c52 = arith.constant 52 : index
    %140 = memref.load %arg15[%c52] : memref<98xf32, #tpu.memory_space<smem>>
    %141 = vector.broadcast %140 : f32 to vector<8x8xf32>
    %142 = arith.mulf %139, %141 : vector<8x8xf32>
    %143 = arith.addf %138, %142 : vector<8x8xf32>
    %144 = vector.extract_strided_slice %102 {offsets = [0, 4], sizes = [8, 8], strides = [1, 1]} : vector<8x14xf32> to vector<8x8xf32>
    %c4 = arith.constant 4 : index
    %145 = memref.load %arg15[%c4] : memref<98xf32, #tpu.memory_space<smem>>
    %146 = vector.broadcast %145 : f32 to vector<8x8xf32>
    %147 = arith.mulf %144, %146 : vector<8x8xf32>
    %148 = arith.addf %143, %147 : vector<8x8xf32>
    %149 = vector.extract_strided_slice %103 {offsets = [0, 4], sizes = [8, 8], strides = [1, 1]} : vector<8x14xf32> to vector<8x8xf32>
    %c53 = arith.constant 53 : index
    %150 = memref.load %arg15[%c53] : memref<98xf32, #tpu.memory_space<smem>>
    %151 = vector.broadcast %150 : f32 to vector<8x8xf32>
    %152 = arith.mulf %149, %151 : vector<8x8xf32>
    %153 = arith.addf %148, %152 : vector<8x8xf32>
    %154 = vector.extract_strided_slice %102 {offsets = [0, 5], sizes = [8, 8], strides = [1, 1]} : vector<8x14xf32> to vector<8x8xf32>
    %c5 = arith.constant 5 : index
    %155 = memref.load %arg15[%c5] : memref<98xf32, #tpu.memory_space<smem>>
    %156 = vector.broadcast %155 : f32 to vector<8x8xf32>
    %157 = arith.mulf %154, %156 : vector<8x8xf32>
    %158 = arith.addf %153, %157 : vector<8x8xf32>
    %159 = vector.extract_strided_slice %103 {offsets = [0, 5], sizes = [8, 8], strides = [1, 1]} : vector<8x14xf32> to vector<8x8xf32>
    %c54 = arith.constant 54 : index
    %160 = memref.load %arg15[%c54] : memref<98xf32, #tpu.memory_space<smem>>
    %161 = vector.broadcast %160 : f32 to vector<8x8xf32>
    %162 = arith.mulf %159, %161 : vector<8x8xf32>
    %163 = arith.addf %158, %162 : vector<8x8xf32>
    %164 = vector.extract_strided_slice %102 {offsets = [0, 6], sizes = [8, 8], strides = [1, 1]} : vector<8x14xf32> to vector<8x8xf32>
    %c6 = arith.constant 6 : index
    %165 = memref.load %arg15[%c6] : memref<98xf32, #tpu.memory_space<smem>>
    %166 = vector.broadcast %165 : f32 to vector<8x8xf32>
    %167 = arith.mulf %164, %166 : vector<8x8xf32>
    %168 = arith.addf %163, %167 : vector<8x8xf32>
    %169 = vector.extract_strided_slice %103 {offsets = [0, 6], sizes = [8, 8], strides = [1, 1]} : vector<8x14xf32> to vector<8x8xf32>
    %c55 = arith.constant 55 : index
    %170 = memref.load %arg15[%c55] : memref<98xf32, #tpu.memory_space<smem>>
    %171 = vector.broadcast %170 : f32 to vector<8x8xf32>
    %172 = arith.mulf %169, %171 : vector<8x8xf32>
    %173 = arith.addf %168, %172 : vector<8x8xf32>
    %174 = vector.extract_strided_slice %98 {offsets = [1, 0], sizes = [8, 14], strides = [1, 1]} : vector<14x14xf32> to vector<8x14xf32>
    %175 = vector.extract_strided_slice %100 {offsets = [1, 0], sizes = [8, 14], strides = [1, 1]} : vector<14x14xf32> to vector<8x14xf32>
    %176 = vector.extract_strided_slice %174 {offsets = [0, 0], sizes = [8, 8], strides = [1, 1]} : vector<8x14xf32> to vector<8x8xf32>
    %c7 = arith.constant 7 : index
    %177 = memref.load %arg15[%c7] : memref<98xf32, #tpu.memory_space<smem>>
    %178 = vector.broadcast %177 : f32 to vector<8x8xf32>
    %179 = arith.mulf %176, %178 : vector<8x8xf32>
    %180 = arith.addf %173, %179 : vector<8x8xf32>
    %181 = vector.extract_strided_slice %175 {offsets = [0, 0], sizes = [8, 8], strides = [1, 1]} : vector<8x14xf32> to vector<8x8xf32>
    %c56 = arith.constant 56 : index
    %182 = memref.load %arg15[%c56] : memref<98xf32, #tpu.memory_space<smem>>
    %183 = vector.broadcast %182 : f32 to vector<8x8xf32>
    %184 = arith.mulf %181, %183 : vector<8x8xf32>
    %185 = arith.addf %180, %184 : vector<8x8xf32>
    %186 = vector.extract_strided_slice %174 {offsets = [0, 1], sizes = [8, 8], strides = [1, 1]} : vector<8x14xf32> to vector<8x8xf32>
    %c8 = arith.constant 8 : index
    %187 = memref.load %arg15[%c8] : memref<98xf32, #tpu.memory_space<smem>>
    %188 = vector.broadcast %187 : f32 to vector<8x8xf32>
    %189 = arith.mulf %186, %188 : vector<8x8xf32>
    %190 = arith.addf %185, %189 : vector<8x8xf32>
    %191 = vector.extract_strided_slice %175 {offsets = [0, 1], sizes = [8, 8], strides = [1, 1]} : vector<8x14xf32> to vector<8x8xf32>
    %c57 = arith.constant 57 : index
    %192 = memref.load %arg15[%c57] : memref<98xf32, #tpu.memory_space<smem>>
    %193 = vector.broadcast %192 : f32 to vector<8x8xf32>
    %194 = arith.mulf %191, %193 : vector<8x8xf32>
    %195 = arith.addf %190, %194 : vector<8x8xf32>
    %196 = vector.extract_strided_slice %174 {offsets = [0, 2], sizes = [8, 8], strides = [1, 1]} : vector<8x14xf32> to vector<8x8xf32>
    %c9_92 = arith.constant 9 : index
    %197 = memref.load %arg15[%c9_92] : memref<98xf32, #tpu.memory_space<smem>>
    %198 = vector.broadcast %197 : f32 to vector<8x8xf32>
    %199 = arith.mulf %196, %198 : vector<8x8xf32>
    %200 = arith.addf %195, %199 : vector<8x8xf32>
    %201 = vector.extract_strided_slice %175 {offsets = [0, 2], sizes = [8, 8], strides = [1, 1]} : vector<8x14xf32> to vector<8x8xf32>
    %c58 = arith.constant 58 : index
    %202 = memref.load %arg15[%c58] : memref<98xf32, #tpu.memory_space<smem>>
    %203 = vector.broadcast %202 : f32 to vector<8x8xf32>
    %204 = arith.mulf %201, %203 : vector<8x8xf32>
    %205 = arith.addf %200, %204 : vector<8x8xf32>
    %206 = vector.extract_strided_slice %174 {offsets = [0, 3], sizes = [8, 8], strides = [1, 1]} : vector<8x14xf32> to vector<8x8xf32>
    %c10 = arith.constant 10 : index
    %207 = memref.load %arg15[%c10] : memref<98xf32, #tpu.memory_space<smem>>
    %208 = vector.broadcast %207 : f32 to vector<8x8xf32>
    %209 = arith.mulf %206, %208 : vector<8x8xf32>
    %210 = arith.addf %205, %209 : vector<8x8xf32>
    %211 = vector.extract_strided_slice %175 {offsets = [0, 3], sizes = [8, 8], strides = [1, 1]} : vector<8x14xf32> to vector<8x8xf32>
    %c59 = arith.constant 59 : index
    %212 = memref.load %arg15[%c59] : memref<98xf32, #tpu.memory_space<smem>>
    %213 = vector.broadcast %212 : f32 to vector<8x8xf32>
    %214 = arith.mulf %211, %213 : vector<8x8xf32>
    %215 = arith.addf %210, %214 : vector<8x8xf32>
    %216 = vector.extract_strided_slice %174 {offsets = [0, 4], sizes = [8, 8], strides = [1, 1]} : vector<8x14xf32> to vector<8x8xf32>
    %c11 = arith.constant 11 : index
    %217 = memref.load %arg15[%c11] : memref<98xf32, #tpu.memory_space<smem>>
    %218 = vector.broadcast %217 : f32 to vector<8x8xf32>
    %219 = arith.mulf %216, %218 : vector<8x8xf32>
    %220 = arith.addf %215, %219 : vector<8x8xf32>
    %221 = vector.extract_strided_slice %175 {offsets = [0, 4], sizes = [8, 8], strides = [1, 1]} : vector<8x14xf32> to vector<8x8xf32>
    %c60 = arith.constant 60 : index
    %222 = memref.load %arg15[%c60] : memref<98xf32, #tpu.memory_space<smem>>
    %223 = vector.broadcast %222 : f32 to vector<8x8xf32>
    %224 = arith.mulf %221, %223 : vector<8x8xf32>
    %225 = arith.addf %220, %224 : vector<8x8xf32>
    %226 = vector.extract_strided_slice %174 {offsets = [0, 5], sizes = [8, 8], strides = [1, 1]} : vector<8x14xf32> to vector<8x8xf32>
    %c12 = arith.constant 12 : index
    %227 = memref.load %arg15[%c12] : memref<98xf32, #tpu.memory_space<smem>>
    %228 = vector.broadcast %227 : f32 to vector<8x8xf32>
    %229 = arith.mulf %226, %228 : vector<8x8xf32>
    %230 = arith.addf %225, %229 : vector<8x8xf32>
    %231 = vector.extract_strided_slice %175 {offsets = [0, 5], sizes = [8, 8], strides = [1, 1]} : vector<8x14xf32> to vector<8x8xf32>
    %c61 = arith.constant 61 : index
    %232 = memref.load %arg15[%c61] : memref<98xf32, #tpu.memory_space<smem>>
    %233 = vector.broadcast %232 : f32 to vector<8x8xf32>
    %234 = arith.mulf %231, %233 : vector<8x8xf32>
    %235 = arith.addf %230, %234 : vector<8x8xf32>
    %236 = vector.extract_strided_slice %174 {offsets = [0, 6], sizes = [8, 8], strides = [1, 1]} : vector<8x14xf32> to vector<8x8xf32>
    %c13 = arith.constant 13 : index
    %237 = memref.load %arg15[%c13] : memref<98xf32, #tpu.memory_space<smem>>
    %238 = vector.broadcast %237 : f32 to vector<8x8xf32>
    %239 = arith.mulf %236, %238 : vector<8x8xf32>
    %240 = arith.addf %235, %239 : vector<8x8xf32>
    %241 = vector.extract_strided_slice %175 {offsets = [0, 6], sizes = [8, 8], strides = [1, 1]} : vector<8x14xf32> to vector<8x8xf32>
    %c62 = arith.constant 62 : index
    %242 = memref.load %arg15[%c62] : memref<98xf32, #tpu.memory_space<smem>>
    %243 = vector.broadcast %242 : f32 to vector<8x8xf32>
    %244 = arith.mulf %241, %243 : vector<8x8xf32>
    %245 = arith.addf %240, %244 : vector<8x8xf32>
    %246 = vector.extract_strided_slice %98 {offsets = [2, 0], sizes = [8, 14], strides = [1, 1]} : vector<14x14xf32> to vector<8x14xf32>
    %247 = vector.extract_strided_slice %100 {offsets = [2, 0], sizes = [8, 14], strides = [1, 1]} : vector<14x14xf32> to vector<8x14xf32>
    %248 = vector.extract_strided_slice %246 {offsets = [0, 0], sizes = [8, 8], strides = [1, 1]} : vector<8x14xf32> to vector<8x8xf32>
    %c14 = arith.constant 14 : index
    %249 = memref.load %arg15[%c14] : memref<98xf32, #tpu.memory_space<smem>>
    %250 = vector.broadcast %249 : f32 to vector<8x8xf32>
    %251 = arith.mulf %248, %250 : vector<8x8xf32>
    %252 = arith.addf %245, %251 : vector<8x8xf32>
    %253 = vector.extract_strided_slice %247 {offsets = [0, 0], sizes = [8, 8], strides = [1, 1]} : vector<8x14xf32> to vector<8x8xf32>
    %c63 = arith.constant 63 : index
    %254 = memref.load %arg15[%c63] : memref<98xf32, #tpu.memory_space<smem>>
    %255 = vector.broadcast %254 : f32 to vector<8x8xf32>
    %256 = arith.mulf %253, %255 : vector<8x8xf32>
    %257 = arith.addf %252, %256 : vector<8x8xf32>
    %258 = vector.extract_strided_slice %246 {offsets = [0, 1], sizes = [8, 8], strides = [1, 1]} : vector<8x14xf32> to vector<8x8xf32>
    %c15 = arith.constant 15 : index
    %259 = memref.load %arg15[%c15] : memref<98xf32, #tpu.memory_space<smem>>
    %260 = vector.broadcast %259 : f32 to vector<8x8xf32>
    %261 = arith.mulf %258, %260 : vector<8x8xf32>
    %262 = arith.addf %257, %261 : vector<8x8xf32>
    %263 = vector.extract_strided_slice %247 {offsets = [0, 1], sizes = [8, 8], strides = [1, 1]} : vector<8x14xf32> to vector<8x8xf32>
    %c64 = arith.constant 64 : index
    %264 = memref.load %arg15[%c64] : memref<98xf32, #tpu.memory_space<smem>>
    %265 = vector.broadcast %264 : f32 to vector<8x8xf32>
    %266 = arith.mulf %263, %265 : vector<8x8xf32>
    %267 = arith.addf %262, %266 : vector<8x8xf32>
    %268 = vector.extract_strided_slice %246 {offsets = [0, 2], sizes = [8, 8], strides = [1, 1]} : vector<8x14xf32> to vector<8x8xf32>
    %c16 = arith.constant 16 : index
    %269 = memref.load %arg15[%c16] : memref<98xf32, #tpu.memory_space<smem>>
    %270 = vector.broadcast %269 : f32 to vector<8x8xf32>
    %271 = arith.mulf %268, %270 : vector<8x8xf32>
    %272 = arith.addf %267, %271 : vector<8x8xf32>
    %273 = vector.extract_strided_slice %247 {offsets = [0, 2], sizes = [8, 8], strides = [1, 1]} : vector<8x14xf32> to vector<8x8xf32>
    %c65 = arith.constant 65 : index
    %274 = memref.load %arg15[%c65] : memref<98xf32, #tpu.memory_space<smem>>
    %275 = vector.broadcast %274 : f32 to vector<8x8xf32>
    %276 = arith.mulf %273, %275 : vector<8x8xf32>
    %277 = arith.addf %272, %276 : vector<8x8xf32>
    %278 = vector.extract_strided_slice %246 {offsets = [0, 3], sizes = [8, 8], strides = [1, 1]} : vector<8x14xf32> to vector<8x8xf32>
    %c17 = arith.constant 17 : index
    %279 = memref.load %arg15[%c17] : memref<98xf32, #tpu.memory_space<smem>>
    %280 = vector.broadcast %279 : f32 to vector<8x8xf32>
    %281 = arith.mulf %278, %280 : vector<8x8xf32>
    %282 = arith.addf %277, %281 : vector<8x8xf32>
    %283 = vector.extract_strided_slice %247 {offsets = [0, 3], sizes = [8, 8], strides = [1, 1]} : vector<8x14xf32> to vector<8x8xf32>
    %c66 = arith.constant 66 : index
    %284 = memref.load %arg15[%c66] : memref<98xf32, #tpu.memory_space<smem>>
    %285 = vector.broadcast %284 : f32 to vector<8x8xf32>
    %286 = arith.mulf %283, %285 : vector<8x8xf32>
    %287 = arith.addf %282, %286 : vector<8x8xf32>
    %288 = vector.extract_strided_slice %246 {offsets = [0, 4], sizes = [8, 8], strides = [1, 1]} : vector<8x14xf32> to vector<8x8xf32>
    %c18 = arith.constant 18 : index
    %289 = memref.load %arg15[%c18] : memref<98xf32, #tpu.memory_space<smem>>
    %290 = vector.broadcast %289 : f32 to vector<8x8xf32>
    %291 = arith.mulf %288, %290 : vector<8x8xf32>
    %292 = arith.addf %287, %291 : vector<8x8xf32>
    %293 = vector.extract_strided_slice %247 {offsets = [0, 4], sizes = [8, 8], strides = [1, 1]} : vector<8x14xf32> to vector<8x8xf32>
    %c67 = arith.constant 67 : index
    %294 = memref.load %arg15[%c67] : memref<98xf32, #tpu.memory_space<smem>>
    %295 = vector.broadcast %294 : f32 to vector<8x8xf32>
    %296 = arith.mulf %293, %295 : vector<8x8xf32>
    %297 = arith.addf %292, %296 : vector<8x8xf32>
    %298 = vector.extract_strided_slice %246 {offsets = [0, 5], sizes = [8, 8], strides = [1, 1]} : vector<8x14xf32> to vector<8x8xf32>
    %c19 = arith.constant 19 : index
    %299 = memref.load %arg15[%c19] : memref<98xf32, #tpu.memory_space<smem>>
    %300 = vector.broadcast %299 : f32 to vector<8x8xf32>
    %301 = arith.mulf %298, %300 : vector<8x8xf32>
    %302 = arith.addf %297, %301 : vector<8x8xf32>
    %303 = vector.extract_strided_slice %247 {offsets = [0, 5], sizes = [8, 8], strides = [1, 1]} : vector<8x14xf32> to vector<8x8xf32>
    %c68 = arith.constant 68 : index
    %304 = memref.load %arg15[%c68] : memref<98xf32, #tpu.memory_space<smem>>
    %305 = vector.broadcast %304 : f32 to vector<8x8xf32>
    %306 = arith.mulf %303, %305 : vector<8x8xf32>
    %307 = arith.addf %302, %306 : vector<8x8xf32>
    %308 = vector.extract_strided_slice %246 {offsets = [0, 6], sizes = [8, 8], strides = [1, 1]} : vector<8x14xf32> to vector<8x8xf32>
    %c20 = arith.constant 20 : index
    %309 = memref.load %arg15[%c20] : memref<98xf32, #tpu.memory_space<smem>>
    %310 = vector.broadcast %309 : f32 to vector<8x8xf32>
    %311 = arith.mulf %308, %310 : vector<8x8xf32>
    %312 = arith.addf %307, %311 : vector<8x8xf32>
    %313 = vector.extract_strided_slice %247 {offsets = [0, 6], sizes = [8, 8], strides = [1, 1]} : vector<8x14xf32> to vector<8x8xf32>
    %c69 = arith.constant 69 : index
    %314 = memref.load %arg15[%c69] : memref<98xf32, #tpu.memory_space<smem>>
    %315 = vector.broadcast %314 : f32 to vector<8x8xf32>
    %316 = arith.mulf %313, %315 : vector<8x8xf32>
    %317 = arith.addf %312, %316 : vector<8x8xf32>
    %318 = vector.extract_strided_slice %98 {offsets = [3, 0], sizes = [8, 14], strides = [1, 1]} : vector<14x14xf32> to vector<8x14xf32>
    %319 = vector.extract_strided_slice %100 {offsets = [3, 0], sizes = [8, 14], strides = [1, 1]} : vector<14x14xf32> to vector<8x14xf32>
    %320 = vector.extract_strided_slice %318 {offsets = [0, 0], sizes = [8, 8], strides = [1, 1]} : vector<8x14xf32> to vector<8x8xf32>
    %c21 = arith.constant 21 : index
    %321 = memref.load %arg15[%c21] : memref<98xf32, #tpu.memory_space<smem>>
    %322 = vector.broadcast %321 : f32 to vector<8x8xf32>
    %323 = arith.mulf %320, %322 : vector<8x8xf32>
    %324 = arith.addf %317, %323 : vector<8x8xf32>
    %325 = vector.extract_strided_slice %319 {offsets = [0, 0], sizes = [8, 8], strides = [1, 1]} : vector<8x14xf32> to vector<8x8xf32>
    %c70 = arith.constant 70 : index
    %326 = memref.load %arg15[%c70] : memref<98xf32, #tpu.memory_space<smem>>
    %327 = vector.broadcast %326 : f32 to vector<8x8xf32>
    %328 = arith.mulf %325, %327 : vector<8x8xf32>
    %329 = arith.addf %324, %328 : vector<8x8xf32>
    %330 = vector.extract_strided_slice %318 {offsets = [0, 1], sizes = [8, 8], strides = [1, 1]} : vector<8x14xf32> to vector<8x8xf32>
    %c22 = arith.constant 22 : index
    %331 = memref.load %arg15[%c22] : memref<98xf32, #tpu.memory_space<smem>>
    %332 = vector.broadcast %331 : f32 to vector<8x8xf32>
    %333 = arith.mulf %330, %332 : vector<8x8xf32>
    %334 = arith.addf %329, %333 : vector<8x8xf32>
    %335 = vector.extract_strided_slice %319 {offsets = [0, 1], sizes = [8, 8], strides = [1, 1]} : vector<8x14xf32> to vector<8x8xf32>
    %c71 = arith.constant 71 : index
    %336 = memref.load %arg15[%c71] : memref<98xf32, #tpu.memory_space<smem>>
    %337 = vector.broadcast %336 : f32 to vector<8x8xf32>
    %338 = arith.mulf %335, %337 : vector<8x8xf32>
    %339 = arith.addf %334, %338 : vector<8x8xf32>
    %340 = vector.extract_strided_slice %318 {offsets = [0, 2], sizes = [8, 8], strides = [1, 1]} : vector<8x14xf32> to vector<8x8xf32>
    %c23 = arith.constant 23 : index
    %341 = memref.load %arg15[%c23] : memref<98xf32, #tpu.memory_space<smem>>
    %342 = vector.broadcast %341 : f32 to vector<8x8xf32>
    %343 = arith.mulf %340, %342 : vector<8x8xf32>
    %344 = arith.addf %339, %343 : vector<8x8xf32>
    %345 = vector.extract_strided_slice %319 {offsets = [0, 2], sizes = [8, 8], strides = [1, 1]} : vector<8x14xf32> to vector<8x8xf32>
    %c72 = arith.constant 72 : index
    %346 = memref.load %arg15[%c72] : memref<98xf32, #tpu.memory_space<smem>>
    %347 = vector.broadcast %346 : f32 to vector<8x8xf32>
    %348 = arith.mulf %345, %347 : vector<8x8xf32>
    %349 = arith.addf %344, %348 : vector<8x8xf32>
    %350 = vector.extract_strided_slice %318 {offsets = [0, 3], sizes = [8, 8], strides = [1, 1]} : vector<8x14xf32> to vector<8x8xf32>
    %c24 = arith.constant 24 : index
    %351 = memref.load %arg15[%c24] : memref<98xf32, #tpu.memory_space<smem>>
    %352 = vector.broadcast %351 : f32 to vector<8x8xf32>
    %353 = arith.mulf %350, %352 : vector<8x8xf32>
    %354 = arith.addf %349, %353 : vector<8x8xf32>
    %355 = vector.extract_strided_slice %319 {offsets = [0, 3], sizes = [8, 8], strides = [1, 1]} : vector<8x14xf32> to vector<8x8xf32>
    %c73 = arith.constant 73 : index
    %356 = memref.load %arg15[%c73] : memref<98xf32, #tpu.memory_space<smem>>
    %357 = vector.broadcast %356 : f32 to vector<8x8xf32>
    %358 = arith.mulf %355, %357 : vector<8x8xf32>
    %359 = arith.addf %354, %358 : vector<8x8xf32>
    %360 = vector.extract_strided_slice %318 {offsets = [0, 4], sizes = [8, 8], strides = [1, 1]} : vector<8x14xf32> to vector<8x8xf32>
    %c25 = arith.constant 25 : index
    %361 = memref.load %arg15[%c25] : memref<98xf32, #tpu.memory_space<smem>>
    %362 = vector.broadcast %361 : f32 to vector<8x8xf32>
    %363 = arith.mulf %360, %362 : vector<8x8xf32>
    %364 = arith.addf %359, %363 : vector<8x8xf32>
    %365 = vector.extract_strided_slice %319 {offsets = [0, 4], sizes = [8, 8], strides = [1, 1]} : vector<8x14xf32> to vector<8x8xf32>
    %c74 = arith.constant 74 : index
    %366 = memref.load %arg15[%c74] : memref<98xf32, #tpu.memory_space<smem>>
    %367 = vector.broadcast %366 : f32 to vector<8x8xf32>
    %368 = arith.mulf %365, %367 : vector<8x8xf32>
    %369 = arith.addf %364, %368 : vector<8x8xf32>
    %370 = vector.extract_strided_slice %318 {offsets = [0, 5], sizes = [8, 8], strides = [1, 1]} : vector<8x14xf32> to vector<8x8xf32>
    %c26 = arith.constant 26 : index
    %371 = memref.load %arg15[%c26] : memref<98xf32, #tpu.memory_space<smem>>
    %372 = vector.broadcast %371 : f32 to vector<8x8xf32>
    %373 = arith.mulf %370, %372 : vector<8x8xf32>
    %374 = arith.addf %369, %373 : vector<8x8xf32>
    %375 = vector.extract_strided_slice %319 {offsets = [0, 5], sizes = [8, 8], strides = [1, 1]} : vector<8x14xf32> to vector<8x8xf32>
    %c75 = arith.constant 75 : index
    %376 = memref.load %arg15[%c75] : memref<98xf32, #tpu.memory_space<smem>>
    %377 = vector.broadcast %376 : f32 to vector<8x8xf32>
    %378 = arith.mulf %375, %377 : vector<8x8xf32>
    %379 = arith.addf %374, %378 : vector<8x8xf32>
    %380 = vector.extract_strided_slice %318 {offsets = [0, 6], sizes = [8, 8], strides = [1, 1]} : vector<8x14xf32> to vector<8x8xf32>
    %c27 = arith.constant 27 : index
    %381 = memref.load %arg15[%c27] : memref<98xf32, #tpu.memory_space<smem>>
    %382 = vector.broadcast %381 : f32 to vector<8x8xf32>
    %383 = arith.mulf %380, %382 : vector<8x8xf32>
    %384 = arith.addf %379, %383 : vector<8x8xf32>
    %385 = vector.extract_strided_slice %319 {offsets = [0, 6], sizes = [8, 8], strides = [1, 1]} : vector<8x14xf32> to vector<8x8xf32>
    %c76 = arith.constant 76 : index
    %386 = memref.load %arg15[%c76] : memref<98xf32, #tpu.memory_space<smem>>
    %387 = vector.broadcast %386 : f32 to vector<8x8xf32>
    %388 = arith.mulf %385, %387 : vector<8x8xf32>
    %389 = arith.addf %384, %388 : vector<8x8xf32>
    %390 = vector.extract_strided_slice %98 {offsets = [4, 0], sizes = [8, 14], strides = [1, 1]} : vector<14x14xf32> to vector<8x14xf32>
    %391 = vector.extract_strided_slice %100 {offsets = [4, 0], sizes = [8, 14], strides = [1, 1]} : vector<14x14xf32> to vector<8x14xf32>
    %392 = vector.extract_strided_slice %390 {offsets = [0, 0], sizes = [8, 8], strides = [1, 1]} : vector<8x14xf32> to vector<8x8xf32>
    %c28 = arith.constant 28 : index
    %393 = memref.load %arg15[%c28] : memref<98xf32, #tpu.memory_space<smem>>
    %394 = vector.broadcast %393 : f32 to vector<8x8xf32>
    %395 = arith.mulf %392, %394 : vector<8x8xf32>
    %396 = arith.addf %389, %395 : vector<8x8xf32>
    %397 = vector.extract_strided_slice %391 {offsets = [0, 0], sizes = [8, 8], strides = [1, 1]} : vector<8x14xf32> to vector<8x8xf32>
    %c77 = arith.constant 77 : index
    %398 = memref.load %arg15[%c77] : memref<98xf32, #tpu.memory_space<smem>>
    %399 = vector.broadcast %398 : f32 to vector<8x8xf32>
    %400 = arith.mulf %397, %399 : vector<8x8xf32>
    %401 = arith.addf %396, %400 : vector<8x8xf32>
    %402 = vector.extract_strided_slice %390 {offsets = [0, 1], sizes = [8, 8], strides = [1, 1]} : vector<8x14xf32> to vector<8x8xf32>
    %c29 = arith.constant 29 : index
    %403 = memref.load %arg15[%c29] : memref<98xf32, #tpu.memory_space<smem>>
    %404 = vector.broadcast %403 : f32 to vector<8x8xf32>
    %405 = arith.mulf %402, %404 : vector<8x8xf32>
    %406 = arith.addf %401, %405 : vector<8x8xf32>
    %407 = vector.extract_strided_slice %391 {offsets = [0, 1], sizes = [8, 8], strides = [1, 1]} : vector<8x14xf32> to vector<8x8xf32>
    %c78 = arith.constant 78 : index
    %408 = memref.load %arg15[%c78] : memref<98xf32, #tpu.memory_space<smem>>
    %409 = vector.broadcast %408 : f32 to vector<8x8xf32>
    %410 = arith.mulf %407, %409 : vector<8x8xf32>
    %411 = arith.addf %406, %410 : vector<8x8xf32>
    %412 = vector.extract_strided_slice %390 {offsets = [0, 2], sizes = [8, 8], strides = [1, 1]} : vector<8x14xf32> to vector<8x8xf32>
    %c30 = arith.constant 30 : index
    %413 = memref.load %arg15[%c30] : memref<98xf32, #tpu.memory_space<smem>>
    %414 = vector.broadcast %413 : f32 to vector<8x8xf32>
    %415 = arith.mulf %412, %414 : vector<8x8xf32>
    %416 = arith.addf %411, %415 : vector<8x8xf32>
    %417 = vector.extract_strided_slice %391 {offsets = [0, 2], sizes = [8, 8], strides = [1, 1]} : vector<8x14xf32> to vector<8x8xf32>
    %c79 = arith.constant 79 : index
    %418 = memref.load %arg15[%c79] : memref<98xf32, #tpu.memory_space<smem>>
    %419 = vector.broadcast %418 : f32 to vector<8x8xf32>
    %420 = arith.mulf %417, %419 : vector<8x8xf32>
    %421 = arith.addf %416, %420 : vector<8x8xf32>
    %422 = vector.extract_strided_slice %390 {offsets = [0, 3], sizes = [8, 8], strides = [1, 1]} : vector<8x14xf32> to vector<8x8xf32>
    %c31 = arith.constant 31 : index
    %423 = memref.load %arg15[%c31] : memref<98xf32, #tpu.memory_space<smem>>
    %424 = vector.broadcast %423 : f32 to vector<8x8xf32>
    %425 = arith.mulf %422, %424 : vector<8x8xf32>
    %426 = arith.addf %421, %425 : vector<8x8xf32>
    %427 = vector.extract_strided_slice %391 {offsets = [0, 3], sizes = [8, 8], strides = [1, 1]} : vector<8x14xf32> to vector<8x8xf32>
    %c80 = arith.constant 80 : index
    %428 = memref.load %arg15[%c80] : memref<98xf32, #tpu.memory_space<smem>>
    %429 = vector.broadcast %428 : f32 to vector<8x8xf32>
    %430 = arith.mulf %427, %429 : vector<8x8xf32>
    %431 = arith.addf %426, %430 : vector<8x8xf32>
    %432 = vector.extract_strided_slice %390 {offsets = [0, 4], sizes = [8, 8], strides = [1, 1]} : vector<8x14xf32> to vector<8x8xf32>
    %c32 = arith.constant 32 : index
    %433 = memref.load %arg15[%c32] : memref<98xf32, #tpu.memory_space<smem>>
    %434 = vector.broadcast %433 : f32 to vector<8x8xf32>
    %435 = arith.mulf %432, %434 : vector<8x8xf32>
    %436 = arith.addf %431, %435 : vector<8x8xf32>
    %437 = vector.extract_strided_slice %391 {offsets = [0, 4], sizes = [8, 8], strides = [1, 1]} : vector<8x14xf32> to vector<8x8xf32>
    %c81 = arith.constant 81 : index
    %438 = memref.load %arg15[%c81] : memref<98xf32, #tpu.memory_space<smem>>
    %439 = vector.broadcast %438 : f32 to vector<8x8xf32>
    %440 = arith.mulf %437, %439 : vector<8x8xf32>
    %441 = arith.addf %436, %440 : vector<8x8xf32>
    %442 = vector.extract_strided_slice %390 {offsets = [0, 5], sizes = [8, 8], strides = [1, 1]} : vector<8x14xf32> to vector<8x8xf32>
    %c33 = arith.constant 33 : index
    %443 = memref.load %arg15[%c33] : memref<98xf32, #tpu.memory_space<smem>>
    %444 = vector.broadcast %443 : f32 to vector<8x8xf32>
    %445 = arith.mulf %442, %444 : vector<8x8xf32>
    %446 = arith.addf %441, %445 : vector<8x8xf32>
    %447 = vector.extract_strided_slice %391 {offsets = [0, 5], sizes = [8, 8], strides = [1, 1]} : vector<8x14xf32> to vector<8x8xf32>
    %c82 = arith.constant 82 : index
    %448 = memref.load %arg15[%c82] : memref<98xf32, #tpu.memory_space<smem>>
    %449 = vector.broadcast %448 : f32 to vector<8x8xf32>
    %450 = arith.mulf %447, %449 : vector<8x8xf32>
    %451 = arith.addf %446, %450 : vector<8x8xf32>
    %452 = vector.extract_strided_slice %390 {offsets = [0, 6], sizes = [8, 8], strides = [1, 1]} : vector<8x14xf32> to vector<8x8xf32>
    %c34 = arith.constant 34 : index
    %453 = memref.load %arg15[%c34] : memref<98xf32, #tpu.memory_space<smem>>
    %454 = vector.broadcast %453 : f32 to vector<8x8xf32>
    %455 = arith.mulf %452, %454 : vector<8x8xf32>
    %456 = arith.addf %451, %455 : vector<8x8xf32>
    %457 = vector.extract_strided_slice %391 {offsets = [0, 6], sizes = [8, 8], strides = [1, 1]} : vector<8x14xf32> to vector<8x8xf32>
    %c83 = arith.constant 83 : index
    %458 = memref.load %arg15[%c83] : memref<98xf32, #tpu.memory_space<smem>>
    %459 = vector.broadcast %458 : f32 to vector<8x8xf32>
    %460 = arith.mulf %457, %459 : vector<8x8xf32>
    %461 = arith.addf %456, %460 : vector<8x8xf32>
    %462 = vector.extract_strided_slice %98 {offsets = [5, 0], sizes = [8, 14], strides = [1, 1]} : vector<14x14xf32> to vector<8x14xf32>
    %463 = vector.extract_strided_slice %100 {offsets = [5, 0], sizes = [8, 14], strides = [1, 1]} : vector<14x14xf32> to vector<8x14xf32>
    %464 = vector.extract_strided_slice %462 {offsets = [0, 0], sizes = [8, 8], strides = [1, 1]} : vector<8x14xf32> to vector<8x8xf32>
    %c35 = arith.constant 35 : index
    %465 = memref.load %arg15[%c35] : memref<98xf32, #tpu.memory_space<smem>>
    %466 = vector.broadcast %465 : f32 to vector<8x8xf32>
    %467 = arith.mulf %464, %466 : vector<8x8xf32>
    %468 = arith.addf %461, %467 : vector<8x8xf32>
    %469 = vector.extract_strided_slice %463 {offsets = [0, 0], sizes = [8, 8], strides = [1, 1]} : vector<8x14xf32> to vector<8x8xf32>
    %c84 = arith.constant 84 : index
    %470 = memref.load %arg15[%c84] : memref<98xf32, #tpu.memory_space<smem>>
    %471 = vector.broadcast %470 : f32 to vector<8x8xf32>
    %472 = arith.mulf %469, %471 : vector<8x8xf32>
    %473 = arith.addf %468, %472 : vector<8x8xf32>
    %474 = vector.extract_strided_slice %462 {offsets = [0, 1], sizes = [8, 8], strides = [1, 1]} : vector<8x14xf32> to vector<8x8xf32>
    %c36 = arith.constant 36 : index
    %475 = memref.load %arg15[%c36] : memref<98xf32, #tpu.memory_space<smem>>
    %476 = vector.broadcast %475 : f32 to vector<8x8xf32>
    %477 = arith.mulf %474, %476 : vector<8x8xf32>
    %478 = arith.addf %473, %477 : vector<8x8xf32>
    %479 = vector.extract_strided_slice %463 {offsets = [0, 1], sizes = [8, 8], strides = [1, 1]} : vector<8x14xf32> to vector<8x8xf32>
    %c85 = arith.constant 85 : index
    %480 = memref.load %arg15[%c85] : memref<98xf32, #tpu.memory_space<smem>>
    %481 = vector.broadcast %480 : f32 to vector<8x8xf32>
    %482 = arith.mulf %479, %481 : vector<8x8xf32>
    %483 = arith.addf %478, %482 : vector<8x8xf32>
    %484 = vector.extract_strided_slice %462 {offsets = [0, 2], sizes = [8, 8], strides = [1, 1]} : vector<8x14xf32> to vector<8x8xf32>
    %c37 = arith.constant 37 : index
    %485 = memref.load %arg15[%c37] : memref<98xf32, #tpu.memory_space<smem>>
    %486 = vector.broadcast %485 : f32 to vector<8x8xf32>
    %487 = arith.mulf %484, %486 : vector<8x8xf32>
    %488 = arith.addf %483, %487 : vector<8x8xf32>
    %489 = vector.extract_strided_slice %463 {offsets = [0, 2], sizes = [8, 8], strides = [1, 1]} : vector<8x14xf32> to vector<8x8xf32>
    %c86 = arith.constant 86 : index
    %490 = memref.load %arg15[%c86] : memref<98xf32, #tpu.memory_space<smem>>
    %491 = vector.broadcast %490 : f32 to vector<8x8xf32>
    %492 = arith.mulf %489, %491 : vector<8x8xf32>
    %493 = arith.addf %488, %492 : vector<8x8xf32>
    %494 = vector.extract_strided_slice %462 {offsets = [0, 3], sizes = [8, 8], strides = [1, 1]} : vector<8x14xf32> to vector<8x8xf32>
    %c38 = arith.constant 38 : index
    %495 = memref.load %arg15[%c38] : memref<98xf32, #tpu.memory_space<smem>>
    %496 = vector.broadcast %495 : f32 to vector<8x8xf32>
    %497 = arith.mulf %494, %496 : vector<8x8xf32>
    %498 = arith.addf %493, %497 : vector<8x8xf32>
    %499 = vector.extract_strided_slice %463 {offsets = [0, 3], sizes = [8, 8], strides = [1, 1]} : vector<8x14xf32> to vector<8x8xf32>
    %c87 = arith.constant 87 : index
    %500 = memref.load %arg15[%c87] : memref<98xf32, #tpu.memory_space<smem>>
    %501 = vector.broadcast %500 : f32 to vector<8x8xf32>
    %502 = arith.mulf %499, %501 : vector<8x8xf32>
    %503 = arith.addf %498, %502 : vector<8x8xf32>
    %504 = vector.extract_strided_slice %462 {offsets = [0, 4], sizes = [8, 8], strides = [1, 1]} : vector<8x14xf32> to vector<8x8xf32>
    %c39 = arith.constant 39 : index
    %505 = memref.load %arg15[%c39] : memref<98xf32, #tpu.memory_space<smem>>
    %506 = vector.broadcast %505 : f32 to vector<8x8xf32>
    %507 = arith.mulf %504, %506 : vector<8x8xf32>
    %508 = arith.addf %503, %507 : vector<8x8xf32>
    %509 = vector.extract_strided_slice %463 {offsets = [0, 4], sizes = [8, 8], strides = [1, 1]} : vector<8x14xf32> to vector<8x8xf32>
    %c88 = arith.constant 88 : index
    %510 = memref.load %arg15[%c88] : memref<98xf32, #tpu.memory_space<smem>>
    %511 = vector.broadcast %510 : f32 to vector<8x8xf32>
    %512 = arith.mulf %509, %511 : vector<8x8xf32>
    %513 = arith.addf %508, %512 : vector<8x8xf32>
    %514 = vector.extract_strided_slice %462 {offsets = [0, 5], sizes = [8, 8], strides = [1, 1]} : vector<8x14xf32> to vector<8x8xf32>
    %c40 = arith.constant 40 : index
    %515 = memref.load %arg15[%c40] : memref<98xf32, #tpu.memory_space<smem>>
    %516 = vector.broadcast %515 : f32 to vector<8x8xf32>
    %517 = arith.mulf %514, %516 : vector<8x8xf32>
    %518 = arith.addf %513, %517 : vector<8x8xf32>
    %519 = vector.extract_strided_slice %463 {offsets = [0, 5], sizes = [8, 8], strides = [1, 1]} : vector<8x14xf32> to vector<8x8xf32>
    %c89 = arith.constant 89 : index
    %520 = memref.load %arg15[%c89] : memref<98xf32, #tpu.memory_space<smem>>
    %521 = vector.broadcast %520 : f32 to vector<8x8xf32>
    %522 = arith.mulf %519, %521 : vector<8x8xf32>
    %523 = arith.addf %518, %522 : vector<8x8xf32>
    %524 = vector.extract_strided_slice %462 {offsets = [0, 6], sizes = [8, 8], strides = [1, 1]} : vector<8x14xf32> to vector<8x8xf32>
    %c41 = arith.constant 41 : index
    %525 = memref.load %arg15[%c41] : memref<98xf32, #tpu.memory_space<smem>>
    %526 = vector.broadcast %525 : f32 to vector<8x8xf32>
    %527 = arith.mulf %524, %526 : vector<8x8xf32>
    %528 = arith.addf %523, %527 : vector<8x8xf32>
    %529 = vector.extract_strided_slice %463 {offsets = [0, 6], sizes = [8, 8], strides = [1, 1]} : vector<8x14xf32> to vector<8x8xf32>
    %c90 = arith.constant 90 : index
    %530 = memref.load %arg15[%c90] : memref<98xf32, #tpu.memory_space<smem>>
    %531 = vector.broadcast %530 : f32 to vector<8x8xf32>
    %532 = arith.mulf %529, %531 : vector<8x8xf32>
    %533 = arith.addf %528, %532 : vector<8x8xf32>
    %534 = vector.extract_strided_slice %98 {offsets = [6, 0], sizes = [8, 14], strides = [1, 1]} : vector<14x14xf32> to vector<8x14xf32>
    %535 = vector.extract_strided_slice %100 {offsets = [6, 0], sizes = [8, 14], strides = [1, 1]} : vector<14x14xf32> to vector<8x14xf32>
    %536 = vector.extract_strided_slice %534 {offsets = [0, 0], sizes = [8, 8], strides = [1, 1]} : vector<8x14xf32> to vector<8x8xf32>
    %c42 = arith.constant 42 : index
    %537 = memref.load %arg15[%c42] : memref<98xf32, #tpu.memory_space<smem>>
    %538 = vector.broadcast %537 : f32 to vector<8x8xf32>
    %539 = arith.mulf %536, %538 : vector<8x8xf32>
    %540 = arith.addf %533, %539 : vector<8x8xf32>
    %541 = vector.extract_strided_slice %535 {offsets = [0, 0], sizes = [8, 8], strides = [1, 1]} : vector<8x14xf32> to vector<8x8xf32>
    %c91 = arith.constant 91 : index
    %542 = memref.load %arg15[%c91] : memref<98xf32, #tpu.memory_space<smem>>
    %543 = vector.broadcast %542 : f32 to vector<8x8xf32>
    %544 = arith.mulf %541, %543 : vector<8x8xf32>
    %545 = arith.addf %540, %544 : vector<8x8xf32>
    %546 = vector.extract_strided_slice %534 {offsets = [0, 1], sizes = [8, 8], strides = [1, 1]} : vector<8x14xf32> to vector<8x8xf32>
    %c43 = arith.constant 43 : index
    %547 = memref.load %arg15[%c43] : memref<98xf32, #tpu.memory_space<smem>>
    %548 = vector.broadcast %547 : f32 to vector<8x8xf32>
    %549 = arith.mulf %546, %548 : vector<8x8xf32>
    %550 = arith.addf %545, %549 : vector<8x8xf32>
    %551 = vector.extract_strided_slice %535 {offsets = [0, 1], sizes = [8, 8], strides = [1, 1]} : vector<8x14xf32> to vector<8x8xf32>
    %c92 = arith.constant 92 : index
    %552 = memref.load %arg15[%c92] : memref<98xf32, #tpu.memory_space<smem>>
    %553 = vector.broadcast %552 : f32 to vector<8x8xf32>
    %554 = arith.mulf %551, %553 : vector<8x8xf32>
    %555 = arith.addf %550, %554 : vector<8x8xf32>
    %556 = vector.extract_strided_slice %534 {offsets = [0, 2], sizes = [8, 8], strides = [1, 1]} : vector<8x14xf32> to vector<8x8xf32>
    %c44 = arith.constant 44 : index
    %557 = memref.load %arg15[%c44] : memref<98xf32, #tpu.memory_space<smem>>
    %558 = vector.broadcast %557 : f32 to vector<8x8xf32>
    %559 = arith.mulf %556, %558 : vector<8x8xf32>
    %560 = arith.addf %555, %559 : vector<8x8xf32>
    %561 = vector.extract_strided_slice %535 {offsets = [0, 2], sizes = [8, 8], strides = [1, 1]} : vector<8x14xf32> to vector<8x8xf32>
    %c93 = arith.constant 93 : index
    %562 = memref.load %arg15[%c93] : memref<98xf32, #tpu.memory_space<smem>>
    %563 = vector.broadcast %562 : f32 to vector<8x8xf32>
    %564 = arith.mulf %561, %563 : vector<8x8xf32>
    %565 = arith.addf %560, %564 : vector<8x8xf32>
    %566 = vector.extract_strided_slice %534 {offsets = [0, 3], sizes = [8, 8], strides = [1, 1]} : vector<8x14xf32> to vector<8x8xf32>
    %c45 = arith.constant 45 : index
    %567 = memref.load %arg15[%c45] : memref<98xf32, #tpu.memory_space<smem>>
    %568 = vector.broadcast %567 : f32 to vector<8x8xf32>
    %569 = arith.mulf %566, %568 : vector<8x8xf32>
    %570 = arith.addf %565, %569 : vector<8x8xf32>
    %571 = vector.extract_strided_slice %535 {offsets = [0, 3], sizes = [8, 8], strides = [1, 1]} : vector<8x14xf32> to vector<8x8xf32>
    %c94 = arith.constant 94 : index
    %572 = memref.load %arg15[%c94] : memref<98xf32, #tpu.memory_space<smem>>
    %573 = vector.broadcast %572 : f32 to vector<8x8xf32>
    %574 = arith.mulf %571, %573 : vector<8x8xf32>
    %575 = arith.addf %570, %574 : vector<8x8xf32>
    %576 = vector.extract_strided_slice %534 {offsets = [0, 4], sizes = [8, 8], strides = [1, 1]} : vector<8x14xf32> to vector<8x8xf32>
    %c46 = arith.constant 46 : index
    %577 = memref.load %arg15[%c46] : memref<98xf32, #tpu.memory_space<smem>>
    %578 = vector.broadcast %577 : f32 to vector<8x8xf32>
    %579 = arith.mulf %576, %578 : vector<8x8xf32>
    %580 = arith.addf %575, %579 : vector<8x8xf32>
    %581 = vector.extract_strided_slice %535 {offsets = [0, 4], sizes = [8, 8], strides = [1, 1]} : vector<8x14xf32> to vector<8x8xf32>
    %c95 = arith.constant 95 : index
    %582 = memref.load %arg15[%c95] : memref<98xf32, #tpu.memory_space<smem>>
    %583 = vector.broadcast %582 : f32 to vector<8x8xf32>
    %584 = arith.mulf %581, %583 : vector<8x8xf32>
    %585 = arith.addf %580, %584 : vector<8x8xf32>
    %586 = vector.extract_strided_slice %534 {offsets = [0, 5], sizes = [8, 8], strides = [1, 1]} : vector<8x14xf32> to vector<8x8xf32>
    %c47 = arith.constant 47 : index
    %587 = memref.load %arg15[%c47] : memref<98xf32, #tpu.memory_space<smem>>
    %588 = vector.broadcast %587 : f32 to vector<8x8xf32>
    %589 = arith.mulf %586, %588 : vector<8x8xf32>
    %590 = arith.addf %585, %589 : vector<8x8xf32>
    %591 = vector.extract_strided_slice %535 {offsets = [0, 5], sizes = [8, 8], strides = [1, 1]} : vector<8x14xf32> to vector<8x8xf32>
    %c96 = arith.constant 96 : index
    %592 = memref.load %arg15[%c96] : memref<98xf32, #tpu.memory_space<smem>>
    %593 = vector.broadcast %592 : f32 to vector<8x8xf32>
    %594 = arith.mulf %591, %593 : vector<8x8xf32>
    %595 = arith.addf %590, %594 : vector<8x8xf32>
    %596 = vector.extract_strided_slice %534 {offsets = [0, 6], sizes = [8, 8], strides = [1, 1]} : vector<8x14xf32> to vector<8x8xf32>
    %c48 = arith.constant 48 : index
    %597 = memref.load %arg15[%c48] : memref<98xf32, #tpu.memory_space<smem>>
    %598 = vector.broadcast %597 : f32 to vector<8x8xf32>
    %599 = arith.mulf %596, %598 : vector<8x8xf32>
    %600 = arith.addf %595, %599 : vector<8x8xf32>
    %601 = vector.extract_strided_slice %535 {offsets = [0, 6], sizes = [8, 8], strides = [1, 1]} : vector<8x14xf32> to vector<8x8xf32>
    %c97 = arith.constant 97 : index
    %602 = memref.load %arg15[%c97] : memref<98xf32, #tpu.memory_space<smem>>
    %603 = vector.broadcast %602 : f32 to vector<8x8xf32>
    %604 = arith.mulf %601, %603 : vector<8x8xf32>
    %605 = arith.addf %600, %604 : vector<8x8xf32>
    %c0_93 = arith.constant 0 : index
    %606 = memref.load %arg16[%c0_93] : memref<1xf32, #tpu.memory_space<smem>>
    %607 = vector.broadcast %606 : f32 to vector<8x8xf32>
    %608 = arith.addf %605, %607 : vector<8x8xf32>
    %cst_94 = arith.constant 0.000000e+00 : f32
    %609 = vector.broadcast %cst_94 : f32 to vector<8x8xf32>
    %610 = arith.subf %609, %608 : vector<8x8xf32>
    %611 = math.exp %610 : vector<8x8xf32>
    %cst_95 = arith.constant 1.000000e+00 : f32
    %612 = vector.broadcast %cst_95 : f32 to vector<8x8xf32>
    %613 = arith.addf %612, %611 : vector<8x8xf32>
    %614 = tpu.reciprocal %613 {approx = true} : vector<8x8xf32> -> vector<8x8xf32>
    %615 = vector.shape_cast %614 : vector<8x8xf32> to vector<8x8x1xf32>
    %616 = vector.broadcast %615 : vector<8x8x1xf32> to vector<8x8x128xf32>
    %617 = arith.mulf %85, %616 : vector<8x8x128xf32>
    %c0_96 = arith.constant 0 : index
    %c0_97 = arith.constant 0 : index
    %c0_98 = arith.constant 0 : index
    %c0_99 = arith.constant 0 : index
    %618 = vector.load %arg1[%c0_96, %c0_97, %c0_98, %c0_99] : memref<1x8x8x128xf32, #tpu.memory_space<vmem>>, vector<1x8x8x128xf32>
    %619 = vector.shape_cast %618 : vector<1x8x8x128xf32> to vector<8x8x128xf32>
    %620 = arith.addf %617, %619 : vector<8x8x128xf32>
    %cst_100 = arith.constant 0.000000e+00 : f32
    %621 = vector.broadcast %cst_100 : f32 to vector<8x8x128xf32>
    %622 = arith.maximumf %620, %621 : vector<8x8x128xf32>
    %623 = vector.shape_cast %622 : vector<8x8x128xf32> to vector<1x8x8x128xf32>
    %c0_101 = arith.constant 0 : index
    %c0_102 = arith.constant 0 : index
    %c0_103 = arith.constant 0 : index
    %c0_104 = arith.constant 0 : index
    %624 = vector.load %arg17[%c0_101, %c0_102, %c0_103, %c0_104] : memref<1x8x8x128xf32, #tpu.memory_space<vmem>>, vector<1x8x8x128xf32>
    tpu.vector_store %arg17[%c0_101, %c0_102, %c0_103, %c0_104], %623 {strides = array<i32>} : memref<1x8x8x128xf32, #tpu.memory_space<vmem>>, vector<1x8x8x128xf32>,
    return
  }
  func.func @transform_0(%arg0: i32) -> (i32, i32, i32, i32) {
    %c0_i32 = arith.constant 0 : i32
    %c0_i32_0 = arith.constant 0 : i32
    %c0_i32_1 = arith.constant 0 : i32
    %c0_i32_2 = arith.constant 0 : i32
    return %arg0, %c0_i32, %c0_i32_0, %c0_i32_1 : i32, i32, i32, i32
  }
  func.func @transform_1(%arg0: i32) -> (i32, i32) {
    %c0_i32 = arith.constant 0 : i32
    %c0_i32_0 = arith.constant 0 : i32
    %c0_i32_1 = arith.constant 0 : i32
    return %c0_i32, %c0_i32_0 : i32, i32
  }
  func.func @transform_2(%arg0: i32) -> (i32, i32) {
    %c0_i32 = arith.constant 0 : i32
    %c0_i32_0 = arith.constant 0 : i32
    %c0_i32_1 = arith.constant 0 : i32
    return %c0_i32, %c0_i32_0 : i32, i32
  }
  func.func @transform_3(%arg0: i32) -> (i32, i32) {
    %c0_i32 = arith.constant 0 : i32
    %c0_i32_0 = arith.constant 0 : i32
    %c0_i32_1 = arith.constant 0 : i32
    return %c0_i32, %c0_i32_0 : i32, i32
  }
  func.func @transform_4(%arg0: i32) -> (i32, i32) {
    %c0_i32 = arith.constant 0 : i32
    %c0_i32_0 = arith.constant 0 : i32
    %c0_i32_1 = arith.constant 0 : i32
    return %c0_i32, %c0_i32_0 : i32, i32
  }
  func.func @transform_5(%arg0: i32) -> (i32, i32) {
    %c0_i32 = arith.constant 0 : i32
    %c0_i32_0 = arith.constant 0 : i32
    %c0_i32_1 = arith.constant 0 : i32
    return %c0_i32, %c0_i32_0 : i32, i32
  }
  func.func @transform_6(%arg0: i32) -> (i32, i32) {
    %c0_i32 = arith.constant 0 : i32
    %c0_i32_0 = arith.constant 0 : i32
    %c0_i32_1 = arith.constant 0 : i32
    return %c0_i32, %c0_i32_0 : i32, i32
  }
  func.func @transform_7(%arg0: i32) -> (i32, i32) {
    %c0_i32 = arith.constant 0 : i32
    %c0_i32_0 = arith.constant 0 : i32
    %c0_i32_1 = arith.constant 0 : i32
    return %c0_i32, %c0_i32_0 : i32, i32
  }
  func.func @transform_8(%arg0: i32) -> (i32, i32) {
    %c0_i32 = arith.constant 0 : i32
    %c0_i32_0 = arith.constant 0 : i32
    %c0_i32_1 = arith.constant 0 : i32
    return %c0_i32, %c0_i32_0 : i32, i32
  }
  func.func @transform_9(%arg0: i32) -> (i32, i32) {
    %c0_i32 = arith.constant 0 : i32
    %c0_i32_0 = arith.constant 0 : i32
    %c0_i32_1 = arith.constant 0 : i32
    return %c0_i32, %c0_i32_0 : i32, i32
  }
  func.func @transform_10(%arg0: i32) -> (i32, i32) {
    %c0_i32 = arith.constant 0 : i32
    %c0_i32_0 = arith.constant 0 : i32
    %c0_i32_1 = arith.constant 0 : i32
    return %c0_i32, %c0_i32_0 : i32, i32
  }
  func.func @transform_11(%arg0: i32) -> (i32, i32) {
    %c0_i32 = arith.constant 0 : i32
    %c0_i32_0 = arith.constant 0 : i32
    %c0_i32_1 = arith.constant 0 : i32
    return %c0_i32, %c0_i32_0 : i32, i32
  }
  func.func @transform_12(%arg0: i32) -> (i32, i32) {
    %c0_i32 = arith.constant 0 : i32
    %c0_i32_0 = arith.constant 0 : i32
    %c0_i32_1 = arith.constant 0 : i32
    return %c0_i32, %c0_i32_0 : i32, i32
  }
  func.func @transform_13(%arg0: i32) -> (i32, i32) {
    %c0_i32 = arith.constant 0 : i32
    %c0_i32_0 = arith.constant 0 : i32
    %c0_i32_1 = arith.constant 0 : i32
    return %c0_i32, %c0_i32_0 : i32, i32
  }
  func.func @transform_14(%arg0: i32) -> i32 {
    %c0_i32 = arith.constant 0 : i32
    %c0_i32_0 = arith.constant 0 : i32
    return %c0_i32 : i32
  }
  func.func @transform_15(%arg0: i32) -> i32 {
    %c0_i32 = arith.constant 0 : i32
    %c0_i32_0 = arith.constant 0 : i32
    return %c0_i32 : i32
  }
  func.func @transform_16(%arg0: i32) -> (i32, i32, i32, i32) {
    %c0_i32 = arith.constant 0 : i32
    %c0_i32_0 = arith.constant 0 : i32
    %c0_i32_1 = arith.constant 0 : i32
    %c0_i32_2 = arith.constant 0 : i32
    return %arg0, %c0_i32, %c0_i32_0, %c0_i32_1 : i32, i32, i32, i32
  }
}

</mosaic_0001>

<llo_original>
// kernel: bottleneck_cbam_forward.1
$region0: #{bottleneck_cbam_forward.1}
  #allocation0 [shape = 'u32[]', space=smem, size = 0x4, offset = 0x4, fixed_abs, tag = 'smem constant byte address 0x4 - core index']
  #allocation1 [shape = 'u32[144,128]{1,0:T(1,128)}', space=vmem, size = 0x12000, scoped, tag = 'internal scratch']
  #allocation2 [shape = 'f32[10,10,128]{2,1,0:T(8,128)}', space=vmem, size = 0x14000, scoped, tag = 'scratch operand']
  #allocation3 [shape = 'f32[1]{0:T(128)S(6)}', space=smem, size = 0x200, scoped, tag = 'scoped memory for bottleneck_cbam_forward.1']
  %s0 = inlined_call_operand.vmem [shape: f32[2,8,8,128], index: 0, kind: input, shape index: {}]
  %s1 = inlined_call_operand.vmem [shape: bf16[128,128], index: 1, kind: input, shape index: {}]
  %s2 = inlined_call_operand.vmem [shape: f32[1,128], index: 2, kind: input, shape index: {}]
  %s3 = inlined_call_operand.vmem [shape: f32[1,128], index: 3, kind: input, shape index: {}]
  %s4 = inlined_call_operand.vmem [shape: bf16[1152,128], index: 4, kind: input, shape index: {}]
  %s5 = inlined_call_operand.vmem [shape: f32[1,128], index: 5, kind: input, shape index: {}]
  %s6 = inlined_call_operand.vmem [shape: f32[1,128], index: 6, kind: input, shape index: {}]
  %s7 = inlined_call_operand.vmem [shape: bf16[128,128], index: 7, kind: input, shape index: {}]
  %s8 = inlined_call_operand.vmem [shape: f32[1,128], index: 8, kind: input, shape index: {}]
  %s9 = inlined_call_operand.vmem [shape: f32[1,128], index: 9, kind: input, shape index: {}]
  %s10 = inlined_call_operand.vmem [shape: bf16[128,128], index: 10, kind: input, shape index: {}]
  %s11 = inlined_call_operand.vmem [shape: f32[1,128], index: 11, kind: input, shape index: {}]
  %s12 = inlined_call_operand.vmem [shape: bf16[128,128], index: 12, kind: input, shape index: {}]
  %s13 = inlined_call_operand.vmem [shape: f32[1,128], index: 13, kind: input, shape index: {}]
  %s14 = inlined_call_operand.vmem [shape: f32[98], index: 14, kind: input, shape index: {}]
  %s15 = inlined_call_operand.<no memory space> [shape: f32[1], index: 15, kind: input, shape index: {}]
  %s16 = inlined_call_operand.hbm [shape: f32[2,8,8,128], index: 16, kind: output, shape index: {}]
  %s17 = sld [smem:[#allocation0]]
  $region101: #{bottleneck_cbam_forward.1} parent=0
    _
  %s19 = ssub.s32 1, %s17
  %s20 = scalar_select 0, %s19, %s17
  %21 = sst [smem:[#allocation3]] %s15
  $region1: #{bottleneck_cbam_forward.1} parent=0
    #allocation4 [shape = 'u8[512]{0}', space=smem, size = 0x200, scoped, tag = 'input window, operand 14, single buffered']
    #allocation5 [shape = 's32[2]{0}', space=sflag, size = 0x8, scoped, tag = 'scoped memory for bottleneck_cbam_forward.1']
    #allocation6 [shape = 's32[2]{0}', space=sflag, size = 0x8, scoped, tag = 'scoped memory for bottleneck_cbam_forward.1']
    #allocation7 [shape = 'u8[65536]{0}', space=vmem, size = 0x10000, scoped, tag = 'output window, operand 0']
    %22 = vsyncpa [#allocation6], 0
    %23 = vsyncpa [#allocation5], 0
    %s24 = scalar_lea.sflag [#allocation5], 1
    %25 = vsyncpa %s24, 0
    loop: start=0, step=1, limit=4
    $region2: #{bottleneck_cbam_forward.1} parent=1 // loop_pre_header
      _
    $region3: #{bottleneck_cbam_forward.1} parent=1 // loop_header
      %s27 = sphi 0, %s31
      %p28 = scmp.ge.s32.totalorder %s27, 4
      %s37 = sphi 0, %s39
      %s40 = sphi 0, %s37
      %s41 = sphi 0, %s40
      %s57 = sphi 0, %s41
      %s61 = sphi 0, %s61
      %s63 = sphi 0, %s61
      %s64 = sphi 0, %s63
      %s78 = sphi 0, %s64
      %s82 = sphi 0, %s82
      %s84 = sphi 0, %s82
      %s85 = sphi 0, %s84
      %s99 = sphi 0, %s85
      %s103 = sphi 0, %s103
      %s105 = sphi 0, %s103
      %s106 = sphi 0, %s105
      %s120 = sphi 0, %s106
      %s124 = sphi 0, %s124
      %s126 = sphi 0, %s124
      %s127 = sphi 0, %s126
      %s141 = sphi 0, %s127
      %s145 = sphi 0, %s145
      %s147 = sphi 0, %s145
      %s148 = sphi 0, %s147
      %s162 = sphi 0, %s148
      %s166 = sphi 0, %s166
      %s168 = sphi 0, %s166
      %s169 = sphi 0, %s168
      %s183 = sphi 0, %s169
      %s187 = sphi 0, %s187
      %s189 = sphi 0, %s187
      %s190 = sphi 0, %s189
      %s204 = sphi 0, %s190
      %s208 = sphi 0, %s208
      %s210 = sphi 0, %s208
      %s211 = sphi 0, %s210
      %s225 = sphi 0, %s211
      %s229 = sphi 0, %s229
      %s231 = sphi 0, %s229
      %s232 = sphi 0, %s231
      %s246 = sphi 0, %s232
      %s250 = sphi 0, %s250
      %s252 = sphi 0, %s250
      %s253 = sphi 0, %s252
      %s267 = sphi 0, %s253
      %s271 = sphi 0, %s271
      %s273 = sphi 0, %s271
      %s274 = sphi 0, %s273
      %s288 = sphi 0, %s274
      %s292 = sphi 0, %s292
      %s294 = sphi 0, %s292
      %s295 = sphi 0, %s294
      %s309 = sphi 0, %s295
      %s313 = sphi 0, %s313
      %s315 = sphi 0, %s313
      %s316 = sphi 0, %s315
      %s330 = sphi 0, %s316
      %s334 = sphi 0, %s334
      %s336 = sphi 0, %s334
      %s337 = sphi 0, %s336
      %s351 = sphi 0, %s337
      %s355 = sphi 0, %s355
      %s357 = sphi 0, %s355
      %s358 = sphi 0, %s357
      %s372 = sphi 0, %s358
      %s378 = sphi 0, %s380
      %s381 = sphi 0, %s378
      %s382 = sphi 0, %s381
      %s398 = sphi 0, %s382
    $region4: #{bottleneck_cbam_forward.1} parent=1 // loop_header_branch
      %30 = sbr.rel (%p28) target = $region8
    $region5: #{bottleneck_cbam_forward.1} parent=1 // loop_body
      %s32 = ssub.s32 %s27, 1
      %s33 = ssub.s32 %s27, 2
      %s34 = sadd.s32 %s27, 1
      %s35 = ssub.s32 %s27, %s34
      %p36 = scmp.eq.s32.totalorder %s35, 0
      %s38 = sadd.s32 %s37, 1
      %s39 = scalar_select %p36, %s37, %s38
      %p42 = pneg %p36
      %p43 = scmp.eq.s32.totalorder %s27, 1
      %p44 = por %p42, %p43
      %p45 = scmp.ne.s32.totalorder %s37, %s40
      %p46 = scmp.eq.s32.totalorder %s27, 0
      %p47 = por %p45, %p46
      %p48 = scmp.ne.s32.totalorder %s37, %s40
      %p49 = scmp.eq.s32.totalorder %s32, 1
      %p50 = por %p48, %p49
      %p51 = scmp.ne.s32.totalorder %s40, %s41
      %p52 = scmp.eq.s32.totalorder %s32, 0
      %p53 = por %p51, %p52
      %p54 = scmp.ne.s32.totalorder %s40, %s41
      %p55 = scmp.eq.s32.totalorder %s33, 1
      %p56 = por %p54, %p55
      %p58 = scmp.ne.s32.totalorder %s41, %s57
      %p59 = scmp.eq.s32.totalorder %s33, 0
      %p60 = por %p58, %p59
      %s62 = sadd.s32 %s61, 1
      %p65 = scmp.eq.s32.totalorder %s27, 1
      %p66 = scmp.ne.s32.totalorder %s61, %s63
      %p67 = scmp.eq.s32.totalorder %s27, 0
      %p68 = por %p66, %p67
      %p69 = scmp.ne.s32.totalorder %s61, %s63
      %p70 = scmp.eq.s32.totalorder %s32, 1
      %p71 = por %p69, %p70
      %p72 = scmp.ne.s32.totalorder %s63, %s64
      %p73 = scmp.eq.s32.totalorder %s32, 0
      %p74 = por %p72, %p73
      %p75 = scmp.ne.s32.totalorder %s63, %s64
      %p76 = scmp.eq.s32.totalorder %s33, 1
      %p77 = por %p75, %p76
      %p79 = scmp.ne.s32.totalorder %s64, %s78
      %p80 = scmp.eq.s32.totalorder %s33, 0
      %p81 = por %p79, %p80
      %s83 = sadd.s32 %s82, 1
      %p86 = scmp.eq.s32.totalorder %s27, 1
      %p87 = scmp.ne.s32.totalorder %s82, %s84
      %p88 = scmp.eq.s32.totalorder %s27, 0
      %p89 = por %p87, %p88
      %p90 = scmp.ne.s32.totalorder %s82, %s84
      %p91 = scmp.eq.s32.totalorder %s32, 1
      %p92 = por %p90, %p91
      %p93 = scmp.ne.s32.totalorder %s84, %s85
      %p94 = scmp.eq.s32.totalorder %s32, 0
      %p95 = por %p93, %p94
      %p96 = scmp.ne.s32.totalorder %s84, %s85
      %p97 = scmp.eq.s32.totalorder %s33, 1
      %p98 = por %p96, %p97
      %p100 = scmp.ne.s32.totalorder %s85, %s99
      %p101 = scmp.eq.s32.totalorder %s33, 0
      %p102 = por %p100, %p101
      %s104 = sadd.s32 %s103, 1
      %p107 = scmp.eq.s32.totalorder %s27, 1
      %p108 = scmp.ne.s32.totalorder %s103, %s105
      %p109 = scmp.eq.s32.totalorder %s27, 0
      %p110 = por %p108, %p109
      %p111 = scmp.ne.s32.totalorder %s103, %s105
      %p112 = scmp.eq.s32.totalorder %s32, 1
      %p113 = por %p111, %p112
      %p114 = scmp.ne.s32.totalorder %s105, %s106
      %p115 = scmp.eq.s32.totalorder %s32, 0
      %p116 = por %p114, %p115
      %p117 = scmp.ne.s32.totalorder %s105, %s106
      %p118 = scmp.eq.s32.totalorder %s33, 1
      %p119 = por %p117, %p118
      %p121 = scmp.ne.s32.totalorder %s106, %s120
      %p122 = scmp.eq.s32.totalorder %s33, 0
      %p123 = por %p121, %p122
      %s125 = sadd.s32 %s124, 1
      %p128 = scmp.eq.s32.totalorder %s27, 1
      %p129 = scmp.ne.s32.totalorder %s124, %s126
      %p130 = scmp.eq.s32.totalorder %s27, 0
      %p131 = por %p129, %p130
      %p132 = scmp.ne.s32.totalorder %s124, %s126
      %p133 = scmp.eq.s32.totalorder %s32, 1
      %p134 = por %p132, %p133
      %p135 = scmp.ne.s32.totalorder %s126, %s127
      %p136 = scmp.eq.s32.totalorder %s32, 0
      %p137 = por %p135, %p136
      %p138 = scmp.ne.s32.totalorder %s126, %s127
      %p139 = scmp.eq.s32.totalorder %s33, 1
      %p140 = por %p138, %p139
      %p142 = scmp.ne.s32.totalorder %s127, %s141
      %p143 = scmp.eq.s32.totalorder %s33, 0
      %p144 = por %p142, %p143
      %s146 = sadd.s32 %s145, 1
      %p149 = scmp.eq.s32.totalorder %s27, 1
      %p150 = scmp.ne.s32.totalorder %s145, %s147
      %p151 = scmp.eq.s32.totalorder %s27, 0
      %p152 = por %p150, %p151
      %p153 = scmp.ne.s32.totalorder %s145, %s147
      %p154 = scmp.eq.s32.totalorder %s32, 1
      %p155 = por %p153, %p154
      %p156 = scmp.ne.s32.totalorder %s147, %s148
      %p157 = scmp.eq.s32.totalorder %s32, 0
      %p158 = por %p156, %p157
      %p159 = scmp.ne.s32.totalorder %s147, %s148
      %p160 = scmp.eq.s32.totalorder %s33, 1
      %p161 = por %p159, %p160
      %p163 = scmp.ne.s32.totalorder %s148, %s162
      %p164 = scmp.eq.s32.totalorder %s33, 0
      %p165 = por %p163, %p164
      %s167 = sadd.s32 %s166, 1
      %p170 = scmp.eq.s32.totalorder %s27, 1
      %p171 = scmp.ne.s32.totalorder %s166, %s168
      %p172 = scmp.eq.s32.totalorder %s27, 0
      %p173 = por %p171, %p172
      %p174 = scmp.ne.s32.totalorder %s166, %s168
      %p175 = scmp.eq.s32.totalorder %s32, 1
      %p176 = por %p174, %p175
      %p177 = scmp.ne.s32.totalorder %s168, %s169
      %p178 = scmp.eq.s32.totalorder %s32, 0
      %p179 = por %p177, %p178
      %p180 = scmp.ne.s32.totalorder %s168, %s169
      %p181 = scmp.eq.s32.totalorder %s33, 1
      %p182 = por %p180, %p181
      %p184 = scmp.ne.s32.totalorder %s169, %s183
      %p185 = scmp.eq.s32.totalorder %s33, 0
      %p186 = por %p184, %p185
      %s188 = sadd.s32 %s187, 1
      %p191 = scmp.eq.s32.totalorder %s27, 1
      %p192 = scmp.ne.s32.totalorder %s187, %s189
      %p193 = scmp.eq.s32.totalorder %s27, 0
      %p194 = por %p192, %p193
      %p195 = scmp.ne.s32.totalorder %s187, %s189
      %p196 = scmp.eq.s32.totalorder %s32, 1
      %p197 = por %p195, %p196
      %p198 = scmp.ne.s32.totalorder %s189, %s190
      %p199 = scmp.eq.s32.totalorder %s32, 0
      %p200 = por %p198, %p199
      %p201 = scmp.ne.s32.totalorder %s189, %s190
      %p202 = scmp.eq.s32.totalorder %s33, 1
      %p203 = por %p201, %p202
      %p205 = scmp.ne.s32.totalorder %s190, %s204
      %p206 = scmp.eq.s32.totalorder %s33, 0
      %p207 = por %p205, %p206
      %s209 = sadd.s32 %s208, 1
      %p212 = scmp.eq.s32.totalorder %s27, 1
      %p213 = scmp.ne.s32.totalorder %s208, %s210
      %p214 = scmp.eq.s32.totalorder %s27, 0
      %p215 = por %p213, %p214
      %p216 = scmp.ne.s32.totalorder %s208, %s210
      %p217 = scmp.eq.s32.totalorder %s32, 1
      %p218 = por %p216, %p217
      %p219 = scmp.ne.s32.totalorder %s210, %s211
      %p220 = scmp.eq.s32.totalorder %s32, 0
      %p221 = por %p219, %p220
      %p222 = scmp.ne.s32.totalorder %s210, %s211
      %p223 = scmp.eq.s32.totalorder %s33, 1
      %p224 = por %p222, %p223
      %p226 = scmp.ne.s32.totalorder %s211, %s225
      %p227 = scmp.eq.s32.totalorder %s33, 0
      %p228 = por %p226, %p227
      %s230 = sadd.s32 %s229, 1
      %p233 = scmp.eq.s32.totalorder %s27, 1
      %p234 = scmp.ne.s32.totalorder %s229, %s231
      %p235 = scmp.eq.s32.totalorder %s27, 0
      %p236 = por %p234, %p235
      %p237 = scmp.ne.s32.totalorder %s229, %s231
      %p238 = scmp.eq.s32.totalorder %s32, 1
      %p239 = por %p237, %p238
      %p240 = scmp.ne.s32.totalorder %s231, %s232
      %p241 = scmp.eq.s32.totalorder %s32, 0
      %p242 = por %p240, %p241
      %p243 = scmp.ne.s32.totalorder %s231, %s232
      %p244 = scmp.eq.s32.totalorder %s33, 1
      %p245 = por %p243, %p244
      %p247 = scmp.ne.s32.totalorder %s232, %s246
      %p248 = scmp.eq.s32.totalorder %s33, 0
      %p249 = por %p247, %p248
      %s251 = sadd.s32 %s250, 1
      %p254 = scmp.eq.s32.totalorder %s27, 1
      %p255 = scmp.ne.s32.totalorder %s250, %s252
      %p256 = scmp.eq.s32.totalorder %s27, 0
      %p257 = por %p255, %p256
      %p258 = scmp.ne.s32.totalorder %s250, %s252
      %p259 = scmp.eq.s32.totalorder %s32, 1
      %p260 = por %p258, %p259
      %p261 = scmp.ne.s32.totalorder %s252, %s253
      %p262 = scmp.eq.s32.totalorder %s32, 0
      %p263 = por %p261, %p262
      %p264 = scmp.ne.s32.totalorder %s252, %s253
      %p265 = scmp.eq.s32.totalorder %s33, 1
      %p266 = por %p264, %p265
      %p268 = scmp.ne.s32.totalorder %s253, %s267
      %p269 = scmp.eq.s32.totalorder %s33, 0
      %p270 = por %p268, %p269
      %s272 = sadd.s32 %s271, 1
      %p275 = scmp.eq.s32.totalorder %s27, 1
      %p276 = scmp.ne.s32.totalorder %s271, %s273
      %p277 = scmp.eq.s32.totalorder %s27, 0
      %p278 = por %p276, %p277
      %p279 = scmp.ne.s32.totalorder %s271, %s273
      %p280 = scmp.eq.s32.totalorder %s32, 1
      %p281 = por %p279, %p280
      %p282 = scmp.ne.s32.totalorder %s273, %s274
      %p283 = scmp.eq.s32.totalorder %s32, 0
      %p284 = por %p282, %p283
      %p285 = scmp.ne.s32.totalorder %s273, %s274
      %p286 = scmp.eq.s32.totalorder %s33, 1
      %p287 = por %p285, %p286
      %p289 = scmp.ne.s32.totalorder %s274, %s288
      %p290 = scmp.eq.s32.totalorder %s33, 0
      %p291 = por %p289, %p290
      %s293 = sadd.s32 %s292, 1
      %p296 = scmp.eq.s32.totalorder %s27, 1
      %p297 = scmp.ne.s32.totalorder %s292, %s294
      %p298 = scmp.eq.s32.totalorder %s27, 0
      %p299 = por %p297, %p298
      %p300 = scmp.ne.s32.totalorder %s292, %s294
      %p301 = scmp.eq.s32.totalorder %s32, 1
      %p302 = por %p300, %p301
      %p303 = scmp.ne.s32.totalorder %s294, %s295
      %p304 = scmp.eq.s32.totalorder %s32, 0
      %p305 = por %p303, %p304
      %p306 = scmp.ne.s32.totalorder %s294, %s295
      %p307 = scmp.eq.s32.totalorder %s33, 1
      %p308 = por %p306, %p307
      %p310 = scmp.ne.s32.totalorder %s295, %s309
      %p311 = scmp.eq.s32.totalorder %s33, 0
      %p312 = por %p310, %p311
      %s314 = sadd.s32 %s313, 1
      %p317 = scmp.eq.s32.totalorder %s27, 1
      %p318 = scmp.ne.s32.totalorder %s313, %s315
      %p319 = scmp.eq.s32.totalorder %s27, 0
      %p320 = por %p318, %p319
      %p321 = scmp.ne.s32.totalorder %s313, %s315
      %p322 = scmp.eq.s32.totalorder %s32, 1
      %p323 = por %p321, %p322
      %p324 = scmp.ne.s32.totalorder %s315, %s316
      %p325 = scmp.eq.s32.totalorder %s32, 0
      %p326 = por %p324, %p325
      %p327 = scmp.ne.s32.totalorder %s315, %s316
      %p328 = scmp.eq.s32.totalorder %s33, 1
      %p329 = por %p327, %p328
      %p331 = scmp.ne.s32.totalorder %s316, %s330
      %p332 = scmp.eq.s32.totalorder %s33, 0
      %p333 = por %p331, %p332
      %s335 = sadd.s32 %s334, 1
      %p338 = scmp.eq.s32.totalorder %s27, 1
      %p339 = scmp.ne.s32.totalorder %s334, %s336
      %p340 = scmp.eq.s32.totalorder %s27, 0
      %p341 = por %p339, %p340
      %p342 = scmp.ne.s32.totalorder %s334, %s336
      %p343 = scmp.eq.s32.totalorder %s32, 1
      %p344 = por %p342, %p343
      %p345 = scmp.ne.s32.totalorder %s336, %s337
      %p346 = scmp.eq.s32.totalorder %s32, 0
      %p347 = por %p345, %p346
      %p348 = scmp.ne.s32.totalorder %s336, %s337
      %p349 = scmp.eq.s32.totalorder %s33, 1
      %p350 = por %p348, %p349
      %p352 = scmp.ne.s32.totalorder %s337, %s351
      %p353 = scmp.eq.s32.totalorder %s33, 0
      %p354 = por %p352, %p353
      %s356 = sadd.s32 %s355, 1
      %p359 = scmp.eq.s32.totalorder %s27, 1
      %p360 = scmp.ne.s32.totalorder %s355, %s357
      %p361 = scmp.eq.s32.totalorder %s27, 0
      %p362 = por %p360, %p361
      %p363 = scmp.ne.s32.totalorder %s355, %s357
      %p364 = scmp.eq.s32.totalorder %s32, 1
      %p365 = por %p363, %p364
      %p366 = scmp.ne.s32.totalorder %s357, %s358
      %p367 = scmp.eq.s32.totalorder %s32, 0
      %p368 = por %p366, %p367
      %p369 = scmp.ne.s32.totalorder %s357, %s358
      %p370 = scmp.eq.s32.totalorder %s33, 1
      %p371 = por %p369, %p370
      %p373 = scmp.ne.s32.totalorder %s358, %s372
      %p374 = scmp.eq.s32.totalorder %s33, 0
      %p375 = por %p373, %p374
      %s376 = ssub.s32 %s27, %s34
      %p377 = scmp.eq.s32.totalorder %s376, 0
      %s379 = sadd.s32 %s378, 1
      %s380 = scalar_select %p377, %s378, %s379
      %p383 = pneg %p377
      %p384 = scmp.eq.s32.totalorder %s27, 1
      %p385 = por %p383, %p384
      %p386 = scmp.ne.s32.totalorder %s378, %s381
      %p387 = scmp.eq.s32.totalorder %s27, 0
      %p388 = por %p386, %p387
      %p389 = scmp.ne.s32.totalorder %s378, %s381
      %p390 = scmp.eq.s32.totalorder %s32, 1
      %p391 = por %p389, %p390
      %p392 = scmp.ne.s32.totalorder %s381, %s382
      %p393 = scmp.eq.s32.totalorder %s32, 0
      %p394 = por %p392, %p393
      %p395 = scmp.ne.s32.totalorder %s381, %s382
      %p396 = scmp.eq.s32.totalorder %s33, 1
      %p397 = por %p395, %p396
      %p399 = scmp.ne.s32.totalorder %s382, %s398
      %p400 = scmp.eq.s32.totalorder %s33, 0
      %p401 = por %p399, %p400
      %p402 = scmp.le.s32.totalorder 1, %s27
      %p403 = scmp.lt.s32.totalorder %s27, 3
      %p404 = pnand %p402, %p403
      %p405 = pneg %p404
      // Predicated region
      $region9: #{bottleneck_cbam_forward.1} parent=5 // pred_check
        _
      $region10: #{bottleneck_cbam_forward.1} parent=5 // pred_check_branch
        %407 = sbr.rel (%p404) target = $region12
      $region11: #{bottleneck_cbam_forward.1} parent=5 // pred_region
        %s408 = ssub.s32 %s27, 1
        // Predicated region
        $region13: #{bottleneck_cbam_forward.1} parent=11 // pred_check
          %p409 = pneg %p74
        $region14: #{bottleneck_cbam_forward.1} parent=11 // pred_check_branch
          %411 = sbr.rel (%p409) target = $region16
        $region15: #{bottleneck_cbam_forward.1} parent=11 // pred_region
          _
        $region16: #{bottleneck_cbam_forward.1} parent=11 // pred_fallthru
          _
        // Predicated region
        $region17: #{bottleneck_cbam_forward.1} parent=11 // pred_check
          %p412 = pneg %p95
        $region18: #{bottleneck_cbam_forward.1} parent=11 // pred_check_branch
          %414 = sbr.rel (%p412) target = $region20
        $region19: #{bottleneck_cbam_forward.1} parent=11 // pred_region
          _
        $region20: #{bottleneck_cbam_forward.1} parent=11 // pred_fallthru
          _
        // Predicated region
        $region21: #{bottleneck_cbam_forward.1} parent=11 // pred_check
          %p415 = pneg %p116
        $region22: #{bottleneck_cbam_forward.1} parent=11 // pred_check_branch
          %417 = sbr.rel (%p415) target = $region24
        $region23: #{bottleneck_cbam_forward.1} parent=11 // pred_region
          _
        $region24: #{bottleneck_cbam_forward.1} parent=11 // pred_fallthru
          _
        // Predicated region
        $region25: #{bottleneck_cbam_forward.1} parent=11 // pred_check
          %p418 = pneg %p137
        $region26: #{bottleneck_cbam_forward.1} parent=11 // pred_check_branch
          %420 = sbr.rel (%p418) target = $region28
        $region27: #{bottleneck_cbam_forward.1} parent=11 // pred_region
          _
        $region28: #{bottleneck_cbam_forward.1} parent=11 // pred_fallthru
          _
        // Predicated region
        $region29: #{bottleneck_cbam_forward.1} parent=11 // pred_check
          %p421 = pneg %p158
        $region30: #{bottleneck_cbam_forward.1} parent=11 // pred_check_branch
          %423 = sbr.rel (%p421) target = $region32
        $region31: #{bottleneck_cbam_forward.1} parent=11 // pred_region
          _
        $region32: #{bottleneck_cbam_forward.1} parent=11 // pred_fallthru
          _
        // Predicated region
        $region33: #{bottleneck_cbam_forward.1} parent=11 // pred_check
          %p424 = pneg %p179
        $region34: #{bottleneck_cbam_forward.1} parent=11 // pred_check_branch
          %426 = sbr.rel (%p424) target = $region36
        $region35: #{bottleneck_cbam_forward.1} parent=11 // pred_region
          _
        $region36: #{bottleneck_cbam_forward.1} parent=11 // pred_fallthru
          _
        // Predicated region
        $region37: #{bottleneck_cbam_forward.1} parent=11 // pred_check
          %p427 = pneg %p200
        $region38: #{bottleneck_cbam_forward.1} parent=11 // pred_check_branch
          %429 = sbr.rel (%p427) target = $region40
        $region39: #{bottleneck_cbam_forward.1} parent=11 // pred_region
          _
        $region40: #{bottleneck_cbam_forward.1} parent=11 // pred_fallthru
          _
        // Predicated region
        $region41: #{bottleneck_cbam_forward.1} parent=11 // pred_check
          %p430 = pneg %p221
        $region42: #{bottleneck_cbam_forward.1} parent=11 // pred_check_branch
          %432 = sbr.rel (%p430) target = $region44
        $region43: #{bottleneck_cbam_forward.1} parent=11 // pred_region
          _
        $region44: #{bottleneck_cbam_forward.1} parent=11 // pred_fallthru
          _
        // Predicated region
        $region45: #{bottleneck_cbam_forward.1} parent=11 // pred_check
          %p433 = pneg %p242
        $region46: #{bottleneck_cbam_forward.1} parent=11 // pred_check_branch
          %435 = sbr.rel (%p433) target = $region48
        $region47: #{bottleneck_cbam_forward.1} parent=11 // pred_region
          _
        $region48: #{bottleneck_cbam_forward.1} parent=11 // pred_fallthru
          _
        // Predicated region
        $region49: #{bottleneck_cbam_forward.1} parent=11 // pred_check
          %p436 = pneg %p263
        $region50: #{bottleneck_cbam_forward.1} parent=11 // pred_check_branch
          %438 = sbr.rel (%p436) target = $region52
        $region51: #{bottleneck_cbam_forward.1} parent=11 // pred_region
          _
        $region52: #{bottleneck_cbam_forward.1} parent=11 // pred_fallthru
          _
        // Predicated region
        $region53: #{bottleneck_cbam_forward.1} parent=11 // pred_check
          %p439 = pneg %p284
        $region54: #{bottleneck_cbam_forward.1} parent=11 // pred_check_branch
          %441 = sbr.rel (%p439) target = $region56
        $region55: #{bottleneck_cbam_forward.1} parent=11 // pred_region
          _
        $region56: #{bottleneck_cbam_forward.1} parent=11 // pred_fallthru
          _
        // Predicated region
        $region57: #{bottleneck_cbam_forward.1} parent=11 // pred_check
          %p442 = pneg %p305
        $region58: #{bottleneck_cbam_forward.1} parent=11 // pred_check_branch
          %444 = sbr.rel (%p442) target = $region60
        $region59: #{bottleneck_cbam_forward.1} parent=11 // pred_region
          _
        $region60: #{bottleneck_cbam_forward.1} parent=11 // pred_fallthru
          _
        // Predicated region
        $region61: #{bottleneck_cbam_forward.1} parent=11 // pred_check
          %p445 = pneg %p326
        $region62: #{bottleneck_cbam_forward.1} parent=11 // pred_check_branch
          %447 = sbr.rel (%p445) target = $region64
        $region63: #{bottleneck_cbam_forward.1} parent=11 // pred_region
          _
        $region64: #{bottleneck_cbam_forward.1} parent=11 // pred_fallthru
          _
        // Predicated region
        $region65: #{bottleneck_cbam_forward.1} parent=11 // pred_check
          %p448 = pneg %p347
        $region66: #{bottleneck_cbam_forward.1} parent=11 // pred_check_branch
          %450 = sbr.rel (%p448) target = $region68
        $region67: #{bottleneck_cbam_forward.1} parent=11 // pred_region
          %s452 = ssub.s32 16, 16
          %453 = vsyncadd [#allocation6], %s452
          %s455 = sshll.u32 %s14, 4
          %s456 = int_to_ptr.vmem [resolvable:$true] %s455
          %458 = dma.vmem_to_smem %s456, 16, [#allocation4], [#allocation6]
        $region68: #{bottleneck_cbam_forward.1} parent=11 // pred_fallthru
          _
        // Predicated region
        $region69: #{bottleneck_cbam_forward.1} parent=11 // pred_check
          %p459 = pneg %p368
        $region70: #{bottleneck_cbam_forward.1} parent=11 // pred_check_branch
          %461 = sbr.rel (%p459) target = $region72
        $region71: #{bottleneck_cbam_forward.1} parent=11 // pred_region
          _
        $region72: #{bottleneck_cbam_forward.1} parent=11 // pred_fallthru
          _
      $region12: #{bottleneck_cbam_forward.1} parent=5 // pred_fallthru
        _
      %p462 = scmp.lt.s32.totalorder %s27, 2
      // Predicated region
      $region73: #{bottleneck_cbam_forward.1} parent=5 // pred_check
        %p463 = pneg %p462
      $region74: #{bottleneck_cbam_forward.1} parent=5 // pred_check_branch
        %465 = sbr.rel (%p463) target = $region76
      $region75: #{bottleneck_cbam_forward.1} parent=5 // pred_region
        // Predicated region
        $region77: #{bottleneck_cbam_forward.1} parent=75 // pred_check
          %p466 = pneg %p47
        $region78: #{bottleneck_cbam_forward.1} parent=75 // pred_check_branch
          %468 = sbr.rel (%p466) target = $region80
        $region79: #{bottleneck_cbam_forward.1} parent=75 // pred_region
          %p469 = scmp.lt.s32.totalorder %s27, 1
          %s470 = scalar_select %p469, %s27, 1
          %s471 = smul.addr %s470, 8
          %s472 = smul.addr %s471, 8
          %s473 = scalar_lea.vmem %s0, %s472
        $region80: #{bottleneck_cbam_forward.1} parent=75 // pred_fallthru
          _
      $region76: #{bottleneck_cbam_forward.1} parent=5 // pred_fallthru
        _
      %p474 = scmp.le.s32.totalorder 1, %s27
      %p475 = scmp.lt.s32.totalorder %s27, 3
      %p476 = pnand %p474, %p475
      %p477 = pneg %p476
      // Predicated region
      $region81: #{bottleneck_cbam_forward.1} parent=5 // pred_check
        _
      $region82: #{bottleneck_cbam_forward.1} parent=5 // pred_check_branch
        %479 = sbr.rel (%p476) target = $region84
      $region83: #{bottleneck_cbam_forward.1} parent=5 // pred_region
        %s480 = ssub.s32 %s27, 1
        // Predicated region
        $region85: #{bottleneck_cbam_forward.1} parent=83 // pred_check
          %p481 = pneg %p347
        $region86: #{bottleneck_cbam_forward.1} parent=83 // pred_check_branch
          %483 = sbr.rel (%p481) target = $region88
        $region87: #{bottleneck_cbam_forward.1} parent=83 // pred_region
          %484 = dma.done [#allocation6], 16
        $region88: #{bottleneck_cbam_forward.1} parent=83 // pred_fallthru
          _
        %485 = sfence
        %p486 = scmp.lt.s32.totalorder %s32, 1
        %s487 = scalar_select %p486, %s32, 1
        %s488 = smul.addr %s487, 8
        %s489 = smul.addr %s488, 8
        %s490 = scalar_lea.vmem %s0, %s489
        %p491 = pneg %p53
        %p492 = pneg %p50
        %p493 = pneg %p74
        %p494 = pneg %p71
        %p495 = pneg %p95
        %p496 = pneg %p92
        %p497 = pneg %p116
        %p498 = pneg %p113
        %p499 = pneg %p137
        %p500 = pneg %p134
        %p501 = pneg %p158
        %p502 = pneg %p155
        %p503 = pneg %p179
        %p504 = pneg %p176
        %p505 = pneg %p200
        %p506 = pneg %p197
        %p507 = pneg %p221
        %p508 = pneg %p218
        %p509 = pneg %p242
        %p510 = pneg %p239
        %p511 = pneg %p263
        %p512 = pneg %p260
        %p513 = pneg %p284
        %p514 = pneg %p281
        %p515 = pneg %p305
        %p516 = pneg %p302
        %p517 = pneg %p326
        %p518 = pneg %p323
        %p519 = pneg %p347
        %p520 = pneg %p344
        %p521 = pneg %p368
        %p522 = pneg %p365
        %p523 = pneg %p394
        %p524 = pneg %p391
        %s525 = sand.u32 %s381, 1
        %s526 = scalar_lea.sflag [#allocation5], %s525
        %s527 = sand.u32 %s381, 1
        %s528 = smul.addr %s527, 64
        %s529 = scalar_lea.vmem [#allocation7], %s528
        %p530 = scmp.lt.s32.totalorder %s32, 1
        %s531 = scalar_select %p530, %s32, 1
        %s532 = smul.addr %s531, 8
        %s533 = smul.addr %s532, 8
        %s534 = scalar_lea.vmem %s0, %s533
        %v536 = vld [vmem:[%s534] sm:$0xff]
        %v537 = vld [vmem:[%s534 + $0x8] sm:$0xff]
        %v538 = vld [vmem:[%s534 + $0x10] sm:$0xff]
        %v539 = vld [vmem:[%s534 + $0x18] sm:$0xff]
        %v540 = vld [vmem:[%s534 + $0x20] sm:$0xff]
        %v541 = vld [vmem:[%s534 + $0x28] sm:$0xff]
        %v542 = vld [vmem:[%s534 + $0x30] sm:$0xff]
        %v543 = vld [vmem:[%s534 + $0x38] sm:$0xff]
        %v544 = vpack.c.bf16 %v537, %v536
        %v545 = vpack.c.bf16 %v539, %v538
        %v546 = vpack.c.bf16 %v541, %v540
        %v547 = vpack.c.bf16 %v543, %v542
        %v548 = vld [vmem:[%s1] sm:$0xf]
        %v549 = vld [vmem:[%s1 + $0x4] sm:$0xf]
        %v550 = vld [vmem:[%s1 + $0x8] sm:$0xf]
        %v551 = vld [vmem:[%s1 + $0xc] sm:$0xf]
        %v552 = vld [vmem:[%s1 + $0x10] sm:$0xf]
        %v553 = vld [vmem:[%s1 + $0x14] sm:$0xf]
        %v554 = vld [vmem:[%s1 + $0x18] sm:$0xf]
        %v555 = vld [vmem:[%s1 + $0x1c] sm:$0xf]
        %v556 = vld [vmem:[%s1 + $0x20] sm:$0xf]
        %v557 = vld [vmem:[%s1 + $0x24] sm:$0xf]
        %v558 = vld [vmem:[%s1 + $0x28] sm:$0xf]
        %v559 = vld [vmem:[%s1 + $0x2c] sm:$0xf]
        %v560 = vld [vmem:[%s1 + $0x30] sm:$0xf]
        %v561 = vld [vmem:[%s1 + $0x34] sm:$0xf]
        %v562 = vld [vmem:[%s1 + $0x38] sm:$0xf]
        %v563 = vld [vmem:[%s1 + $0x3c] sm:$0xf]
        %v580 = vunpack.c.l.b16 %v548
        %v581 = vunpack.c.l.b16 %v549
        %v582 = vunpack.c.l.b16 %v550
        %v583 = vunpack.c.l.b16 %v551
        %v584 = vunpack.c.l.b16 %v552
        %v585 = vunpack.c.l.b16 %v553
        %v586 = vunpack.c.l.b16 %v554
        %v587 = vunpack.c.l.b16 %v555
        %v588 = vunpack.c.l.b16 %v556
        %v589 = vunpack.c.l.b16 %v557
        %v590 = vunpack.c.l.b16 %v558
        %v591 = vunpack.c.l.b16 %v559
        %v592 = vunpack.c.l.b16 %v560
        %v593 = vunpack.c.l.b16 %v561
        %v594 = vunpack.c.l.b16 %v562
        %v595 = vunpack.c.l.b16 %v563
        %v596 = vpack.c.b16 %v581, %v580
        %v597 = vpack.c.b16 %v583, %v582
        %v598 = vpack.c.b16 %v585, %v584
        %v599 = vpack.c.b16 %v587, %v586
        %v600 = vpack.c.b16 %v589, %v588
        %v601 = vpack.c.b16 %v591, %v590
        %v602 = vpack.c.b16 %v593, %v592
        %v603 = vpack.c.b16 %v595, %v594
        %612 = vmatprep.subr.bf16.mxu0 0
        %613 = vmatpush1.bf16.msra.mxu0 %v596
        %614 = vmatprep.subr.bf16.mxu0 0
        %615 = vmatpush1.bf16.msra.mxu0 %v597
        %616 = vmatprep.subr.bf16.mxu0 0
        %617 = vmatpush1.bf16.msra.mxu0 %v598
        %618 = vmatprep.subr.bf16.mxu0 0
        %619 = vmatpush1.bf16.msra.mxu0 %v599
        %620 = vmatprep.subr.bf16.mxu0 0
        %621 = vmatpush1.bf16.msra.mxu0 %v600
        %622 = vmatprep.subr.bf16.mxu0 0
        %623 = vmatpush1.bf16.msra.mxu0 %v601
        %624 = vmatprep.subr.bf16.mxu0 0
        %625 = vmatpush1.bf16.msra.mxu0 %v602
        %626 = vmatprep.subr.bf16.mxu0 0
        %627 = vmatpush1.bf16.msra.mxu0 %v603
        %628 = vmatprep.subr.bf16.mxu0 0
        %629 = vmatpush1.bf16.msra.mxu0 0
        %630 = vmatprep.subr.bf16.mxu0 0
        %631 = vmatpush1.bf16.msra.mxu0 0
        %632 = vmatprep.subr.bf16.mxu0 0
        %633 = vmatpush1.bf16.msra.mxu0 0
        %634 = vmatprep.subr.bf16.mxu0 0
        %635 = vmatpush1.bf16.msra.mxu0 0
        %636 = vmatprep.subr.bf16.mxu0 0
        %637 = vmatpush1.bf16.msra.mxu0 0
        %638 = vmatprep.subr.bf16.mxu0 0
        %639 = vmatpush1.bf16.msra.mxu0 0
        %640 = vmatprep.subr.bf16.mxu0 0
        %641 = vmatpush1.bf16.msra.mxu0 0
        %642 = vmatprep.subr.bf16.mxu0 0
        %643 = vmatpush1.bf16.msra.mxu0 0
        %644 = vmatprep.mubr.bf16.mxu0 0
        %645 = vmatmul.mubr.bf16.gmra.mrb[0].mxu0 %v544
        %v646 = vpop.f32.mrb[0].mxu0
        %v647 = vadd.f32 0.0, %v646
        %v648 = vpop.f32.mrb[0].mxu0
        %v649 = vpop.f32.mrb[0].mxu0
        %v650 = vadd.f32 0.0, %v649
        %v651 = vpop.f32.mrb[0].mxu0
        %652 = vmatprep.mubr.bf16.mxu0 0
        %653 = vmatmul.mubr.bf16.gmra.mrb[0].mxu0 %v545
        %v654 = vpop.f32.mrb[0].mxu0
        %v655 = vadd.f32 0.0, %v654
        %v656 = vpop.f32.mrb[0].mxu0
        %v657 = vpop.f32.mrb[0].mxu0
        %v658 = vadd.f32 0.0, %v657
        %v659 = vpop.f32.mrb[0].mxu0
        %660 = vmatprep.mubr.bf16.mxu0 0
        %661 = vmatmul.mubr.bf16.gmra.mrb[0].mxu0 %v546
        %v662 = vpop.f32.mrb[0].mxu0
        %v663 = vadd.f32 0.0, %v662
        %v664 = vpop.f32.mrb[0].mxu0
        %v665 = vpop.f32.mrb[0].mxu0
        %v666 = vadd.f32 0.0, %v665
        %v667 = vpop.f32.mrb[0].mxu0
        %668 = vmatprep.mubr.bf16.mxu0 0
        %669 = vmatmul.mubr.bf16.gmra.mrb[0].mxu0 %v547
        %v670 = vpop.f32.mrb[0].mxu0
        %v671 = vadd.f32 0.0, %v670
        %v672 = vpop.f32.mrb[0].mxu0
        %v673 = vpop.f32.mrb[0].mxu0
        %v674 = vadd.f32 0.0, %v673
        %v675 = vpop.f32.mrb[0].mxu0
        %676 = vdwg.mxu0
        %v677 = vld [vmem:[%s2] sm:$0x1]
        %v679 = vlaneseq
        %v680 = vshrl.u32 %v679, 7
        %v681 = vsub.s32 0, %v680
        %v682 = vrot.slane %v677, %v681
        %v684 = vmul.f32 %v647, %v682
        %v685 = vmul.f32 %v650, %v682
        %v686 = vmul.f32 %v655, %v682
        %v687 = vmul.f32 %v658, %v682
        %v688 = vmul.f32 %v663, %v682
        %v689 = vmul.f32 %v666, %v682
        %v690 = vmul.f32 %v671, %v682
        %v691 = vmul.f32 %v674, %v682
        %v692 = vld [vmem:[%s3] sm:$0x1]
        %v694 = vlaneseq
        %v695 = vshrl.u32 %v694, 7
        %v696 = vsub.s32 0, %v695
        %v697 = vrot.slane %v692, %v696
        %v699 = vadd.f32 %v684, %v697
        %v700 = vadd.f32 %v685, %v697
        %v701 = vadd.f32 %v686, %v697
        %v702 = vadd.f32 %v687, %v697
        %v703 = vadd.f32 %v688, %v697
        %v704 = vadd.f32 %v689, %v697
        %v705 = vadd.f32 %v690, %v697
        %v706 = vadd.f32 %v691, %v697
        %v707 = vmax.f32 %v699, 0.0
        %v708 = vmax.f32 %v700, 0.0
        %v709 = vmax.f32 %v701, 0.0
        %v710 = vmax.f32 %v702, 0.0
        %v711 = vmax.f32 %v703, 0.0
        %v712 = vmax.f32 %v704, 0.0
        %v713 = vmax.f32 %v705, 0.0
        %v714 = vmax.f32 %v706, 0.0
        %715 = vst [vmem:[#allocation2] sm:$0xff] 0.0
        %716 = vst [vmem:[#allocation2 + $0x8] sm:$0x3] 0.0
        %s717 = scalar_lea.vmem [#allocation2], 144
        %718 = vst [vmem:[%s717] sm:$0xff] 0.0
        %719 = vst [vmem:[%s717 + $0x8] sm:$0x3] 0.0
        %720 = vst [vmem:[#allocation2] sm:$0x1] 0.0
        %721 = vst [vmem:[#allocation2 + $0x10] sm:$0x1] 0.0
        %722 = vst [vmem:[#allocation2 + $0x20] sm:$0x1] 0.0
        %723 = vst [vmem:[#allocation2 + $0x30] sm:$0x1] 0.0
        %724 = vst [vmem:[#allocation2 + $0x40] sm:$0x1] 0.0
        %725 = vst [vmem:[#allocation2 + $0x50] sm:$0x1] 0.0
        %726 = vst [vmem:[#allocation2 + $0x60] sm:$0x1] 0.0
        %727 = vst [vmem:[#allocation2 + $0x70] sm:$0x1] 0.0
        %728 = vst [vmem:[#allocation2 + $0x80] sm:$0x1] 0.0
        %729 = vst [vmem:[#allocation2 + $0x90] sm:$0x1] 0.0
        %730 = vst [vmem:[#allocation2 + $0x9] sm:$0x1] 0.0
        %731 = vst [vmem:[#allocation2 + $0x19] sm:$0x1] 0.0
        %732 = vst [vmem:[#allocation2 + $0x29] sm:$0x1] 0.0
        %733 = vst [vmem:[#allocation2 + $0x39] sm:$0x1] 0.0
        %734 = vst [vmem:[#allocation2 + $0x49] sm:$0x1] 0.0
        %735 = vst [vmem:[#allocation2 + $0x59] sm:$0x1] 0.0
        %736 = vst [vmem:[#allocation2 + $0x69] sm:$0x1] 0.0
        %737 = vst [vmem:[#allocation2 + $0x79] sm:$0x1] 0.0
        %738 = vst [vmem:[#allocation2 + $0x89] sm:$0x1] 0.0
        %739 = vst [vmem:[#allocation2 + $0x99] sm:$0x1] 0.0
        %s740 = scalar_lea.vmem [#allocation2], 16
        %741 = vst [vmem:[%s740 + $0x1] sm:$0xff] %v707
        %742 = vst [vmem:[%s740 + $0x11] sm:$0xff] %v708
        %743 = vst [vmem:[%s740 + $0x21] sm:$0xff] %v709
        %744 = vst [vmem:[%s740 + $0x31] sm:$0xff] %v710
        %745 = vst [vmem:[%s740 + $0x41] sm:$0xff] %v711
        %746 = vst [vmem:[%s740 + $0x51] sm:$0xff] %v712
        %747 = vst [vmem:[%s740 + $0x61] sm:$0xff] %v713
        %748 = vst [vmem:[%s740 + $0x71] sm:$0xff] %v714
        %v749 = vld [vmem:[#allocation2] sm:$0xff]
        %v750 = vld [vmem:[#allocation2 + $0x10] sm:$0xff]
        %v751 = vld [vmem:[#allocation2 + $0x20] sm:$0xff]
        %v752 = vld [vmem:[#allocation2 + $0x30] sm:$0xff]
        %v753 = vld [vmem:[#allocation2 + $0x40] sm:$0xff]
        %v754 = vld [vmem:[#allocation2 + $0x50] sm:$0xff]
        %v755 = vld [vmem:[#allocation2 + $0x60] sm:$0xff]
        %v756 = vld [vmem:[#allocation2 + $0x70] sm:$0xff]
        %v757 = vld [vmem:[#allocation2 + $0x1] sm:$0xff]
        %v758 = vld [vmem:[#allocation2 + $0x11] sm:$0xff]
        %v759 = vld [vmem:[#allocation2 + $0x21] sm:$0xff]
        %v760 = vld [vmem:[#allocation2 + $0x31] sm:$0xff]
        %v761 = vld [vmem:[#allocation2 + $0x41] sm:$0xff]
        %v762 = vld [vmem:[#allocation2 + $0x51] sm:$0xff]
        %v763 = vld [vmem:[#allocation2 + $0x61] sm:$0xff]
        %v764 = vld [vmem:[#allocation2 + $0x71] sm:$0xff]
        %v765 = vld [vmem:[#allocation2 + $0x2] sm:$0xff]
        %v766 = vld [vmem:[#allocation2 + $0x12] sm:$0xff]
        %v767 = vld [vmem:[#allocation2 + $0x22] sm:$0xff]
        %v768 = vld [vmem:[#allocation2 + $0x32] sm:$0xff]
        %v769 = vld [vmem:[#allocation2 + $0x42] sm:$0xff]
        %v770 = vld [vmem:[#allocation2 + $0x52] sm:$0xff]
        %v771 = vld [vmem:[#allocation2 + $0x62] sm:$0xff]
        %v772 = vld [vmem:[#allocation2 + $0x72] sm:$0xff]
        %v773 = vld [vmem:[%s740] sm:$0xff]
        %v774 = vld [vmem:[%s740 + $0x10] sm:$0xff]
        %v775 = vld [vmem:[%s740 + $0x20] sm:$0xff]
        %v776 = vld [vmem:[%s740 + $0x30] sm:$0xff]
        %v777 = vld [vmem:[%s740 + $0x40] sm:$0xff]
        %v778 = vld [vmem:[%s740 + $0x50] sm:$0xff]
        %v779 = vld [vmem:[%s740 + $0x60] sm:$0xff]
        %v780 = vld [vmem:[%s740 + $0x70] sm:$0xff]
        %v781 = vld [vmem:[%s740 + $0x1] sm:$0xff]
        %v782 = vld [vmem:[%s740 + $0x11] sm:$0xff]
        %v783 = vld [vmem:[%s740 + $0x21] sm:$0xff]
        %v784 = vld [vmem:[%s740 + $0x31] sm:$0xff]
        %v785 = vld [vmem:[%s740 + $0x41] sm:$0xff]
        %v786 = vld [vmem:[%s740 + $0x51] sm:$0xff]
        %v787 = vld [vmem:[%s740 + $0x61] sm:$0xff]
        %v788 = vld [vmem:[%s740 + $0x71] sm:$0xff]
        %v789 = vld [vmem:[%s740 + $0x2] sm:$0xff]
        %v790 = vld [vmem:[%s740 + $0x12] sm:$0xff]
        %v791 = vld [vmem:[%s740 + $0x22] sm:$0xff]
        %v792 = vld [vmem:[%s740 + $0x32] sm:$0xff]
        %v793 = vld [vmem:[%s740 + $0x42] sm:$0xff]
        %v794 = vld [vmem:[%s740 + $0x52] sm:$0xff]
        %v795 = vld [vmem:[%s740 + $0x62] sm:$0xff]
        %v796 = vld [vmem:[%s740 + $0x72] sm:$0xff]
        %s797 = scalar_lea.vmem [#allocation2], 32
        %v798 = vld [vmem:[%s797] sm:$0xff]
        %v799 = vld [vmem:[%s797 + $0x10] sm:$0xff]
        %v800 = vld [vmem:[%s797 + $0x20] sm:$0xff]
        %v801 = vld [vmem:[%s797 + $0x30] sm:$0xff]
        %v802 = vld [vmem:[%s797 + $0x40] sm:$0xff]
        %v803 = vld [vmem:[%s797 + $0x50] sm:$0xff]
        %v804 = vld [vmem:[%s797 + $0x60] sm:$0xff]
        %v805 = vld [vmem:[%s797 + $0x70] sm:$0xff]
        %v806 = vld [vmem:[%s797 + $0x1] sm:$0xff]
        %v807 = vld [vmem:[%s797 + $0x11] sm:$0xff]
        %v808 = vld [vmem:[%s797 + $0x21] sm:$0xff]
        %v809 = vld [vmem:[%s797 + $0x31] sm:$0xff]
        %v810 = vld [vmem:[%s797 + $0x41] sm:$0xff]
        %v811 = vld [vmem:[%s797 + $0x51] sm:$0xff]
        %v812 = vld [vmem:[%s797 + $0x61] sm:$0xff]
        %v813 = vld [vmem:[%s797 + $0x71] sm:$0xff]
        %v814 = vld [vmem:[%s797 + $0x2] sm:$0xff]
        %v815 = vld [vmem:[%s797 + $0x12] sm:$0xff]
        %v816 = vld [vmem:[%s797 + $0x22] sm:$0xff]
        %v817 = vld [vmem:[%s797 + $0x32] sm:$0xff]
        %v818 = vld [vmem:[%s797 + $0x42] sm:$0xff]
        %v819 = vld [vmem:[%s797 + $0x52] sm:$0xff]
        %v820 = vld [vmem:[%s797 + $0x62] sm:$0xff]
        %v821 = vld [vmem:[%s797 + $0x72] sm:$0xff]
        %v822 = vpack.c.bf16 %v750, %v749
        %v823 = vpack.c.bf16 %v758, %v757
        %v824 = vpack.c.bf16 %v766, %v765
        %v825 = vpack.c.bf16 %v774, %v773
        %v826 = vpack.c.bf16 %v782, %v781
        %v827 = vpack.c.bf16 %v790, %v789
        %v828 = vpack.c.bf16 %v799, %v798
        %v829 = vpack.c.bf16 %v807, %v806
        %v830 = vpack.c.bf16 %v815, %v814
        %v831 = vpack.c.bf16 %v752, %v751
        %v832 = vpack.c.bf16 %v760, %v759
        %v833 = vpack.c.bf16 %v768, %v767
        %v834 = vpack.c.bf16 %v776, %v775
        %v835 = vpack.c.bf16 %v784, %v783
        %v836 = vpack.c.bf16 %v792, %v791
        %v837 = vpack.c.bf16 %v801, %v800
        %v838 = vpack.c.bf16 %v809, %v808
        %v839 = vpack.c.bf16 %v817, %v816
        %v840 = vpack.c.bf16 %v754, %v753
        %v841 = vpack.c.bf16 %v762, %v761
        %v842 = vpack.c.bf16 %v770, %v769
        %v843 = vpack.c.bf16 %v778, %v777
        %v844 = vpack.c.bf16 %v786, %v785
        %v845 = vpack.c.bf16 %v794, %v793
        %v846 = vpack.c.bf16 %v803, %v802
        %v847 = vpack.c.bf16 %v811, %v810
        %v848 = vpack.c.bf16 %v819, %v818
        %v849 = vpack.c.bf16 %v756, %v755
        %v850 = vpack.c.bf16 %v764, %v763
        %v851 = vpack.c.bf16 %v772, %v771
        %v852 = vpack.c.bf16 %v780, %v779
        %v853 = vpack.c.bf16 %v788, %v787
        %v854 = vpack.c.bf16 %v796, %v795
        %v855 = vpack.c.bf16 %v805, %v804
        %v856 = vpack.c.bf16 %v813, %v812
        %v857 = vpack.c.bf16 %v821, %v820
        %v858 = vld [vmem:[%s4] sm:$0xf]
        %v859 = vld [vmem:[%s4 + $0x4] sm:$0xf]
        %v860 = vld [vmem:[%s4 + $0x8] sm:$0xf]
        %v861 = vld [vmem:[%s4 + $0xc] sm:$0xf]
        %v862 = vld [vmem:[%s4 + $0x10] sm:$0xf]
        %v863 = vld [vmem:[%s4 + $0x14] sm:$0xf]
        %v864 = vld [vmem:[%s4 + $0x18] sm:$0xf]
        %v865 = vld [vmem:[%s4 + $0x1c] sm:$0xf]
        %v866 = vld [vmem:[%s4 + $0x20] sm:$0xf]
        %v867 = vld [vmem:[%s4 + $0x24] sm:$0xf]
        %v868 = vld [vmem:[%s4 + $0x28] sm:$0xf]
        %v869 = vld [vmem:[%s4 + $0x2c] sm:$0xf]
        %v870 = vld [vmem:[%s4 + $0x30] sm:$0xf]
        %v871 = vld [vmem:[%s4 + $0x34] sm:$0xf]
        %v872 = vld [vmem:[%s4 + $0x38] sm:$0xf]
        %v873 = vld [vmem:[%s4 + $0x3c] sm:$0xf]
        %v874 = vld [vmem:[%s4 + $0x40] sm:$0xf]
        %v875 = vld [vmem:[%s4 + $0x44] sm:$0xf]
        %v876 = vld [vmem:[%s4 + $0x48] sm:$0xf]
        %v877 = vld [vmem:[%s4 + $0x4c] sm:$0xf]
        %v878 = vld [vmem:[%s4 + $0x50] sm:$0xf]
        %v879 = vld [vmem:[%s4 + $0x54] sm:$0xf]
        %v880 = vld [vmem:[%s4 + $0x58] sm:$0xf]
        %v881 = vld [vmem:[%s4 + $0x5c] sm:$0xf]
        %v882 = vld [vmem:[%s4 + $0x60] sm:$0xf]
        %v883 = vld [vmem:[%s4 + $0x64] sm:$0xf]
        %v884 = vld [vmem:[%s4 + $0x68] sm:$0xf]
        %v885 = vld [vmem:[%s4 + $0x6c] sm:$0xf]
        %v886 = vld [vmem:[%s4 + $0x70] sm:$0xf]
        %v887 = vld [vmem:[%s4 + $0x74] sm:$0xf]
        %v888 = vld [vmem:[%s4 + $0x78] sm:$0xf]
        %v889 = vld [vmem:[%s4 + $0x7c] sm:$0xf]
        %v890 = vld [vmem:[%s4 + $0x80] sm:$0xf]
        %v891 = vld [vmem:[%s4 + $0x84] sm:$0xf]
        %v892 = vld [vmem:[%s4 + $0x88] sm:$0xf]
        %v893 = vld [vmem:[%s4 + $0x8c] sm:$0xf]
        %v894 = vld [vmem:[%s4 + $0x90] sm:$0xf]
        %v895 = vld [vmem:[%s4 + $0x94] sm:$0xf]
        %v896 = vld [vmem:[%s4 + $0x98] sm:$0xf]
        %v897 = vld [vmem:[%s4 + $0x9c] sm:$0xf]
        %v898 = vld [vmem:[%s4 + $0xa0] sm:$0xf]
        %v899 = vld [vmem:[%s4 + $0xa4] sm:$0xf]
        %v900 = vld [vmem:[%s4 + $0xa8] sm:$0xf]
        %v901 = vld [vmem:[%s4 + $0xac] sm:$0xf]
        %v902 = vld [vmem:[%s4 + $0xb0] sm:$0xf]
        %v903 = vld [vmem:[%s4 + $0xb4] sm:$0xf]
        %v904 = vld [vmem:[%s4 + $0xb8] sm:$0xf]
        %v905 = vld [vmem:[%s4 + $0xbc] sm:$0xf]
        %v906 = vld [vmem:[%s4 + $0xc0] sm:$0xf]
        %v907 = vld [vmem:[%s4 + $0xc4] sm:$0xf]
        %v908 = vld [vmem:[%s4 + $0xc8] sm:$0xf]
        %v909 = vld [vmem:[%s4 + $0xcc] sm:$0xf]
        %v910 = vld [vmem:[%s4 + $0xd0] sm:$0xf]
        %v911 = vld [vmem:[%s4 + $0xd4] sm:$0xf]
        %v912 = vld [vmem:[%s4 + $0xd8] sm:$0xf]
        %v913 = vld [vmem:[%s4 + $0xdc] sm:$0xf]
        %v914 = vld [vmem:[%s4 + $0xe0] sm:$0xf]
        %v915 = vld [vmem:[%s4 + $0xe4] sm:$0xf]
        %v916 = vld [vmem:[%s4 + $0xe8] sm:$0xf]
        %v917 = vld [vmem:[%s4 + $0xec] sm:$0xf]
        %v918 = vld [vmem:[%s4 + $0xf0] sm:$0xf]
        %v919 = vld [vmem:[%s4 + $0xf4] sm:$0xf]
        %v920 = vld [vmem:[%s4 + $0xf8] sm:$0xf]
        %v921 = vld [vmem:[%s4 + $0xfc] sm:$0xf]
        %v922 = vld [vmem:[%s4 + $0x100] sm:$0xf]
        %v923 = vld [vmem:[%s4 + $0x104] sm:$0xf]
        %v924 = vld [vmem:[%s4 + $0x108] sm:$0xf]
        %v925 = vld [vmem:[%s4 + $0x10c] sm:$0xf]
        %v926 = vld [vmem:[%s4 + $0x110] sm:$0xf]
        %v927 = vld [vmem:[%s4 + $0x114] sm:$0xf]
        %v928 = vld [vmem:[%s4 + $0x118] sm:$0xf]
        %v929 = vld [vmem:[%s4 + $0x11c] sm:$0xf]
        %v930 = vld [vmem:[%s4 + $0x120] sm:$0xf]
        %v931 = vld [vmem:[%s4 + $0x124] sm:$0xf]
        %v932 = vld [vmem:[%s4 + $0x128] sm:$0xf]
        %v933 = vld [vmem:[%s4 + $0x12c] sm:$0xf]
        %v934 = vld [vmem:[%s4 + $0x130] sm:$0xf]
        %v935 = vld [vmem:[%s4 + $0x134] sm:$0xf]
        %v936 = vld [vmem:[%s4 + $0x138] sm:$0xf]
        %v937 = vld [vmem:[%s4 + $0x13c] sm:$0xf]
        %v938 = vld [vmem:[%s4 + $0x140] sm:$0xf]
        %v939 = vld [vmem:[%s4 + $0x144] sm:$0xf]
        %v940 = vld [vmem:[%s4 + $0x148] sm:$0xf]
        %v941 = vld [vmem:[%s4 + $0x14c] sm:$0xf]
        %v942 = vld [vmem:[%s4 + $0x150] sm:$0xf]
        %v943 = vld [vmem:[%s4 + $0x154] sm:$0xf]
        %v944 = vld [vmem:[%s4 + $0x158] sm:$0xf]
        %v945 = vld [vmem:[%s4 + $0x15c] sm:$0xf]
        %v946 = vld [vmem:[%s4 + $0x160] sm:$0xf]
        %v947 = vld [vmem:[%s4 + $0x164] sm:$0xf]
        %v948 = vld [vmem:[%s4 + $0x168] sm:$0xf]
        %v949 = vld [vmem:[%s4 + $0x16c] sm:$0xf]
        %v950 = vld [vmem:[%s4 + $0x170] sm:$0xf]
        %v951 = vld [vmem:[%s4 + $0x174] sm:$0xf]
        %v952 = vld [vmem:[%s4 + $0x178] sm:$0xf]
        %v953 = vld [vmem:[%s4 + $0x17c] sm:$0xf]
        %v954 = vld [vmem:[%s4 + $0x180] sm:$0xf]
        %v955 = vld [vmem:[%s4 + $0x184] sm:$0xf]
        %v956 = vld [vmem:[%s4 + $0x188] sm:$0xf]
        %v957 = vld [vmem:[%s4 + $0x18c] sm:$0xf]
        %v958 = vld [vmem:[%s4 + $0x190] sm:$0xf]
        %v959 = vld [vmem:[%s4 + $0x194] sm:$0xf]
        %v960 = vld [vmem:[%s4 + $0x198] sm:$0xf]
        %v961 = vld [vmem:[%s4 + $0x19c] sm:$0xf]
        %v962 = vld [vmem:[%s4 + $0x1a0] sm:$0xf]
        %v963 = vld [vmem:[%s4 + $0x1a4] sm:$0xf]
        %v964 = vld [vmem:[%s4 + $0x1a8] sm:$0xf]
        %v965 = vld [vmem:[%s4 + $0x1ac] sm:$0xf]
        %v966 = vld [vmem:[%s4 + $0x1b0] sm:$0xf]
        %v967 = vld [vmem:[%s4 + $0x1b4] sm:$0xf]
        %v968 = vld [vmem:[%s4 + $0x1b8] sm:$0xf]
        %v969 = vld [vmem:[%s4 + $0x1bc] sm:$0xf]
        %v970 = vld [vmem:[%s4 + $0x1c0] sm:$0xf]
        %v971 = vld [vmem:[%s4 + $0x1c4] sm:$0xf]
        %v972 = vld [vmem:[%s4 + $0x1c8] sm:$0xf]
        %v973 = vld [vmem:[%s4 + $0x1cc] sm:$0xf]
        %v974 = vld [vmem:[%s4 + $0x1d0] sm:$0xf]
        %v975 = vld [vmem:[%s4 + $0x1d4] sm:$0xf]
        %v976 = vld [vmem:[%s4 + $0x1d8] sm:$0xf]
        %v977 = vld [vmem:[%s4 + $0x1dc] sm:$0xf]
        %v978 = vld [vmem:[%s4 + $0x1e0] sm:$0xf]
        %v979 = vld [vmem:[%s4 + $0x1e4] sm:$0xf]
        %v980 = vld [vmem:[%s4 + $0x1e8] sm:$0xf]
        %v981 = vld [vmem:[%s4 + $0x1ec] sm:$0xf]
        %v982 = vld [vmem:[%s4 + $0x1f0] sm:$0xf]
        %v983 = vld [vmem:[%s4 + $0x1f4] sm:$0xf]
        %v984 = vld [vmem:[%s4 + $0x1f8] sm:$0xf]
        %v985 = vld [vmem:[%s4 + $0x1fc] sm:$0xf]
        %v986 = vld [vmem:[%s4 + $0x200] sm:$0xf]
        %v987 = vld [vmem:[%s4 + $0x204] sm:$0xf]
        %v988 = vld [vmem:[%s4 + $0x208] sm:$0xf]
        %v989 = vld [vmem:[%s4 + $0x20c] sm:$0xf]
        %v990 = vld [vmem:[%s4 + $0x210] sm:$0xf]
        %v991 = vld [vmem:[%s4 + $0x214] sm:$0xf]
        %v992 = vld [vmem:[%s4 + $0x218] sm:$0xf]
        %v993 = vld [vmem:[%s4 + $0x21c] sm:$0xf]
        %v994 = vld [vmem:[%s4 + $0x220] sm:$0xf]
        %v995 = vld [vmem:[%s4 + $0x224] sm:$0xf]
        %v996 = vld [vmem:[%s4 + $0x228] sm:$0xf]
        %v997 = vld [vmem:[%s4 + $0x22c] sm:$0xf]
        %v998 = vld [vmem:[%s4 + $0x230] sm:$0xf]
        %v999 = vld [vmem:[%s4 + $0x234] sm:$0xf]
        %v1000 = vld [vmem:[%s4 + $0x238] sm:$0xf]
        %v1001 = vld [vmem:[%s4 + $0x23c] sm:$0xf]
        %v1146 = vunpack.c.l.b16 %v858
        %v1147 = vunpack.c.l.b16 %v859
        %v1148 = vunpack.c.l.b16 %v860
        %v1149 = vunpack.c.l.b16 %v861
        %v1150 = vunpack.c.l.b16 %v862
        %v1151 = vunpack.c.l.b16 %v863
        %v1152 = vunpack.c.l.b16 %v864
        %v1153 = vunpack.c.l.b16 %v865
        %v1154 = vunpack.c.l.b16 %v866
        %v1155 = vunpack.c.l.b16 %v867
        %v1156 = vunpack.c.l.b16 %v868
        %v1157 = vunpack.c.l.b16 %v869
        %v1158 = vunpack.c.l.b16 %v870
        %v1159 = vunpack.c.l.b16 %v871
        %v1160 = vunpack.c.l.b16 %v872
        %v1161 = vunpack.c.l.b16 %v873
        %v1162 = vunpack.c.l.b16 %v874
        %v1163 = vunpack.c.l.b16 %v875
        %v1164 = vunpack.c.l.b16 %v876
        %v1165 = vunpack.c.l.b16 %v877
        %v1166 = vunpack.c.l.b16 %v878
        %v1167 = vunpack.c.l.b16 %v879
        %v1168 = vunpack.c.l.b16 %v880
        %v1169 = vunpack.c.l.b16 %v881
        %v1170 = vunpack.c.l.b16 %v882
        %v1171 = vunpack.c.l.b16 %v883
        %v1172 = vunpack.c.l.b16 %v884
        %v1173 = vunpack.c.l.b16 %v885
        %v1174 = vunpack.c.l.b16 %v886
        %v1175 = vunpack.c.l.b16 %v887
        %v1176 = vunpack.c.l.b16 %v888
        %v1177 = vunpack.c.l.b16 %v889
        %v1178 = vunpack.c.l.b16 %v890
        %v1179 = vunpack.c.l.b16 %v891
        %v1180 = vunpack.c.l.b16 %v892
        %v1181 = vunpack.c.l.b16 %v893
        %v1182 = vunpack.c.l.b16 %v894
        %v1183 = vunpack.c.l.b16 %v895
        %v1184 = vunpack.c.l.b16 %v896
        %v1185 = vunpack.c.l.b16 %v897
        %v1186 = vunpack.c.l.b16 %v898
        %v1187 = vunpack.c.l.b16 %v899
        %v1188 = vunpack.c.l.b16 %v900
        %v1189 = vunpack.c.l.b16 %v901
        %v1190 = vunpack.c.l.b16 %v902
        %v1191 = vunpack.c.l.b16 %v903
        %v1192 = vunpack.c.l.b16 %v904
        %v1193 = vunpack.c.l.b16 %v905
        %v1194 = vunpack.c.l.b16 %v906
        %v1195 = vunpack.c.l.b16 %v907
        %v1196 = vunpack.c.l.b16 %v908
        %v1197 = vunpack.c.l.b16 %v909
        %v1198 = vunpack.c.l.b16 %v910
        %v1199 = vunpack.c.l.b16 %v911
        %v1200 = vunpack.c.l.b16 %v912
        %v1201 = vunpack.c.l.b16 %v913
        %v1202 = vunpack.c.l.b16 %v914
        %v1203 = vunpack.c.l.b16 %v915
        %v1204 = vunpack.c.l.b16 %v916
        %v1205 = vunpack.c.l.b16 %v917
        %v1206 = vunpack.c.l.b16 %v918
        %v1207 = vunpack.c.l.b16 %v919
        %v1208 = vunpack.c.l.b16 %v920
        %v1209 = vunpack.c.l.b16 %v921
        %v1210 = vunpack.c.l.b16 %v922
        %v1211 = vunpack.c.l.b16 %v923
        %v1212 = vunpack.c.l.b16 %v924
        %v1213 = vunpack.c.l.b16 %v925
        %v1214 = vunpack.c.l.b16 %v926
        %v1215 = vunpack.c.l.b16 %v927
        %v1216 = vunpack.c.l.b16 %v928
        %v1217 = vunpack.c.l.b16 %v929
        %v1218 = vunpack.c.l.b16 %v930
        %v1219 = vunpack.c.l.b16 %v931
        %v1220 = vunpack.c.l.b16 %v932
        %v1221 = vunpack.c.l.b16 %v933
        %v1222 = vunpack.c.l.b16 %v934
        %v1223 = vunpack.c.l.b16 %v935
        %v1224 = vunpack.c.l.b16 %v936
        %v1225 = vunpack.c.l.b16 %v937
        %v1226 = vunpack.c.l.b16 %v938
        %v1227 = vunpack.c.l.b16 %v939
        %v1228 = vunpack.c.l.b16 %v940
        %v1229 = vunpack.c.l.b16 %v941
        %v1230 = vunpack.c.l.b16 %v942
        %v1231 = vunpack.c.l.b16 %v943
        %v1232 = vunpack.c.l.b16 %v944
        %v1233 = vunpack.c.l.b16 %v945
        %v1234 = vunpack.c.l.b16 %v946
        %v1235 = vunpack.c.l.b16 %v947
        %v1236 = vunpack.c.l.b16 %v948
        %v1237 = vunpack.c.l.b16 %v949
        %v1238 = vunpack.c.l.b16 %v950
        %v1239 = vunpack.c.l.b16 %v951
        %v1240 = vunpack.c.l.b16 %v952
        %v1241 = vunpack.c.l.b16 %v953
        %v1242 = vunpack.c.l.b16 %v954
        %v1243 = vunpack.c.l.b16 %v955
        %v1244 = vunpack.c.l.b16 %v956
        %v1245 = vunpack.c.l.b16 %v957
        %v1246 = vunpack.c.l.b16 %v958
        %v1247 = vunpack.c.l.b16 %v959
        %v1248 = vunpack.c.l.b16 %v960
        %v1249 = vunpack.c.l.b16 %v961
        %v1250 = vunpack.c.l.b16 %v962
        %v1251 = vunpack.c.l.b16 %v963
        %v1252 = vunpack.c.l.b16 %v964
        %v1253 = vunpack.c.l.b16 %v965
        %v1254 = vunpack.c.l.b16 %v966
        %v1255 = vunpack.c.l.b16 %v967
        %v1256 = vunpack.c.l.b16 %v968
        %v1257 = vunpack.c.l.b16 %v969
        %v1258 = vunpack.c.l.b16 %v970
        %v1259 = vunpack.c.l.b16 %v971
        %v1260 = vunpack.c.l.b16 %v972
        %v1261 = vunpack.c.l.b16 %v973
        %v1262 = vunpack.c.l.b16 %v974
        %v1263 = vunpack.c.l.b16 %v975
        %v1264 = vunpack.c.l.b16 %v976
        %v1265 = vunpack.c.l.b16 %v977
        %v1266 = vunpack.c.l.b16 %v978
        %v1267 = vunpack.c.l.b16 %v979
        %v1268 = vunpack.c.l.b16 %v980
        %v1269 = vunpack.c.l.b16 %v981
        %v1270 = vunpack.c.l.b16 %v982
        %v1271 = vunpack.c.l.b16 %v983
        %v1272 = vunpack.c.l.b16 %v984
        %v1273 = vunpack.c.l.b16 %v985
        %v1274 = vunpack.c.l.b16 %v986
        %v1275 = vunpack.c.l.b16 %v987
        %v1276 = vunpack.c.l.b16 %v988
        %v1277 = vunpack.c.l.b16 %v989
        %v1278 = vunpack.c.l.b16 %v990
        %v1279 = vunpack.c.l.b16 %v991
        %v1280 = vunpack.c.l.b16 %v992
        %v1281 = vunpack.c.l.b16 %v993
        %v1282 = vunpack.c.l.b16 %v994
        %v1283 = vunpack.c.l.b16 %v995
        %v1284 = vunpack.c.l.b16 %v996
        %v1285 = vunpack.c.l.b16 %v997
        %v1286 = vunpack.c.l.b16 %v998
        %v1287 = vunpack.c.l.b16 %v999
        %v1288 = vunpack.c.l.b16 %v1000
        %v1289 = vunpack.c.l.b16 %v1001
        %v1290 = vpack.c.b16 %v1147, %v1146
        %v1291 = vpack.c.b16 %v1149, %v1148
        %v1292 = vpack.c.b16 %v1151, %v1150
        %v1293 = vpack.c.b16 %v1153, %v1152
        %v1294 = vpack.c.b16 %v1155, %v1154
        %v1295 = vpack.c.b16 %v1157, %v1156
        %v1296 = vpack.c.b16 %v1159, %v1158
        %v1297 = vpack.c.b16 %v1161, %v1160
        %v1298 = vpack.c.b16 %v1163, %v1162
        %v1299 = vpack.c.b16 %v1165, %v1164
        %v1300 = vpack.c.b16 %v1167, %v1166
        %v1301 = vpack.c.b16 %v1169, %v1168
        %v1302 = vpack.c.b16 %v1171, %v1170
        %v1303 = vpack.c.b16 %v1173, %v1172
        %v1304 = vpack.c.b16 %v1175, %v1174
        %v1305 = vpack.c.b16 %v1177, %v1176
        %v1306 = vpack.c.b16 %v1179, %v1178
        %v1307 = vpack.c.b16 %v1181, %v1180
        %v1308 = vpack.c.b16 %v1183, %v1182
        %v1309 = vpack.c.b16 %v1185, %v1184
        %v1310 = vpack.c.b16 %v1187, %v1186
        %v1311 = vpack.c.b16 %v1189, %v1188
        %v1312 = vpack.c.b16 %v1191, %v1190
        %v1313 = vpack.c.b16 %v1193, %v1192
        %v1314 = vpack.c.b16 %v1195, %v1194
        %v1315 = vpack.c.b16 %v1197, %v1196
        %v1316 = vpack.c.b16 %v1199, %v1198
        %v1317 = vpack.c.b16 %v1201, %v1200
        %v1318 = vpack.c.b16 %v1203, %v1202
        %v1319 = vpack.c.b16 %v1205, %v1204
        %v1320 = vpack.c.b16 %v1207, %v1206
        %v1321 = vpack.c.b16 %v1209, %v1208
        %v1322 = vpack.c.b16 %v1211, %v1210
        %v1323 = vpack.c.b16 %v1213, %v1212
        %v1324 = vpack.c.b16 %v1215, %v1214
        %v1325 = vpack.c.b16 %v1217, %v1216
        %v1326 = vpack.c.b16 %v1219, %v1218
        %v1327 = vpack.c.b16 %v1221, %v1220
        %v1328 = vpack.c.b16 %v1223, %v1222
        %v1329 = vpack.c.b16 %v1225, %v1224
        %v1330 = vpack.c.b16 %v1227, %v1226
        %v1331 = vpack.c.b16 %v1229, %v1228
        %v1332 = vpack.c.b16 %v1231, %v1230
        %v1333 = vpack.c.b16 %v1233, %v1232
        %v1334 = vpack.c.b16 %v1235, %v1234
        %v1335 = vpack.c.b16 %v1237, %v1236
        %v1336 = vpack.c.b16 %v1239, %v1238
        %v1337 = vpack.c.b16 %v1241, %v1240
        %v1338 = vpack.c.b16 %v1243, %v1242
        %v1339 = vpack.c.b16 %v1245, %v1244
        %v1340 = vpack.c.b16 %v1247, %v1246
        %v1341 = vpack.c.b16 %v1249, %v1248
        %v1342 = vpack.c.b16 %v1251, %v1250
        %v1343 = vpack.c.b16 %v1253, %v1252
        %v1344 = vpack.c.b16 %v1255, %v1254
        %v1345 = vpack.c.b16 %v1257, %v1256
        %v1346 = vpack.c.b16 %v1259, %v1258
        %v1347 = vpack.c.b16 %v1261, %v1260
        %v1348 = vpack.c.b16 %v1263, %v1262
        %v1349 = vpack.c.b16 %v1265, %v1264
        %v1350 = vpack.c.b16 %v1267, %v1266
        %v1351 = vpack.c.b16 %v1269, %v1268
        %v1352 = vpack.c.b16 %v1271, %v1270
        %v1353 = vpack.c.b16 %v1273, %v1272
        %v1354 = vpack.c.b16 %v1275, %v1274
        %v1355 = vpack.c.b16 %v1277, %v1276
        %v1356 = vpack.c.b16 %v1279, %v1278
        %v1357 = vpack.c.b16 %v1281, %v1280
        %v1358 = vpack.c.b16 %v1283, %v1282
        %v1359 = vpack.c.b16 %v1285, %v1284
        %v1360 = vpack.c.b16 %v1287, %v1286
        %v1361 = vpack.c.b16 %v1289, %v1288
        %1434 = vmatprep.subr.bf16.mxu0 0
        %1435 = vmatpush1.bf16.msra.mxu0 %v1290
        %1436 = vmatprep.subr.bf16.mxu0 0
        %1437 = vmatpush1.bf16.msra.mxu0 %v1291
        %1438 = vmatprep.subr.bf16.mxu0 0
        %1439 = vmatpush1.bf16.msra.mxu0 %v1292
        %1440 = vmatprep.subr.bf16.mxu0 0
        %1441 = vmatpush1.bf16.msra.mxu0 %v1293
        %1442 = vmatprep.subr.bf16.mxu0 0
        %1443 = vmatpush1.bf16.msra.mxu0 %v1294
        %1444 = vmatprep.subr.bf16.mxu0 0
        %1445 = vmatpush1.bf16.msra.mxu0 %v1295
        %1446 = vmatprep.subr.bf16.mxu0 0
        %1447 = vmatpush1.bf16.msra.mxu0 %v1296
        %1448 = vmatprep.subr.bf16.mxu0 0
        %1449 = vmatpush1.bf16.msra.mxu0 %v1297
        %1450 = vmatprep.subr.bf16.mxu0 0
        %1451 = vmatpush1.bf16.msra.mxu0 %v1298
        %1452 = vmatprep.subr.bf16.mxu0 0
        %1453 = vmatpush1.bf16.msra.mxu0 %v1299
        %1454 = vmatprep.subr.bf16.mxu0 0
        %1455 = vmatpush1.bf16.msra.mxu0 %v1300
        %1456 = vmatprep.subr.bf16.mxu0 0
        %1457 = vmatpush1.bf16.msra.mxu0 %v1301
        %1458 = vmatprep.subr.bf16.mxu0 0
        %1459 = vmatpush1.bf16.msra.mxu0 %v1302
        %1460 = vmatprep.subr.bf16.mxu0 0
        %1461 = vmatpush1.bf16.msra.mxu0 %v1303
        %1462 = vmatprep.subr.bf16.mxu0 0
        %1463 = vmatpush1.bf16.msra.mxu0 %v1304
        %1464 = vmatprep.subr.bf16.mxu0 0
        %1465 = vmatpush1.bf16.msra.mxu0 %v1305
        %1466 = vmatprep.mubr.bf16.mxu0 %v823
        %1467 = vmatmul.mubr.bf16.gmra.mrb[0].mxu0 %v822
        %v1468 = vpop.f32.mrb[0].mxu0
        %v1469 = vadd.f32 0.0, %v1468
        %v1470 = vpop.f32.mrb[0].mxu0
        %v1471 = vpop.f32.mrb[0].mxu0
        %v1472 = vadd.f32 0.0, %v1471
        %v1473 = vpop.f32.mrb[0].mxu0
        %1474 = vmatprep.mubr.bf16.mxu0 %v832
        %1475 = vmatmul.mubr.bf16.gmra.mrb[0].mxu0 %v831
        %v1476 = vpop.f32.mrb[0].mxu0
        %v1477 = vadd.f32 0.0, %v1476
        %v1478 = vpop.f32.mrb[0].mxu0
        %v1479 = vpop.f32.mrb[0].mxu0
        %v1480 = vadd.f32 0.0, %v1479
        %v1481 = vpop.f32.mrb[0].mxu0
        %1482 = vmatprep.mubr.bf16.mxu0 %v841
        %1483 = vmatmul.mubr.bf16.gmra.mrb[0].mxu0 %v840
        %v1484 = vpop.f32.mrb[0].mxu0
        %v1485 = vadd.f32 0.0, %v1484
        %v1486 = vpop.f32.mrb[0].mxu0
        %v1487 = vpop.f32.mrb[0].mxu0
        %v1488 = vadd.f32 0.0, %v1487
        %v1489 = vpop.f32.mrb[0].mxu0
        %1490 = vmatprep.mubr.bf16.mxu0 %v850
        %1491 = vmatmul.mubr.bf16.gmra.mrb[0].mxu0 %v849
        %v1492 = vpop.f32.mrb[0].mxu0
        %v1493 = vadd.f32 0.0, %v1492
        %v1494 = vpop.f32.mrb[0].mxu0
        %v1495 = vpop.f32.mrb[0].mxu0
        %v1496 = vadd.f32 0.0, %v1495
        %v1497 = vpop.f32.mrb[0].mxu0
        %1498 = vdwg.mxu0
        %1499 = vmatprep.subr.bf16.mxu0 0
        %1500 = vmatpush1.bf16.msra.mxu0 %v1306
        %1501 = vmatprep.subr.bf16.mxu0 0
        %1502 = vmatpush1.bf16.msra.mxu0 %v1307
        %1503 = vmatprep.subr.bf16.mxu0 0
        %1504 = vmatpush1.bf16.msra.mxu0 %v1308
        %1505 = vmatprep.subr.bf16.mxu0 0
        %1506 = vmatpush1.bf16.msra.mxu0 %v1309
        %1507 = vmatprep.subr.bf16.mxu0 0
        %1508 = vmatpush1.bf16.msra.mxu0 %v1310
        %1509 = vmatprep.subr.bf16.mxu0 0
        %1510 = vmatpush1.bf16.msra.mxu0 %v1311
        %1511 = vmatprep.subr.bf16.mxu0 0
        %1512 = vmatpush1.bf16.msra.mxu0 %v1312
        %1513 = vmatprep.subr.bf16.mxu0 0
        %1514 = vmatpush1.bf16.msra.mxu0 %v1313
        %1515 = vmatprep.subr.bf16.mxu0 0
        %1516 = vmatpush1.bf16.msra.mxu0 %v1314
        %1517 = vmatprep.subr.bf16.mxu0 0
        %1518 = vmatpush1.bf16.msra.mxu0 %v1315
        %1519 = vmatprep.subr.bf16.mxu0 0
        %1520 = vmatpush1.bf16.msra.mxu0 %v1316
        %1521 = vmatprep.subr.bf16.mxu0 0
        %1522 = vmatpush1.bf16.msra.mxu0 %v1317
        %1523 = vmatprep.subr.bf16.mxu0 0
        %1524 = vmatpush1.bf16.msra.mxu0 %v1318
        %1525 = vmatprep.subr.bf16.mxu0 0
        %1526 = vmatpush1.bf16.msra.mxu0 %v1319
        %1527 = vmatprep.subr.bf16.mxu0 0
        %1528 = vmatpush1.bf16.msra.mxu0 %v1320
        %1529 = vmatprep.subr.bf16.mxu0 0
        %1530 = vmatpush1.bf16.msra.mxu0 %v1321
        %1531 = vmatprep.mubr.bf16.mxu0 %v825
        %1532 = vmatmul.mubr.bf16.gmra.mrb[0].mxu0 %v824
        %v1533 = vpop.f32.mrb[0].mxu0
        %v1534 = vadd.f32 %v1469, %v1533
        %v1535 = vpop.f32.mrb[0].mxu0
        %v1536 = vpop.f32.mrb[0].mxu0
        %v1537 = vadd.f32 %v1472, %v1536
        %v1538 = vpop.f32.mrb[0].mxu0
        %1539 = vmatprep.mubr.bf16.mxu0 %v834
        %1540 = vmatmul.mubr.bf16.gmra.mrb[0].mxu0 %v833
        %v1541 = vpop.f32.mrb[0].mxu0
        %v1542 = vadd.f32 %v1477, %v1541
        %v1543 = vpop.f32.mrb[0].mxu0
        %v1544 = vpop.f32.mrb[0].mxu0
        %v1545 = vadd.f32 %v1480, %v1544
        %v1546 = vpop.f32.mrb[0].mxu0
        %1547 = vmatprep.mubr.bf16.mxu0 %v843
        %1548 = vmatmul.mubr.bf16.gmra.mrb[0].mxu0 %v842
        %v1549 = vpop.f32.mrb[0].mxu0
        %v1550 = vadd.f32 %v1485, %v1549
        %v1551 = vpop.f32.mrb[0].mxu0
        %v1552 = vpop.f32.mrb[0].mxu0
        %v1553 = vadd.f32 %v1488, %v1552
        %v1554 = vpop.f32.mrb[0].mxu0
        %1555 = vmatprep.mubr.bf16.mxu0 %v852
        %1556 = vmatmul.mubr.bf16.gmra.mrb[0].mxu0 %v851
        %v1557 = vpop.f32.mrb[0].mxu0
        %v1558 = vadd.f32 %v1493, %v1557
        %v1559 = vpop.f32.mrb[0].mxu0
        %v1560 = vpop.f32.mrb[0].mxu0
        %v1561 = vadd.f32 %v1496, %v1560
        %v1562 = vpop.f32.mrb[0].mxu0
        %1563 = vdwg.mxu0
        %1564 = vmatprep.subr.bf16.mxu0 0
        %1565 = vmatpush1.bf16.msra.mxu0 %v1322
        %1566 = vmatprep.subr.bf16.mxu0 0
        %1567 = vmatpush1.bf16.msra.mxu0 %v1323
        %1568 = vmatprep.subr.bf16.mxu0 0
        %1569 = vmatpush1.bf16.msra.mxu0 %v1324
        %1570 = vmatprep.subr.bf16.mxu0 0
        %1571 = vmatpush1.bf16.msra.mxu0 %v1325
        %1572 = vmatprep.subr.bf16.mxu0 0
        %1573 = vmatpush1.bf16.msra.mxu0 %v1326
        %1574 = vmatprep.subr.bf16.mxu0 0
        %1575 = vmatpush1.bf16.msra.mxu0 %v1327
        %1576 = vmatprep.subr.bf16.mxu0 0
        %1577 = vmatpush1.bf16.msra.mxu0 %v1328
        %1578 = vmatprep.subr.bf16.mxu0 0
        %1579 = vmatpush1.bf16.msra.mxu0 %v1329
        %1580 = vmatprep.subr.bf16.mxu0 0
        %1581 = vmatpush1.bf16.msra.mxu0 %v1330
        %1582 = vmatprep.subr.bf16.mxu0 0
        %1583 = vmatpush1.bf16.msra.mxu0 %v1331
        %1584 = vmatprep.subr.bf16.mxu0 0
        %1585 = vmatpush1.bf16.msra.mxu0 %v1332
        %1586 = vmatprep.subr.bf16.mxu0 0
        %1587 = vmatpush1.bf16.msra.mxu0 %v1333
        %1588 = vmatprep.subr.bf16.mxu0 0
        %1589 = vmatpush1.bf16.msra.mxu0 %v1334
        %1590 = vmatprep.subr.bf16.mxu0 0
        %1591 = vmatpush1.bf16.msra.mxu0 %v1335
        %1592 = vmatprep.subr.bf16.mxu0 0
        %1593 = vmatpush1.bf16.msra.mxu0 %v1336
        %1594 = vmatprep.subr.bf16.mxu0 0
        %1595 = vmatpush1.bf16.msra.mxu0 %v1337
        %1596 = vmatprep.mubr.bf16.mxu0 %v827
        %1597 = vmatmul.mubr.bf16.gmra.mrb[0].mxu0 %v826
        %v1598 = vpop.f32.mrb[0].mxu0
        %v1599 = vadd.f32 %v1534, %v1598
        %v1600 = vpop.f32.mrb[0].mxu0
        %v1601 = vpop.f32.mrb[0].mxu0
        %v1602 = vadd.f32 %v1537, %v1601
        %v1603 = vpop.f32.mrb[0].mxu0
        %1604 = vmatprep.mubr.bf16.mxu0 %v836
        %1605 = vmatmul.mubr.bf16.gmra.mrb[0].mxu0 %v835
        %v1606 = vpop.f32.mrb[0].mxu0
        %v1607 = vadd.f32 %v1542, %v1606
        %v1608 = vpop.f32.mrb[0].mxu0
        %v1609 = vpop.f32.mrb[0].mxu0
        %v1610 = vadd.f32 %v1545, %v1609
        %v1611 = vpop.f32.mrb[0].mxu0
        %1612 = vmatprep.mubr.bf16.mxu0 %v845
        %1613 = vmatmul.mubr.bf16.gmra.mrb[0].mxu0 %v844
        %v1614 = vpop.f32.mrb[0].mxu0
        %v1615 = vadd.f32 %v1550, %v1614
        %v1616 = vpop.f32.mrb[0].mxu0
        %v1617 = vpop.f32.mrb[0].mxu0
        %v1618 = vadd.f32 %v1553, %v1617
        %v1619 = vpop.f32.mrb[0].mxu0
        %1620 = vmatprep.mubr.bf16.mxu0 %v854
        %1621 = vmatmul.mubr.bf16.gmra.mrb[0].mxu0 %v853
        %v1622 = vpop.f32.mrb[0].mxu0
        %v1623 = vadd.f32 %v1558, %v1622
        %v1624 = vpop.f32.mrb[0].mxu0
        %v1625 = vpop.f32.mrb[0].mxu0
        %v1626 = vadd.f32 %v1561, %v1625
        %v1627 = vpop.f32.mrb[0].mxu0
        %1628 = vdwg.mxu0
        %1629 = vmatprep.subr.bf16.mxu0 0
        %1630 = vmatpush1.bf16.msra.mxu0 %v1338
        %1631 = vmatprep.subr.bf16.mxu0 0
        %1632 = vmatpush1.bf16.msra.mxu0 %v1339
        %1633 = vmatprep.subr.bf16.mxu0 0
        %1634 = vmatpush1.bf16.msra.mxu0 %v1340
        %1635 = vmatprep.subr.bf16.mxu0 0
        %1636 = vmatpush1.bf16.msra.mxu0 %v1341
        %1637 = vmatprep.subr.bf16.mxu0 0
        %1638 = vmatpush1.bf16.msra.mxu0 %v1342
        %1639 = vmatprep.subr.bf16.mxu0 0
        %1640 = vmatpush1.bf16.msra.mxu0 %v1343
        %1641 = vmatprep.subr.bf16.mxu0 0
        %1642 = vmatpush1.bf16.msra.mxu0 %v1344
        %1643 = vmatprep.subr.bf16.mxu0 0
        %1644 = vmatpush1.bf16.msra.mxu0 %v1345
        %1645 = vmatprep.subr.bf16.mxu0 0
        %1646 = vmatpush1.bf16.msra.mxu0 %v1346
        %1647 = vmatprep.subr.bf16.mxu0 0
        %1648 = vmatpush1.bf16.msra.mxu0 %v1347
        %1649 = vmatprep.subr.bf16.mxu0 0
        %1650 = vmatpush1.bf16.msra.mxu0 %v1348
        %1651 = vmatprep.subr.bf16.mxu0 0
        %1652 = vmatpush1.bf16.msra.mxu0 %v1349
        %1653 = vmatprep.subr.bf16.mxu0 0
        %1654 = vmatpush1.bf16.msra.mxu0 %v1350
        %1655 = vmatprep.subr.bf16.mxu0 0
        %1656 = vmatpush1.bf16.msra.mxu0 %v1351
        %1657 = vmatprep.subr.bf16.mxu0 0
        %1658 = vmatpush1.bf16.msra.mxu0 %v1352
        %1659 = vmatprep.subr.bf16.mxu0 0
        %1660 = vmatpush1.bf16.msra.mxu0 %v1353
        %1661 = vmatprep.mubr.bf16.mxu0 %v829
        %1662 = vmatmul.mubr.bf16.gmra.mrb[0].mxu0 %v828
        %v1663 = vpop.f32.mrb[0].mxu0
        %v1664 = vadd.f32 %v1599, %v1663
        %v1665 = vpop.f32.mrb[0].mxu0
        %v1666 = vpop.f32.mrb[0].mxu0
        %v1667 = vadd.f32 %v1602, %v1666
        %v1668 = vpop.f32.mrb[0].mxu0
        %1669 = vmatprep.mubr.bf16.mxu0 %v838
        %1670 = vmatmul.mubr.bf16.gmra.mrb[0].mxu0 %v837
        %v1671 = vpop.f32.mrb[0].mxu0
        %v1672 = vadd.f32 %v1607, %v1671
        %v1673 = vpop.f32.mrb[0].mxu0
        %v1674 = vpop.f32.mrb[0].mxu0
        %v1675 = vadd.f32 %v1610, %v1674
        %v1676 = vpop.f32.mrb[0].mxu0
        %1677 = vmatprep.mubr.bf16.mxu0 %v847
        %1678 = vmatmul.mubr.bf16.gmra.mrb[0].mxu0 %v846
        %v1679 = vpop.f32.mrb[0].mxu0
        %v1680 = vadd.f32 %v1615, %v1679
        %v1681 = vpop.f32.mrb[0].mxu0
        %v1682 = vpop.f32.mrb[0].mxu0
        %v1683 = vadd.f32 %v1618, %v1682
        %v1684 = vpop.f32.mrb[0].mxu0
        %1685 = vmatprep.mubr.bf16.mxu0 %v856
        %1686 = vmatmul.mubr.bf16.gmra.mrb[0].mxu0 %v855
        %v1687 = vpop.f32.mrb[0].mxu0
        %v1688 = vadd.f32 %v1623, %v1687
        %v1689 = vpop.f32.mrb[0].mxu0
        %v1690 = vpop.f32.mrb[0].mxu0
        %v1691 = vadd.f32 %v1626, %v1690
        %v1692 = vpop.f32.mrb[0].mxu0
        %1693 = vdwg.mxu0
        %1694 = vmatprep.subr.bf16.mxu0 0
        %1695 = vmatpush1.bf16.msra.mxu0 %v1354
        %1696 = vmatprep.subr.bf16.mxu0 0
        %1697 = vmatpush1.bf16.msra.mxu0 %v1355
        %1698 = vmatprep.subr.bf16.mxu0 0
        %1699 = vmatpush1.bf16.msra.mxu0 %v1356
        %1700 = vmatprep.subr.bf16.mxu0 0
        %1701 = vmatpush1.bf16.msra.mxu0 %v1357
        %1702 = vmatprep.subr.bf16.mxu0 0
        %1703 = vmatpush1.bf16.msra.mxu0 %v1358
        %1704 = vmatprep.subr.bf16.mxu0 0
        %1705 = vmatpush1.bf16.msra.mxu0 %v1359
        %1706 = vmatprep.subr.bf16.mxu0 0
        %1707 = vmatpush1.bf16.msra.mxu0 %v1360
        %1708 = vmatprep.subr.bf16.mxu0 0
        %1709 = vmatpush1.bf16.msra.mxu0 %v1361
        %1710 = vmatprep.subr.bf16.mxu0 0
        %1711 = vmatpush1.bf16.msra.mxu0 0
        %1712 = vmatprep.subr.bf16.mxu0 0
        %1713 = vmatpush1.bf16.msra.mxu0 0
        %1714 = vmatprep.subr.bf16.mxu0 0
        %1715 = vmatpush1.bf16.msra.mxu0 0
        %1716 = vmatprep.subr.bf16.mxu0 0
        %1717 = vmatpush1.bf16.msra.mxu0 0
        %1718 = vmatprep.subr.bf16.mxu0 0
        %1719 = vmatpush1.bf16.msra.mxu0 0
        %1720 = vmatprep.subr.bf16.mxu0 0
        %1721 = vmatpush1.bf16.msra.mxu0 0
        %1722 = vmatprep.subr.bf16.mxu0 0
        %1723 = vmatpush1.bf16.msra.mxu0 0
        %1724 = vmatprep.subr.bf16.mxu0 0
        %1725 = vmatpush1.bf16.msra.mxu0 0
        %1726 = vmatprep.mubr.bf16.mxu0 0
        %1727 = vmatmul.mubr.bf16.gmra.mrb[0].mxu0 %v830
        %v1728 = vpop.f32.mrb[0].mxu0
        %v1729 = vadd.f32 %v1664, %v1728
        %v1730 = vpop.f32.mrb[0].mxu0
        %v1731 = vpop.f32.mrb[0].mxu0
        %v1732 = vadd.f32 %v1667, %v1731
        %v1733 = vpop.f32.mrb[0].mxu0
        %1734 = vmatprep.mubr.bf16.mxu0 0
        %1735 = vmatmul.mubr.bf16.gmra.mrb[0].mxu0 %v839
        %v1736 = vpop.f32.mrb[0].mxu0
        %v1737 = vadd.f32 %v1672, %v1736
        %v1738 = vpop.f32.mrb[0].mxu0
        %v1739 = vpop.f32.mrb[0].mxu0
        %v1740 = vadd.f32 %v1675, %v1739
        %v1741 = vpop.f32.mrb[0].mxu0
        %1742 = vmatprep.mubr.bf16.mxu0 0
        %1743 = vmatmul.mubr.bf16.gmra.mrb[0].mxu0 %v848
        %v1744 = vpop.f32.mrb[0].mxu0
        %v1745 = vadd.f32 %v1680, %v1744
        %v1746 = vpop.f32.mrb[0].mxu0
        %v1747 = vpop.f32.mrb[0].mxu0
        %v1748 = vadd.f32 %v1683, %v1747
        %v1749 = vpop.f32.mrb[0].mxu0
        %1750 = vmatprep.mubr.bf16.mxu0 0
        %1751 = vmatmul.mubr.bf16.gmra.mrb[0].mxu0 %v857
        %v1752 = vpop.f32.mrb[0].mxu0
        %v1753 = vadd.f32 %v1688, %v1752
        %v1754 = vpop.f32.mrb[0].mxu0
        %v1755 = vpop.f32.mrb[0].mxu0
        %v1756 = vadd.f32 %v1691, %v1755
        %v1757 = vpop.f32.mrb[0].mxu0
        %1758 = vdwg.mxu0
        %v1759 = vld [vmem:[%s5] sm:$0x1]
        %v1761 = vlaneseq
        %v1762 = vshrl.u32 %v1761, 7
        %v1763 = vsub.s32 0, %v1762
        %v1764 = vrot.slane %v1759, %v1763
        %v1766 = vmul.f32 %v1729, %v1764
        %v1767 = vmul.f32 %v1732, %v1764
        %v1768 = vmul.f32 %v1737, %v1764
        %v1769 = vmul.f32 %v1740, %v1764
        %v1770 = vmul.f32 %v1745, %v1764
        %v1771 = vmul.f32 %v1748, %v1764
        %v1772 = vmul.f32 %v1753, %v1764
        %v1773 = vmul.f32 %v1756, %v1764
        %v1774 = vld [vmem:[%s6] sm:$0x1]
        %v1776 = vlaneseq
        %v1777 = vshrl.u32 %v1776, 7
        %v1778 = vsub.s32 0, %v1777
        %v1779 = vrot.slane %v1774, %v1778
        %v1781 = vadd.f32 %v1766, %v1779
        %v1782 = vadd.f32 %v1767, %v1779
        %v1783 = vadd.f32 %v1768, %v1779
        %v1784 = vadd.f32 %v1769, %v1779
        %v1785 = vadd.f32 %v1770, %v1779
        %v1786 = vadd.f32 %v1771, %v1779
        %v1787 = vadd.f32 %v1772, %v1779
        %v1788 = vadd.f32 %v1773, %v1779
        %v1789 = vmax.f32 %v1781, 0.0
        %v1790 = vmax.f32 %v1782, 0.0
        %v1791 = vmax.f32 %v1783, 0.0
        %v1792 = vmax.f32 %v1784, 0.0
        %v1793 = vmax.f32 %v1785, 0.0
        %v1794 = vmax.f32 %v1786, 0.0
        %v1795 = vmax.f32 %v1787, 0.0
        %v1796 = vmax.f32 %v1788, 0.0
        %v1797 = vpack.c.bf16 %v1790, %v1789
        %v1798 = vpack.c.bf16 %v1792, %v1791
        %v1799 = vpack.c.bf16 %v1794, %v1793
        %v1800 = vpack.c.bf16 %v1796, %v1795
        %v1801 = vld [vmem:[%s7] sm:$0xf]
        %v1802 = vld [vmem:[%s7 + $0x4] sm:$0xf]
        %v1803 = vld [vmem:[%s7 + $0x8] sm:$0xf]
        %v1804 = vld [vmem:[%s7 + $0xc] sm:$0xf]
        %v1805 = vld [vmem:[%s7 + $0x10] sm:$0xf]
        %v1806 = vld [vmem:[%s7 + $0x14] sm:$0xf]
        %v1807 = vld [vmem:[%s7 + $0x18] sm:$0xf]
        %v1808 = vld [vmem:[%s7 + $0x1c] sm:$0xf]
        %v1809 = vld [vmem:[%s7 + $0x20] sm:$0xf]
        %v1810 = vld [vmem:[%s7 + $0x24] sm:$0xf]
        %v1811 = vld [vmem:[%s7 + $0x28] sm:$0xf]
        %v1812 = vld [vmem:[%s7 + $0x2c] sm:$0xf]
        %v1813 = vld [vmem:[%s7 + $0x30] sm:$0xf]
        %v1814 = vld [vmem:[%s7 + $0x34] sm:$0xf]
        %v1815 = vld [vmem:[%s7 + $0x38] sm:$0xf]
        %v1816 = vld [vmem:[%s7 + $0x3c] sm:$0xf]
        %v1833 = vunpack.c.l.b16 %v1801
        %v1834 = vunpack.c.l.b16 %v1802
        %v1835 = vunpack.c.l.b16 %v1803
        %v1836 = vunpack.c.l.b16 %v1804
        %v1837 = vunpack.c.l.b16 %v1805
        %v1838 = vunpack.c.l.b16 %v1806
        %v1839 = vunpack.c.l.b16 %v1807
        %v1840 = vunpack.c.l.b16 %v1808
        %v1841 = vunpack.c.l.b16 %v1809
        %v1842 = vunpack.c.l.b16 %v1810
        %v1843 = vunpack.c.l.b16 %v1811
        %v1844 = vunpack.c.l.b16 %v1812
        %v1845 = vunpack.c.l.b16 %v1813
        %v1846 = vunpack.c.l.b16 %v1814
        %v1847 = vunpack.c.l.b16 %v1815
        %v1848 = vunpack.c.l.b16 %v1816
        %v1849 = vpack.c.b16 %v1834, %v1833
        %v1850 = vpack.c.b16 %v1836, %v1835
        %v1851 = vpack.c.b16 %v1838, %v1837
        %v1852 = vpack.c.b16 %v1840, %v1839
        %v1853 = vpack.c.b16 %v1842, %v1841
        %v1854 = vpack.c.b16 %v1844, %v1843
        %v1855 = vpack.c.b16 %v1846, %v1845
        %v1856 = vpack.c.b16 %v1848, %v1847
        %1865 = vmatprep.subr.bf16.mxu0 0
        %1866 = vmatpush1.bf16.msra.mxu0 %v1849
        %1867 = vmatprep.subr.bf16.mxu0 0
        %1868 = vmatpush1.bf16.msra.mxu0 %v1850
        %1869 = vmatprep.subr.bf16.mxu0 0
        %1870 = vmatpush1.bf16.msra.mxu0 %v1851
        %1871 = vmatprep.subr.bf16.mxu0 0
        %1872 = vmatpush1.bf16.msra.mxu0 %v1852
        %1873 = vmatprep.subr.bf16.mxu0 0
        %1874 = vmatpush1.bf16.msra.mxu0 %v1853
        %1875 = vmatprep.subr.bf16.mxu0 0
        %1876 = vmatpush1.bf16.msra.mxu0 %v1854
        %1877 = vmatprep.subr.bf16.mxu0 0
        %1878 = vmatpush1.bf16.msra.mxu0 %v1855
        %1879 = vmatprep.subr.bf16.mxu0 0
        %1880 = vmatpush1.bf16.msra.mxu0 %v1856
        %1881 = vmatprep.subr.bf16.mxu0 0
        %1882 = vmatpush1.bf16.msra.mxu0 0
        %1883 = vmatprep.subr.bf16.mxu0 0
        %1884 = vmatpush1.bf16.msra.mxu0 0
        %1885 = vmatprep.subr.bf16.mxu0 0
        %1886 = vmatpush1.bf16.msra.mxu0 0
        %1887 = vmatprep.subr.bf16.mxu0 0
        %1888 = vmatpush1.bf16.msra.mxu0 0
        %1889 = vmatprep.subr.bf16.mxu0 0
        %1890 = vmatpush1.bf16.msra.mxu0 0
        %1891 = vmatprep.subr.bf16.mxu0 0
        %1892 = vmatpush1.bf16.msra.mxu0 0
        %1893 = vmatprep.subr.bf16.mxu0 0
        %1894 = vmatpush1.bf16.msra.mxu0 0
        %1895 = vmatprep.subr.bf16.mxu0 0
        %1896 = vmatpush1.bf16.msra.mxu0 0
        %1897 = vmatprep.mubr.bf16.mxu0 0
        %1898 = vmatmul.mubr.bf16.gmra.mrb[0].mxu0 %v1797
        %v1899 = vpop.f32.mrb[0].mxu0
        %v1900 = vadd.f32 0.0, %v1899
        %v1901 = vpop.f32.mrb[0].mxu0
        %v1902 = vpop.f32.mrb[0].mxu0
        %v1903 = vadd.f32 0.0, %v1902
        %v1904 = vpop.f32.mrb[0].mxu0
        %1905 = vmatprep.mubr.bf16.mxu0 0
        %1906 = vmatmul.mubr.bf16.gmra.mrb[0].mxu0 %v1798
        %v1907 = vpop.f32.mrb[0].mxu0
        %v1908 = vadd.f32 0.0, %v1907
        %v1909 = vpop.f32.mrb[0].mxu0
        %v1910 = vpop.f32.mrb[0].mxu0
        %v1911 = vadd.f32 0.0, %v1910
        %v1912 = vpop.f32.mrb[0].mxu0
        %1913 = vmatprep.mubr.bf16.mxu0 0
        %1914 = vmatmul.mubr.bf16.gmra.mrb[0].mxu0 %v1799
        %v1915 = vpop.f32.mrb[0].mxu0
        %v1916 = vadd.f32 0.0, %v1915
        %v1917 = vpop.f32.mrb[0].mxu0
        %v1918 = vpop.f32.mrb[0].mxu0
        %v1919 = vadd.f32 0.0, %v1918
        %v1920 = vpop.f32.mrb[0].mxu0
        %1921 = vmatprep.mubr.bf16.mxu0 0
        %1922 = vmatmul.mubr.bf16.gmra.mrb[0].mxu0 %v1800
        %v1923 = vpop.f32.mrb[0].mxu0
        %v1924 = vadd.f32 0.0, %v1923
        %v1925 = vpop.f32.mrb[0].mxu0
        %v1926 = vpop.f32.mrb[0].mxu0
        %v1927 = vadd.f32 0.0, %v1926
        %v1928 = vpop.f32.mrb[0].mxu0
        %1929 = vdwg.mxu0
        %v1930 = vld [vmem:[%s8] sm:$0x1]
        %v1932 = vlaneseq
        %v1933 = vshrl.u32 %v1932, 7
        %v1934 = vsub.s32 0, %v1933
        %v1935 = vrot.slane %v1930, %v1934
        %v1937 = vmul.f32 %v1900, %v1935
        %v1938 = vmul.f32 %v1903, %v1935
        %v1939 = vmul.f32 %v1908, %v1935
        %v1940 = vmul.f32 %v1911, %v1935
        %v1941 = vmul.f32 %v1916, %v1935
        %v1942 = vmul.f32 %v1919, %v1935
        %v1943 = vmul.f32 %v1924, %v1935
        %v1944 = vmul.f32 %v1927, %v1935
        %v1945 = vld [vmem:[%s9] sm:$0x1]
        %v1947 = vlaneseq
        %v1948 = vshrl.u32 %v1947, 7
        %v1949 = vsub.s32 0, %v1948
        %v1950 = vrot.slane %v1945, %v1949
        %v1952 = vadd.f32 %v1937, %v1950
        %v1953 = vadd.f32 %v1938, %v1950
        %v1954 = vadd.f32 %v1939, %v1950
        %v1955 = vadd.f32 %v1940, %v1950
        %v1956 = vadd.f32 %v1941, %v1950
        %v1957 = vadd.f32 %v1942, %v1950
        %v1958 = vadd.f32 %v1943, %v1950
        %v1959 = vadd.f32 %v1944, %v1950
        %v1960 = vadd.f32 %v1952, %v1953
        %v1961 = vadd.f32 %v1960, %v1954
        %v1962 = vadd.f32 %v1961, %v1955
        %v1963 = vadd.f32 %v1962, %v1956
        %v1964 = vadd.f32 %v1963, %v1957
        %v1965 = vadd.f32 %v1964, %v1958
        %v1966 = vadd.f32 %v1965, %v1959
        %v1967 = vrot.slane %v1966, 4
        %v1968 = vadd.f32 %v1966, %v1967
        %v1969 = vrot.slane %v1968, 2
        %v1970 = vadd.f32 %v1968, %v1969
        %v1971 = vrot.slane %v1970, 1
        %v1972 = vadd.f32 %v1970, %v1971
        %v1973 = vrcp.pop 64.0
        %v1974 = vmul.f32 %v1972, %v1973
        %v1975 = vmax.f32 %v1952, %v1956
        %v1976 = vmax.f32 %v1953, %v1957
        %v1977 = vmax.f32 %v1954, %v1958
        %v1978 = vmax.f32 %v1955, %v1959
        %v1979 = vmax.f32 %v1975, %v1976
        %v1980 = vmax.f32 %v1977, %v1978
        %v1981 = vmax.f32 %v1979, %v1980
        %v1982 = vrot.slane %v1981, 4
        %v1983 = vmax.f32 %v1981, %v1982
        %v1984 = vrot.slane %v1983, 2
        %v1985 = vmax.f32 %v1983, %v1984
        %v1986 = vrot.slane %v1985, 1
        %v1987 = vmax.f32 %v1985, %v1986
        %vm1988 = vcmask 1040384
        %v1989 = vsel %vm1988, %v1974, %v1987
        %v1990 = vpack.c.bf16 %v1989, %v1989
        %v1991 = vld [vmem:[%s10] sm:$0xf]
        %v1992 = vld [vmem:[%s10 + $0x4] sm:$0xf]
        %v1993 = vld [vmem:[%s10 + $0x8] sm:$0xf]
        %v1994 = vld [vmem:[%s10 + $0xc] sm:$0xf]
        %v1995 = vld [vmem:[%s10 + $0x10] sm:$0xf]
        %v1996 = vld [vmem:[%s10 + $0x14] sm:$0xf]
        %v1997 = vld [vmem:[%s10 + $0x18] sm:$0xf]
        %v1998 = vld [vmem:[%s10 + $0x1c] sm:$0xf]
        %v1999 = vld [vmem:[%s10 + $0x20] sm:$0xf]
        %v2000 = vld [vmem:[%s10 + $0x24] sm:$0xf]
        %v2001 = vld [vmem:[%s10 + $0x28] sm:$0xf]
        %v2002 = vld [vmem:[%s10 + $0x2c] sm:$0xf]
        %v2003 = vld [vmem:[%s10 + $0x30] sm:$0xf]
        %v2004 = vld [vmem:[%s10 + $0x34] sm:$0xf]
        %v2005 = vld [vmem:[%s10 + $0x38] sm:$0xf]
        %v2006 = vld [vmem:[%s10 + $0x3c] sm:$0xf]
        %v2007 = vld [vmem:[%s11] sm:$0x1]
        %v2009 = vlaneseq
        %v2010 = vshrl.u32 %v2009, 7
        %v2011 = vsub.s32 0, %v2010
        %v2012 = vrot.slane %v2007, %v2011
        %v2030 = vunpack.c.l.b16 %v1991
        %v2031 = vunpack.c.l.b16 %v1992
        %v2032 = vunpack.c.l.b16 %v1993
        %v2033 = vunpack.c.l.b16 %v1994
        %v2034 = vunpack.c.l.b16 %v1995
        %v2035 = vunpack.c.l.b16 %v1996
        %v2036 = vunpack.c.l.b16 %v1997
        %v2037 = vunpack.c.l.b16 %v1998
        %v2038 = vunpack.c.l.b16 %v1999
        %v2039 = vunpack.c.l.b16 %v2000
        %v2040 = vunpack.c.l.b16 %v2001
        %v2041 = vunpack.c.l.b16 %v2002
        %v2042 = vunpack.c.l.b16 %v2003
        %v2043 = vunpack.c.l.b16 %v2004
        %v2044 = vunpack.c.l.b16 %v2005
        %v2045 = vunpack.c.l.b16 %v2006
        %v2046 = vpack.c.b16 %v2031, %v2030
        %v2047 = vpack.c.b16 %v2033, %v2032
        %v2048 = vpack.c.b16 %v2035, %v2034
        %v2049 = vpack.c.b16 %v2037, %v2036
        %v2050 = vpack.c.b16 %v2039, %v2038
        %v2051 = vpack.c.b16 %v2041, %v2040
        %v2052 = vpack.c.b16 %v2043, %v2042
        %v2053 = vpack.c.b16 %v2045, %v2044
        %2062 = vmatprep.subr.bf16.mxu0 0
        %2063 = vmatpush1.bf16.msra.mxu0 %v2046
        %2064 = vmatprep.subr.bf16.mxu0 0
        %2065 = vmatpush1.bf16.msra.mxu0 %v2047
        %2066 = vmatprep.subr.bf16.mxu0 0
        %2067 = vmatpush1.bf16.msra.mxu0 %v2048
        %2068 = vmatprep.subr.bf16.mxu0 0
        %2069 = vmatpush1.bf16.msra.mxu0 %v2049
        %2070 = vmatprep.subr.bf16.mxu0 0
        %2071 = vmatpush1.bf16.msra.mxu0 %v2050
        %2072 = vmatprep.subr.bf16.mxu0 0
        %2073 = vmatpush1.bf16.msra.mxu0 %v2051
        %2074 = vmatprep.subr.bf16.mxu0 0
        %2075 = vmatpush1.bf16.msra.mxu0 %v2052
        %2076 = vmatprep.subr.bf16.mxu0 0
        %2077 = vmatpush1.bf16.msra.mxu0 %v2053
        %2078 = vmatprep.subr.bf16.mxu0 0
        %2079 = vmatpush1.bf16.msra.mxu0 0
        %2080 = vmatprep.subr.bf16.mxu0 0
        %2081 = vmatpush1.bf16.msra.mxu0 0
        %2082 = vmatprep.subr.bf16.mxu0 0
        %2083 = vmatpush1.bf16.msra.mxu0 0
        %2084 = vmatprep.subr.bf16.mxu0 0
        %2085 = vmatpush1.bf16.msra.mxu0 0
        %2086 = vmatprep.subr.bf16.mxu0 0
        %2087 = vmatpush1.bf16.msra.mxu0 0
        %2088 = vmatprep.subr.bf16.mxu0 0
        %2089 = vmatpush1.bf16.msra.mxu0 0
        %2090 = vmatprep.subr.bf16.mxu0 0
        %2091 = vmatpush1.bf16.msra.mxu0 0
        %2092 = vmatprep.subr.bf16.mxu0 0
        %2093 = vmatpush1.bf16.msra.mxu0 0
        %2094 = vmatprep.mubr.bf16.mxu0 0
        %2095 = vmatmul.mubr.bf16.gmra.mrb[0].mxu0 %v1990
        %v2096 = vpop.f32.mrb[0].mxu0
        %v2097 = vadd.f32 %v2012, %v2096
        %v2098 = vpop.f32.mrb[0].mxu0
        %v2099 = vpop.f32.mrb[0].mxu0
        %v2100 = vpop.f32.mrb[0].mxu0
        %2101 = vdwg.mxu0
        %v2102 = vmax.f32 %v2097, 0.0
        %v2103 = vpack.c.bf16 %v2102, %v2102
        %v2104 = vld [vmem:[%s12] sm:$0xf]
        %v2105 = vld [vmem:[%s12 + $0x4] sm:$0xf]
        %v2106 = vld [vmem:[%s12 + $0x8] sm:$0xf]
        %v2107 = vld [vmem:[%s12 + $0xc] sm:$0xf]
        %v2108 = vld [vmem:[%s12 + $0x10] sm:$0xf]
        %v2109 = vld [vmem:[%s12 + $0x14] sm:$0xf]
        %v2110 = vld [vmem:[%s12 + $0x18] sm:$0xf]
        %v2111 = vld [vmem:[%s12 + $0x1c] sm:$0xf]
        %v2112 = vld [vmem:[%s12 + $0x20] sm:$0xf]
        %v2113 = vld [vmem:[%s12 + $0x24] sm:$0xf]
        %v2114 = vld [vmem:[%s12 + $0x28] sm:$0xf]
        %v2115 = vld [vmem:[%s12 + $0x2c] sm:$0xf]
        %v2116 = vld [vmem:[%s12 + $0x30] sm:$0xf]
        %v2117 = vld [vmem:[%s12 + $0x34] sm:$0xf]
        %v2118 = vld [vmem:[%s12 + $0x38] sm:$0xf]
        %v2119 = vld [vmem:[%s12 + $0x3c] sm:$0xf]
        %v2120 = vld [vmem:[%s13] sm:$0x1]
        %v2122 = vlaneseq
        %v2123 = vshrl.u32 %v2122, 7
        %v2124 = vsub.s32 0, %v2123
        %v2125 = vrot.slane %v2120, %v2124
        %v2143 = vunpack.c.l.b16 %v2104
        %v2144 = vunpack.c.l.b16 %v2105
        %v2145 = vunpack.c.l.b16 %v2106
        %v2146 = vunpack.c.l.b16 %v2107
        %v2147 = vunpack.c.l.b16 %v2108
        %v2148 = vunpack.c.l.b16 %v2109
        %v2149 = vunpack.c.l.b16 %v2110
        %v2150 = vunpack.c.l.b16 %v2111
        %v2151 = vunpack.c.l.b16 %v2112
        %v2152 = vunpack.c.l.b16 %v2113
        %v2153 = vunpack.c.l.b16 %v2114
        %v2154 = vunpack.c.l.b16 %v2115
        %v2155 = vunpack.c.l.b16 %v2116
        %v2156 = vunpack.c.l.b16 %v2117
        %v2157 = vunpack.c.l.b16 %v2118
        %v2158 = vunpack.c.l.b16 %v2119
        %v2159 = vpack.c.b16 %v2144, %v2143
        %v2160 = vpack.c.b16 %v2146, %v2145
        %v2161 = vpack.c.b16 %v2148, %v2147
        %v2162 = vpack.c.b16 %v2150, %v2149
        %v2163 = vpack.c.b16 %v2152, %v2151
        %v2164 = vpack.c.b16 %v2154, %v2153
        %v2165 = vpack.c.b16 %v2156, %v2155
        %v2166 = vpack.c.b16 %v2158, %v2157
        %2175 = vmatprep.subr.bf16.mxu0 0
        %2176 = vmatpush1.bf16.msra.mxu0 %v2159
        %2177 = vmatprep.subr.bf16.mxu0 0
        %2178 = vmatpush1.bf16.msra.mxu0 %v2160
        %2179 = vmatprep.subr.bf16.mxu0 0
        %2180 = vmatpush1.bf16.msra.mxu0 %v2161
        %2181 = vmatprep.subr.bf16.mxu0 0
        %2182 = vmatpush1.bf16.msra.mxu0 %v2162
        %2183 = vmatprep.subr.bf16.mxu0 0
        %2184 = vmatpush1.bf16.msra.mxu0 %v2163
        %2185 = vmatprep.subr.bf16.mxu0 0
        %2186 = vmatpush1.bf16.msra.mxu0 %v2164
        %2187 = vmatprep.subr.bf16.mxu0 0
        %2188 = vmatpush1.bf16.msra.mxu0 %v2165
        %2189 = vmatprep.subr.bf16.mxu0 0
        %2190 = vmatpush1.bf16.msra.mxu0 %v2166
        %2191 = vmatprep.subr.bf16.mxu0 0
        %2192 = vmatpush1.bf16.msra.mxu0 0
        %2193 = vmatprep.subr.bf16.mxu0 0
        %2194 = vmatpush1.bf16.msra.mxu0 0
        %2195 = vmatprep.subr.bf16.mxu0 0
        %2196 = vmatpush1.bf16.msra.mxu0 0
        %2197 = vmatprep.subr.bf16.mxu0 0
        %2198 = vmatpush1.bf16.msra.mxu0 0
        %2199 = vmatprep.subr.bf16.mxu0 0
        %2200 = vmatpush1.bf16.msra.mxu0 0
        %2201 = vmatprep.subr.bf16.mxu0 0
        %2202 = vmatpush1.bf16.msra.mxu0 0
        %2203 = vmatprep.subr.bf16.mxu0 0
        %2204 = vmatpush1.bf16.msra.mxu0 0
        %2205 = vmatprep.subr.bf16.mxu0 0
        %2206 = vmatpush1.bf16.msra.mxu0 0
        %2207 = vmatprep.mubr.bf16.mxu0 0
        %2208 = vmatmul.mubr.bf16.gmra.mrb[0].mxu0 %v2103
        %v2209 = vpop.f32.mrb[0].mxu0
        %v2210 = vadd.f32 %v2125, %v2209
        %v2211 = vpop.f32.mrb[0].mxu0
        %v2212 = vpop.f32.mrb[0].mxu0
        %v2213 = vpop.f32.mrb[0].mxu0
        %2214 = vdwg.mxu0
        %v2216 = vrot.slane %v2210, 1
        %v2218 = vadd.f32 %v2210, %v2216
        %v2219 = vsub.f32 0.0, %v2218
        %v2220 = vmul.f32 %v2219, 1.442695
        %v2221 = vpow.pop %v2220
        %v2222 = vadd.f32 %v2221, 1.0
        %v2223 = vrcp.pop %v2222
        %v2224 = vlaneseq
        %v2225 = vshrl.u32 %v2224, 7
        %v2226 = vsub.s32 0, %v2225
        %v2227 = vrot.slane %v2223, %v2226
        %v2228 = vmul.f32 %v1952, %v2227
        %v2229 = vmul.f32 %v1953, %v2227
        %v2230 = vmul.f32 %v1954, %v2227
        %v2231 = vmul.f32 %v1955, %v2227
        %v2232 = vmul.f32 %v1956, %v2227
        %v2233 = vmul.f32 %v1957, %v2227
        %v2234 = vmul.f32 %v1958, %v2227
        %v2235 = vmul.f32 %v1959, %v2227
        %2236 = vadd.xlane.f32.xlu0 %v2228
        %v2237 = vpop.xlane.xlu0 %2236
        %2238 = vadd.xlane.f32.xlu0 %v2229
        %v2239 = vpop.xlane.xlu0 %2238
        %2240 = vadd.xlane.f32.xlu0 %v2230
        %v2241 = vpop.xlane.xlu0 %2240
        %2242 = vadd.xlane.f32.xlu0 %v2231
        %v2243 = vpop.xlane.xlu0 %2242
        %2244 = vadd.xlane.f32.xlu0 %v2232
        %v2245 = vpop.xlane.xlu0 %2244
        %2246 = vadd.xlane.f32.xlu0 %v2233
        %v2247 = vpop.xlane.xlu0 %2246
        %2248 = vadd.xlane.f32.xlu0 %v2234
        %v2249 = vpop.xlane.xlu0 %2248
        %2250 = vadd.xlane.f32.xlu0 %v2235
        %v2251 = vpop.xlane.xlu0 %2250
        %v2252 = vmul.f32 %v2237, 0.015625
        %v2253 = vmul.f32 %v2239, 0.015625
        %v2254 = vmul.f32 %v2241, 0.015625
        %v2255 = vmul.f32 %v2243, 0.015625
        %v2256 = vmul.f32 %v2245, 0.015625
        %v2257 = vmul.f32 %v2247, 0.015625
        %v2258 = vmul.f32 %v2249, 0.015625
        %v2259 = vmul.f32 %v2251, 0.015625
        %v2260 = vlaneseq
        %v2261 = vand.u32 %v2260, 127
        %vm2262 = vcmp.lt.s32.totalorder %v2261, 64
        %v2263 = vsel %vm2262, %v2228, -1e+30
        %v2264 = vsel %vm2262, %v2229, -1e+30
        %v2265 = vsel %vm2262, %v2230, -1e+30
        %v2266 = vsel %vm2262, %v2231, -1e+30
        %v2267 = vsel %vm2262, %v2232, -1e+30
        %v2268 = vsel %vm2262, %v2233, -1e+30
        %v2269 = vsel %vm2262, %v2234, -1e+30
        %v2270 = vsel %vm2262, %v2235, -1e+30
        %2271 = vmax.xlane.f32.xlu0 %v2263
        %v2272 = vpop.xlane.xlu0 %2271
        %2273 = vmax.xlane.f32.xlu0 %v2264
        %v2274 = vpop.xlane.xlu0 %2273
        %2275 = vmax.xlane.f32.xlu0 %v2265
        %v2276 = vpop.xlane.xlu0 %2275
        %2277 = vmax.xlane.f32.xlu0 %v2266
        %v2278 = vpop.xlane.xlu0 %2277
        %2279 = vmax.xlane.f32.xlu0 %v2267
        %v2280 = vpop.xlane.xlu0 %2279
        %2281 = vmax.xlane.f32.xlu0 %v2268
        %v2282 = vpop.xlane.xlu0 %2281
        %2283 = vmax.xlane.f32.xlu0 %v2269
        %v2284 = vpop.xlane.xlu0 %2283
        %2285 = vmax.xlane.f32.xlu0 %v2270
        %v2286 = vpop.xlane.xlu0 %2285
        %v2295 = vlaneseq
        %v2296 = vshrl.u32 %v2295, 7
        %v2297 = vsub.s32 %v2261, %v2296
        %v2298 = vrot.slane %v2252, %v2297
        %v2299 = vlaneseq
        %v2300 = vshrl.u32 %v2299, 7
        %v2301 = vsub.s32 %v2261, %v2300
        %v2302 = vrot.slane %v2253, %v2301
        %v2303 = vlaneseq
        %v2304 = vshrl.u32 %v2303, 7
        %v2305 = vsub.s32 %v2261, %v2304
        %v2306 = vrot.slane %v2254, %v2305
        %v2307 = vlaneseq
        %v2308 = vshrl.u32 %v2307, 7
        %v2309 = vsub.s32 %v2261, %v2308
        %v2310 = vrot.slane %v2255, %v2309
        %v2311 = vlaneseq
        %v2312 = vshrl.u32 %v2311, 7
        %v2313 = vsub.s32 %v2261, %v2312
        %v2314 = vrot.slane %v2256, %v2313
        %v2315 = vlaneseq
        %v2316 = vshrl.u32 %v2315, 7
        %v2317 = vsub.s32 %v2261, %v2316
        %v2318 = vrot.slane %v2257, %v2317
        %v2319 = vlaneseq
        %v2320 = vshrl.u32 %v2319, 7
        %v2321 = vsub.s32 %v2261, %v2320
        %v2322 = vrot.slane %v2258, %v2321
        %v2323 = vlaneseq
        %v2324 = vshrl.u32 %v2323, 7
        %v2325 = vsub.s32 %v2261, %v2324
        %v2326 = vrot.slane %v2259, %v2325
        %vm2327 = vcmask 1044484
        %v2328 = vsel %vm2327, %v2302, %v2298
        %vm2329 = vcmask 1045509
        %v2330 = vsel %vm2329, %v2306, %v2328
        %vm2331 = vcmask 1046534
        %v2332 = vsel %vm2331, %v2310, %v2330
        %vm2333 = vcmask 1047559
        %v2334 = vsel %vm2333, %v2314, %v2332
        %vm2335 = vcmask 1041409
        %v2336 = vsel %vm2335, %v2322, %v2318
        %vm2337 = vcmask 1042434
        %v2338 = vsel %vm2337, %v2326, %v2336
        %vm2341 = vcmask 1042432
        %v2342 = vsel %vm2341, 0.0, %v2334
        %v2343 = vsel %vm2341, %v2338, 0.0
        %2346 = vrot.lane.b32.xlu0 %v2342, 3
        %v2347 = vpop.permute.xlu0 %2346
        %2348 = vrot.lane.b32.xlu0 %v2343, 3
        %v2349 = vpop.permute.xlu0 %2348
        %vm2352 = vcmask 23552
        %v2353 = vsel %vm2352, 0.0, %v2347
        %v2354 = vsel %vm2352, 0.0, %v2349
        %vm2355 = vcmask 89088
        %v2356 = vsel %vm2355, %v2353, 0.0
        %v2357 = vsel %vm2355, %v2354, 0.0
        %v2366 = vlaneseq
        %v2367 = vshrl.u32 %v2366, 7
        %v2368 = vsub.s32 %v2261, %v2367
        %v2369 = vrot.slane %v2272, %v2368
        %v2370 = vlaneseq
        %v2371 = vshrl.u32 %v2370, 7
        %v2372 = vsub.s32 %v2261, %v2371
        %v2373 = vrot.slane %v2274, %v2372
        %v2374 = vlaneseq
        %v2375 = vshrl.u32 %v2374, 7
        %v2376 = vsub.s32 %v2261, %v2375
        %v2377 = vrot.slane %v2276, %v2376
        %v2378 = vlaneseq
        %v2379 = vshrl.u32 %v2378, 7
        %v2380 = vsub.s32 %v2261, %v2379
        %v2381 = vrot.slane %v2278, %v2380
        %v2382 = vlaneseq
        %v2383 = vshrl.u32 %v2382, 7
        %v2384 = vsub.s32 %v2261, %v2383
        %v2385 = vrot.slane %v2280, %v2384
        %v2386 = vlaneseq
        %v2387 = vshrl.u32 %v2386, 7
        %v2388 = vsub.s32 %v2261, %v2387
        %v2389 = vrot.slane %v2282, %v2388
        %v2390 = vlaneseq
        %v2391 = vshrl.u32 %v2390, 7
        %v2392 = vsub.s32 %v2261, %v2391
        %v2393 = vrot.slane %v2284, %v2392
        %v2394 = vlaneseq
        %v2395 = vshrl.u32 %v2394, 7
        %v2396 = vsub.s32 %v2261, %v2395
        %v2397 = vrot.slane %v2286, %v2396
        %v2398 = vsel %vm2327, %v2373, %v2369
        %v2399 = vsel %vm2329, %v2377, %v2398
        %v2400 = vsel %vm2331, %v2381, %v2399
        %v2401 = vsel %vm2333, %v2385, %v2400
        %v2402 = vsel %vm2335, %v2393, %v2389
        %v2403 = vsel %vm2337, %v2397, %v2402
        %v2406 = vsel %vm2341, 0.0, %v2401
        %v2407 = vsel %vm2341, %v2403, 0.0
        %2410 = vrot.lane.b32.xlu0 %v2406, 3
        %v2411 = vpop.permute.xlu0 %2410
        %2412 = vrot.lane.b32.xlu0 %v2407, 3
        %v2413 = vpop.permute.xlu0 %2412
        %v2416 = vsel %vm2352, 0.0, %v2411
        %v2417 = vsel %vm2352, 0.0, %v2413
        %v2418 = vsel %vm2355, %v2416, 0.0
        %v2419 = vsel %vm2355, %v2417, 0.0
        %s2420 = sld [smem:[#allocation4]]
        %v2421 = vstv %s2420
        %v2422 = vmul.f32 %v2356, %v2421
        %v2423 = vadd.f32 %v2422, 0.0
        %s2424 = sld [smem:[#allocation4 + $0x31]]
        %v2425 = vstv %s2424
        %v2426 = vmul.f32 %v2418, %v2425
        %v2427 = vadd.f32 %v2423, %v2426
        %s2428 = sld [smem:[#allocation4 + $0x1]]
        %v2429 = vstv %s2428
        %v2430 = vmul.f32 %v2356, %v2429
        %2432 = vrot.lane.b32.xlu0 %v2430, 127
        %v2433 = vpop.permute.xlu0 %2432
        %v2435 = vadd.f32 %v2427, %v2433
        %s2436 = sld [smem:[#allocation4 + $0x32]]
        %v2437 = vstv %s2436
        %v2438 = vmul.f32 %v2418, %v2437
        %2440 = vrot.lane.b32.xlu0 %v2438, 127
        %v2441 = vpop.permute.xlu0 %2440
        %v2443 = vadd.f32 %v2435, %v2441
        %s2444 = sld [smem:[#allocation4 + $0x2]]
        %v2445 = vstv %s2444
        %v2446 = vmul.f32 %v2356, %v2445
        %2448 = vrot.lane.b32.xlu0 %v2446, 126
        %v2449 = vpop.permute.xlu0 %2448
        %v2451 = vadd.f32 %v2443, %v2449
        %s2452 = sld [smem:[#allocation4 + $0x33]]
        %v2453 = vstv %s2452
        %v2454 = vmul.f32 %v2418, %v2453
        %2456 = vrot.lane.b32.xlu0 %v2454, 126
        %v2457 = vpop.permute.xlu0 %2456
        %v2459 = vadd.f32 %v2451, %v2457
        %s2460 = sld [smem:[#allocation4 + $0x3]]
        %v2461 = vstv %s2460
        %v2462 = vmul.f32 %v2356, %v2461
        %2464 = vrot.lane.b32.xlu0 %v2462, 125
        %v2465 = vpop.permute.xlu0 %2464
        %v2467 = vadd.f32 %v2459, %v2465
        %s2468 = sld [smem:[#allocation4 + $0x34]]
        %v2469 = vstv %s2468
        %v2470 = vmul.f32 %v2418, %v2469
        %2472 = vrot.lane.b32.xlu0 %v2470, 125
        %v2473 = vpop.permute.xlu0 %2472
        %v2475 = vadd.f32 %v2467, %v2473
        %s2476 = sld [smem:[#allocation4 + $0x4]]
        %v2477 = vstv %s2476
        %v2478 = vmul.f32 %v2356, %v2477
        %2480 = vrot.lane.b32.xlu0 %v2478, 124
        %v2481 = vpop.permute.xlu0 %2480
        %v2483 = vadd.f32 %v2475, %v2481
        %s2484 = sld [smem:[#allocation4 + $0x35]]
        %v2485 = vstv %s2484
        %v2486 = vmul.f32 %v2418, %v2485
        %2488 = vrot.lane.b32.xlu0 %v2486, 124
        %v2489 = vpop.permute.xlu0 %2488
        %v2491 = vadd.f32 %v2483, %v2489
        %s2492 = sld [smem:[#allocation4 + $0x5]]
        %v2493 = vstv %s2492
        %v2494 = vmul.f32 %v2356, %v2493
        %2496 = vrot.lane.b32.xlu0 %v2494, 123
        %v2497 = vpop.permute.xlu0 %2496
        %v2499 = vadd.f32 %v2491, %v2497
        %s2500 = sld [smem:[#allocation4 + $0x36]]
        %v2501 = vstv %s2500
        %v2502 = vmul.f32 %v2418, %v2501
        %2504 = vrot.lane.b32.xlu0 %v2502, 123
        %v2505 = vpop.permute.xlu0 %2504
        %v2507 = vadd.f32 %v2499, %v2505
        %s2508 = sld [smem:[#allocation4 + $0x6]]
        %v2509 = vstv %s2508
        %v2510 = vmul.f32 %v2356, %v2509
        %2512 = vrot.lane.b32.xlu0 %v2510, 122
        %v2513 = vpop.permute.xlu0 %2512
        %v2515 = vadd.f32 %v2507, %v2513
        %s2516 = sld [smem:[#allocation4 + $0x37]]
        %v2517 = vstv %s2516
        %v2518 = vmul.f32 %v2418, %v2517
        %2520 = vrot.lane.b32.xlu0 %v2518, 122
        %v2521 = vpop.permute.xlu0 %2520
        %v2523 = vadd.f32 %v2515, %v2521
        %s2524 = sld [smem:[#allocation4 + $0x7]]
        %v2525 = vstv %s2524
        %v2526 = vmul.f32 %v2356, %v2525
        %v2527 = vmul.f32 %v2357, %v2525
        %vm2530 = vcmask 1046528
        %v2531 = vrot.slane %v2526, 1
        %v2532 = vrot.slane %v2527, 1
        %v2533 = vsel %vm2530, %v2531, %v2532
        %v2535 = vadd.f32 %v2523, %v2533
        %s2536 = sld [smem:[#allocation4 + $0x38]]
        %v2537 = vstv %s2536
        %v2538 = vmul.f32 %v2418, %v2537
        %v2539 = vmul.f32 %v2419, %v2537
        %v2542 = vrot.slane %v2538, 1
        %v2543 = vrot.slane %v2539, 1
        %v2544 = vsel %vm2530, %v2542, %v2543
        %v2546 = vadd.f32 %v2535, %v2544
        %s2547 = sld [smem:[#allocation4 + $0x8]]
        %v2548 = vstv %s2547
        %v2549 = vmul.f32 %v2356, %v2548
        %v2550 = vmul.f32 %v2357, %v2548
        %v2553 = vrot.slane %v2549, 1
        %v2554 = vrot.slane %v2550, 1
        %v2555 = vsel %vm2530, %v2553, %v2554
        %2556 = vrot.lane.b32.xlu0 %v2555, 127
        %v2557 = vpop.permute.xlu0 %2556
        %v2559 = vadd.f32 %v2546, %v2557
        %s2560 = sld [smem:[#allocation4 + $0x39]]
        %v2561 = vstv %s2560
        %v2562 = vmul.f32 %v2418, %v2561
        %v2563 = vmul.f32 %v2419, %v2561
        %v2566 = vrot.slane %v2562, 1
        %v2567 = vrot.slane %v2563, 1
        %v2568 = vsel %vm2530, %v2566, %v2567
        %2569 = vrot.lane.b32.xlu0 %v2568, 127
        %v2570 = vpop.permute.xlu0 %2569
        %v2572 = vadd.f32 %v2559, %v2570
        %s2573 = sld [smem:[#allocation4 + $0x9]]
        %v2574 = vstv %s2573
        %v2575 = vmul.f32 %v2356, %v2574
        %v2576 = vmul.f32 %v2357, %v2574
        %v2579 = vrot.slane %v2575, 1
        %v2580 = vrot.slane %v2576, 1
        %v2581 = vsel %vm2530, %v2579, %v2580
        %2582 = vrot.lane.b32.xlu0 %v2581, 126
        %v2583 = vpop.permute.xlu0 %2582
        %v2585 = vadd.f32 %v2572, %v2583
        %s2586 = sld [smem:[#allocation4 + $0x3a]]
        %v2587 = vstv %s2586
        %v2588 = vmul.f32 %v2418, %v2587
        %v2589 = vmul.f32 %v2419, %v2587
        %v2592 = vrot.slane %v2588, 1
        %v2593 = vrot.slane %v2589, 1
        %v2594 = vsel %vm2530, %v2592, %v2593
        %2595 = vrot.lane.b32.xlu0 %v2594, 126
        %v2596 = vpop.permute.xlu0 %2595
        %v2598 = vadd.f32 %v2585, %v2596
        %s2599 = sld [smem:[#allocation4 + $0xa]]
        %v2600 = vstv %s2599
        %v2601 = vmul.f32 %v2356, %v2600
        %v2602 = vmul.f32 %v2357, %v2600
        %v2605 = vrot.slane %v2601, 1
        %v2606 = vrot.slane %v2602, 1
        %v2607 = vsel %vm2530, %v2605, %v2606
        %2608 = vrot.lane.b32.xlu0 %v2607, 125
        %v2609 = vpop.permute.xlu0 %2608
        %v2611 = vadd.f32 %v2598, %v2609
        %s2612 = sld [smem:[#allocation4 + $0x3b]]
        %v2613 = vstv %s2612
        %v2614 = vmul.f32 %v2418, %v2613
        %v2615 = vmul.f32 %v2419, %v2613
        %v2618 = vrot.slane %v2614, 1
        %v2619 = vrot.slane %v2615, 1
        %v2620 = vsel %vm2530, %v2618, %v2619
        %2621 = vrot.lane.b32.xlu0 %v2620, 125
        %v2622 = vpop.permute.xlu0 %2621
        %v2624 = vadd.f32 %v2611, %v2622
        %s2625 = sld [smem:[#allocation4 + $0xb]]
        %v2626 = vstv %s2625
        %v2627 = vmul.f32 %v2356, %v2626
        %v2628 = vmul.f32 %v2357, %v2626
        %v2631 = vrot.slane %v2627, 1
        %v2632 = vrot.slane %v2628, 1
        %v2633 = vsel %vm2530, %v2631, %v2632
        %2634 = vrot.lane.b32.xlu0 %v2633, 124
        %v2635 = vpop.permute.xlu0 %2634
        %v2637 = vadd.f32 %v2624, %v2635
        %s2638 = sld [smem:[#allocation4 + $0x3c]]
        %v2639 = vstv %s2638
        %v2640 = vmul.f32 %v2418, %v2639
        %v2641 = vmul.f32 %v2419, %v2639
        %v2644 = vrot.slane %v2640, 1
        %v2645 = vrot.slane %v2641, 1
        %v2646 = vsel %vm2530, %v2644, %v2645
        %2647 = vrot.lane.b32.xlu0 %v2646, 124
        %v2648 = vpop.permute.xlu0 %2647
        %v2650 = vadd.f32 %v2637, %v2648
        %s2651 = sld [smem:[#allocation4 + $0xc]]
        %v2652 = vstv %s2651
        %v2653 = vmul.f32 %v2356, %v2652
        %v2654 = vmul.f32 %v2357, %v2652
        %v2657 = vrot.slane %v2653, 1
        %v2658 = vrot.slane %v2654, 1
        %v2659 = vsel %vm2530, %v2657, %v2658
        %2660 = vrot.lane.b32.xlu0 %v2659, 123
        %v2661 = vpop.permute.xlu0 %2660
        %v2663 = vadd.f32 %v2650, %v2661
        %s2664 = sld [smem:[#allocation4 + $0x3d]]
        %v2665 = vstv %s2664
        %v2666 = vmul.f32 %v2418, %v2665
        %v2667 = vmul.f32 %v2419, %v2665
        %v2670 = vrot.slane %v2666, 1
        %v2671 = vrot.slane %v2667, 1
        %v2672 = vsel %vm2530, %v2670, %v2671
        %2673 = vrot.lane.b32.xlu0 %v2672, 123
        %v2674 = vpop.permute.xlu0 %2673
        %v2676 = vadd.f32 %v2663, %v2674
        %s2677 = sld [smem:[#allocation4 + $0xd]]
        %v2678 = vstv %s2677
        %v2679 = vmul.f32 %v2356, %v2678
        %v2680 = vmul.f32 %v2357, %v2678
        %v2683 = vrot.slane %v2679, 1
        %v2684 = vrot.slane %v2680, 1
        %v2685 = vsel %vm2530, %v2683, %v2684
        %2686 = vrot.lane.b32.xlu0 %v2685, 122
        %v2687 = vpop.permute.xlu0 %2686
        %v2689 = vadd.f32 %v2676, %v2687
        %s2690 = sld [smem:[#allocation4 + $0x3e]]
        %v2691 = vstv %s2690
        %v2692 = vmul.f32 %v2418, %v2691
        %v2693 = vmul.f32 %v2419, %v2691
        %v2696 = vrot.slane %v2692, 1
        %v2697 = vrot.slane %v2693, 1
        %v2698 = vsel %vm2530, %v2696, %v2697
        %2699 = vrot.lane.b32.xlu0 %v2698, 122
        %v2700 = vpop.permute.xlu0 %2699
        %v2702 = vadd.f32 %v2689, %v2700
        %s2703 = sld [smem:[#allocation4 + $0xe]]
        %v2704 = vstv %s2703
        %v2705 = vmul.f32 %v2356, %v2704
        %v2706 = vmul.f32 %v2357, %v2704
        %vm2709 = vcmask 1045504
        %v2710 = vrot.slane %v2705, 2
        %v2711 = vrot.slane %v2706, 2
        %v2712 = vsel %vm2709, %v2710, %v2711
        %v2714 = vadd.f32 %v2702, %v2712
        %s2715 = sld [smem:[#allocation4 + $0x3f]]
        %v2716 = vstv %s2715
        %v2717 = vmul.f32 %v2418, %v2716
        %v2718 = vmul.f32 %v2419, %v2716
        %v2721 = vrot.slane %v2717, 2
        %v2722 = vrot.slane %v2718, 2
        %v2723 = vsel %vm2709, %v2721, %v2722
        %v2725 = vadd.f32 %v2714, %v2723
        %s2726 = sld [smem:[#allocation4 + $0xf]]
        %v2727 = vstv %s2726
        %v2728 = vmul.f32 %v2356, %v2727
        %v2729 = vmul.f32 %v2357, %v2727
        %v2732 = vrot.slane %v2728, 2
        %v2733 = vrot.slane %v2729, 2
        %v2734 = vsel %vm2709, %v2732, %v2733
        %2735 = vrot.lane.b32.xlu0 %v2734, 127
        %v2736 = vpop.permute.xlu0 %2735
        %v2738 = vadd.f32 %v2725, %v2736
        %s2739 = sld [smem:[#allocation4 + $0x40]]
        %v2740 = vstv %s2739
        %v2741 = vmul.f32 %v2418, %v2740
        %v2742 = vmul.f32 %v2419, %v2740
        %v2745 = vrot.slane %v2741, 2
        %v2746 = vrot.slane %v2742, 2
        %v2747 = vsel %vm2709, %v2745, %v2746
        %2748 = vrot.lane.b32.xlu0 %v2747, 127
        %v2749 = vpop.permute.xlu0 %2748
        %v2751 = vadd.f32 %v2738, %v2749
        %s2752 = sld [smem:[#allocation4 + $0x10]]
        %v2753 = vstv %s2752
        %v2754 = vmul.f32 %v2356, %v2753
        %v2755 = vmul.f32 %v2357, %v2753
        %v2758 = vrot.slane %v2754, 2
        %v2759 = vrot.slane %v2755, 2
        %v2760 = vsel %vm2709, %v2758, %v2759
        %2761 = vrot.lane.b32.xlu0 %v2760, 126
        %v2762 = vpop.permute.xlu0 %2761
        %v2764 = vadd.f32 %v2751, %v2762
        %s2765 = sld [smem:[#allocation4 + $0x41]]
        %v2766 = vstv %s2765
        %v2767 = vmul.f32 %v2418, %v2766
        %v2768 = vmul.f32 %v2419, %v2766
        %v2771 = vrot.slane %v2767, 2
        %v2772 = vrot.slane %v2768, 2
        %v2773 = vsel %vm2709, %v2771, %v2772
        %2774 = vrot.lane.b32.xlu0 %v2773, 126
        %v2775 = vpop.permute.xlu0 %2774
        %v2777 = vadd.f32 %v2764, %v2775
        %s2778 = sld [smem:[#allocation4 + $0x11]]
        %v2779 = vstv %s2778
        %v2780 = vmul.f32 %v2356, %v2779
        %v2781 = vmul.f32 %v2357, %v2779
        %v2784 = vrot.slane %v2780, 2
        %v2785 = vrot.slane %v2781, 2
        %v2786 = vsel %vm2709, %v2784, %v2785
        %2787 = vrot.lane.b32.xlu0 %v2786, 125
        %v2788 = vpop.permute.xlu0 %2787
        %v2790 = vadd.f32 %v2777, %v2788
        %s2791 = sld [smem:[#allocation4 + $0x42]]
        %v2792 = vstv %s2791
        %v2793 = vmul.f32 %v2418, %v2792
        %v2794 = vmul.f32 %v2419, %v2792
        %v2797 = vrot.slane %v2793, 2
        %v2798 = vrot.slane %v2794, 2
        %v2799 = vsel %vm2709, %v2797, %v2798
        %2800 = vrot.lane.b32.xlu0 %v2799, 125
        %v2801 = vpop.permute.xlu0 %2800
        %v2803 = vadd.f32 %v2790, %v2801
        %s2804 = sld [smem:[#allocation4 + $0x12]]
        %v2805 = vstv %s2804
        %v2806 = vmul.f32 %v2356, %v2805
        %v2807 = vmul.f32 %v2357, %v2805
        %v2810 = vrot.slane %v2806, 2
        %v2811 = vrot.slane %v2807, 2
        %v2812 = vsel %vm2709, %v2810, %v2811
        %2813 = vrot.lane.b32.xlu0 %v2812, 124
        %v2814 = vpop.permute.xlu0 %2813
        %v2816 = vadd.f32 %v2803, %v2814
        %s2817 = sld [smem:[#allocation4 + $0x43]]
        %v2818 = vstv %s2817
        %v2819 = vmul.f32 %v2418, %v2818
        %v2820 = vmul.f32 %v2419, %v2818
        %v2823 = vrot.slane %v2819, 2
        %v2824 = vrot.slane %v2820, 2
        %v2825 = vsel %vm2709, %v2823, %v2824
        %2826 = vrot.lane.b32.xlu0 %v2825, 124
        %v2827 = vpop.permute.xlu0 %2826
        %v2829 = vadd.f32 %v2816, %v2827
        %s2830 = sld [smem:[#allocation4 + $0x13]]
        %v2831 = vstv %s2830
        %v2832 = vmul.f32 %v2356, %v2831
        %v2833 = vmul.f32 %v2357, %v2831
        %v2836 = vrot.slane %v2832, 2
        %v2837 = vrot.slane %v2833, 2
        %v2838 = vsel %vm2709, %v2836, %v2837
        %2839 = vrot.lane.b32.xlu0 %v2838, 123
        %v2840 = vpop.permute.xlu0 %2839
        %v2842 = vadd.f32 %v2829, %v2840
        %s2843 = sld [smem:[#allocation4 + $0x44]]
        %v2844 = vstv %s2843
        %v2845 = vmul.f32 %v2418, %v2844
        %v2846 = vmul.f32 %v2419, %v2844
        %v2849 = vrot.slane %v2845, 2
        %v2850 = vrot.slane %v2846, 2
        %v2851 = vsel %vm2709, %v2849, %v2850
        %2852 = vrot.lane.b32.xlu0 %v2851, 123
        %v2853 = vpop.permute.xlu0 %2852
        %v2855 = vadd.f32 %v2842, %v2853
        %s2856 = sld [smem:[#allocation4 + $0x14]]
        %v2857 = vstv %s2856
        %v2858 = vmul.f32 %v2356, %v2857
        %v2859 = vmul.f32 %v2357, %v2857
        %v2862 = vrot.slane %v2858, 2
        %v2863 = vrot.slane %v2859, 2
        %v2864 = vsel %vm2709, %v2862, %v2863
        %2865 = vrot.lane.b32.xlu0 %v2864, 122
        %v2866 = vpop.permute.xlu0 %2865
        %v2868 = vadd.f32 %v2855, %v2866
        %s2869 = sld [smem:[#allocation4 + $0x45]]
        %v2870 = vstv %s2869
        %v2871 = vmul.f32 %v2418, %v2870
        %v2872 = vmul.f32 %v2419, %v2870
        %v2875 = vrot.slane %v2871, 2
        %v2876 = vrot.slane %v2872, 2
        %v2877 = vsel %vm2709, %v2875, %v2876
        %2878 = vrot.lane.b32.xlu0 %v2877, 122
        %v2879 = vpop.permute.xlu0 %2878
        %v2881 = vadd.f32 %v2868, %v2879
        %s2882 = sld [smem:[#allocation4 + $0x15]]
        %v2883 = vstv %s2882
        %v2884 = vmul.f32 %v2356, %v2883
        %v2885 = vmul.f32 %v2357, %v2883
        %vm2888 = vcmask 1044480
        %v2889 = vrot.slane %v2884, 3
        %v2890 = vrot.slane %v2885, 3
        %v2891 = vsel %vm2888, %v2889, %v2890
        %v2893 = vadd.f32 %v2881, %v2891
        %s2894 = sld [smem:[#allocation4 + $0x46]]
        %v2895 = vstv %s2894
        %v2896 = vmul.f32 %v2418, %v2895
        %v2897 = vmul.f32 %v2419, %v2895
        %v2900 = vrot.slane %v2896, 3
        %v2901 = vrot.slane %v2897, 3
        %v2902 = vsel %vm2888, %v2900, %v2901
        %v2904 = vadd.f32 %v2893, %v2902
        %s2905 = sld [smem:[#allocation4 + $0x16]]
        %v2906 = vstv %s2905
        %v2907 = vmul.f32 %v2356, %v2906
        %v2908 = vmul.f32 %v2357, %v2906
        %v2911 = vrot.slane %v2907, 3
        %v2912 = vrot.slane %v2908, 3
        %v2913 = vsel %vm2888, %v2911, %v2912
        %2914 = vrot.lane.b32.xlu0 %v2913, 127
        %v2915 = vpop.permute.xlu0 %2914
        %v2917 = vadd.f32 %v2904, %v2915
        %s2918 = sld [smem:[#allocation4 + $0x47]]
        %v2919 = vstv %s2918
        %v2920 = vmul.f32 %v2418, %v2919
        %v2921 = vmul.f32 %v2419, %v2919
        %v2924 = vrot.slane %v2920, 3
        %v2925 = vrot.slane %v2921, 3
        %v2926 = vsel %vm2888, %v2924, %v2925
        %2927 = vrot.lane.b32.xlu0 %v2926, 127
        %v2928 = vpop.permute.xlu0 %2927
        %v2930 = vadd.f32 %v2917, %v2928
        %s2931 = sld [smem:[#allocation4 + $0x17]]
        %v2932 = vstv %s2931
        %v2933 = vmul.f32 %v2356, %v2932
        %v2934 = vmul.f32 %v2357, %v2932
        %v2937 = vrot.slane %v2933, 3
        %v2938 = vrot.slane %v2934, 3
        %v2939 = vsel %vm2888, %v2937, %v2938
        %2940 = vrot.lane.b32.xlu0 %v2939, 126
        %v2941 = vpop.permute.xlu0 %2940
        %v2943 = vadd.f32 %v2930, %v2941
        %s2944 = sld [smem:[#allocation4 + $0x48]]
        %v2945 = vstv %s2944
        %v2946 = vmul.f32 %v2418, %v2945
        %v2947 = vmul.f32 %v2419, %v2945
        %v2950 = vrot.slane %v2946, 3
        %v2951 = vrot.slane %v2947, 3
        %v2952 = vsel %vm2888, %v2950, %v2951
        %2953 = vrot.lane.b32.xlu0 %v2952, 126
        %v2954 = vpop.permute.xlu0 %2953
        %v2956 = vadd.f32 %v2943, %v2954
        %s2957 = sld [smem:[#allocation4 + $0x18]]
        %v2958 = vstv %s2957
        %v2959 = vmul.f32 %v2356, %v2958
        %v2960 = vmul.f32 %v2357, %v2958
        %v2963 = vrot.slane %v2959, 3
        %v2964 = vrot.slane %v2960, 3
        %v2965 = vsel %vm2888, %v2963, %v2964
        %2966 = vrot.lane.b32.xlu0 %v2965, 125
        %v2967 = vpop.permute.xlu0 %2966
        %v2969 = vadd.f32 %v2956, %v2967
        %s2970 = sld [smem:[#allocation4 + $0x49]]
        %v2971 = vstv %s2970
        %v2972 = vmul.f32 %v2418, %v2971
        %v2973 = vmul.f32 %v2419, %v2971
        %v2976 = vrot.slane %v2972, 3
        %v2977 = vrot.slane %v2973, 3
        %v2978 = vsel %vm2888, %v2976, %v2977
        %2979 = vrot.lane.b32.xlu0 %v2978, 125
        %v2980 = vpop.permute.xlu0 %2979
        %v2982 = vadd.f32 %v2969, %v2980
        %s2983 = sld [smem:[#allocation4 + $0x19]]
        %v2984 = vstv %s2983
        %v2985 = vmul.f32 %v2356, %v2984
        %v2986 = vmul.f32 %v2357, %v2984
        %v2989 = vrot.slane %v2985, 3
        %v2990 = vrot.slane %v2986, 3
        %v2991 = vsel %vm2888, %v2989, %v2990
        %2992 = vrot.lane.b32.xlu0 %v2991, 124
        %v2993 = vpop.permute.xlu0 %2992
        %v2995 = vadd.f32 %v2982, %v2993
        %s2996 = sld [smem:[#allocation4 + $0x4a]]
        %v2997 = vstv %s2996
        %v2998 = vmul.f32 %v2418, %v2997
        %v2999 = vmul.f32 %v2419, %v2997
        %v3002 = vrot.slane %v2998, 3
        %v3003 = vrot.slane %v2999, 3
        %v3004 = vsel %vm2888, %v3002, %v3003
        %3005 = vrot.lane.b32.xlu0 %v3004, 124
        %v3006 = vpop.permute.xlu0 %3005
        %v3008 = vadd.f32 %v2995, %v3006
        %s3009 = sld [smem:[#allocation4 + $0x1a]]
        %v3010 = vstv %s3009
        %v3011 = vmul.f32 %v2356, %v3010
        %v3012 = vmul.f32 %v2357, %v3010
        %v3015 = vrot.slane %v3011, 3
        %v3016 = vrot.slane %v3012, 3
        %v3017 = vsel %vm2888, %v3015, %v3016
        %3018 = vrot.lane.b32.xlu0 %v3017, 123
        %v3019 = vpop.permute.xlu0 %3018
        %v3021 = vadd.f32 %v3008, %v3019
        %s3022 = sld [smem:[#allocation4 + $0x4b]]
        %v3023 = vstv %s3022
        %v3024 = vmul.f32 %v2418, %v3023
        %v3025 = vmul.f32 %v2419, %v3023
        %v3028 = vrot.slane %v3024, 3
        %v3029 = vrot.slane %v3025, 3
        %v3030 = vsel %vm2888, %v3028, %v3029
        %3031 = vrot.lane.b32.xlu0 %v3030, 123
        %v3032 = vpop.permute.xlu0 %3031
        %v3034 = vadd.f32 %v3021, %v3032
        %s3035 = sld [smem:[#allocation4 + $0x1b]]
        %v3036 = vstv %s3035
        %v3037 = vmul.f32 %v2356, %v3036
        %v3038 = vmul.f32 %v2357, %v3036
        %v3041 = vrot.slane %v3037, 3
        %v3042 = vrot.slane %v3038, 3
        %v3043 = vsel %vm2888, %v3041, %v3042
        %3044 = vrot.lane.b32.xlu0 %v3043, 122
        %v3045 = vpop.permute.xlu0 %3044
        %v3047 = vadd.f32 %v3034, %v3045
        %s3048 = sld [smem:[#allocation4 + $0x4c]]
        %v3049 = vstv %s3048
        %v3050 = vmul.f32 %v2418, %v3049
        %v3051 = vmul.f32 %v2419, %v3049
        %v3054 = vrot.slane %v3050, 3
        %v3055 = vrot.slane %v3051, 3
        %v3056 = vsel %vm2888, %v3054, %v3055
        %3057 = vrot.lane.b32.xlu0 %v3056, 122
        %v3058 = vpop.permute.xlu0 %3057
        %v3060 = vadd.f32 %v3047, %v3058
        %s3061 = sld [smem:[#allocation4 + $0x1c]]
        %v3062 = vstv %s3061
        %v3063 = vmul.f32 %v2356, %v3062
        %v3064 = vmul.f32 %v2357, %v3062
        %vm3067 = vcmask 1043456
        %v3068 = vrot.slane %v3063, 4
        %v3069 = vrot.slane %v3064, 4
        %v3070 = vsel %vm3067, %v3068, %v3069
        %v3072 = vadd.f32 %v3060, %v3070
        %s3073 = sld [smem:[#allocation4 + $0x4d]]
        %v3074 = vstv %s3073
        %v3075 = vmul.f32 %v2418, %v3074
        %v3076 = vmul.f32 %v2419, %v3074
        %v3079 = vrot.slane %v3075, 4
        %v3080 = vrot.slane %v3076, 4
        %v3081 = vsel %vm3067, %v3079, %v3080
        %v3083 = vadd.f32 %v3072, %v3081
        %s3084 = sld [smem:[#allocation4 + $0x1d]]
        %v3085 = vstv %s3084
        %v3086 = vmul.f32 %v2356, %v3085
        %v3087 = vmul.f32 %v2357, %v3085
        %v3090 = vrot.slane %v3086, 4
        %v3091 = vrot.slane %v3087, 4
        %v3092 = vsel %vm3067, %v3090, %v3091
        %3093 = vrot.lane.b32.xlu0 %v3092, 127
        %v3094 = vpop.permute.xlu0 %3093
        %v3096 = vadd.f32 %v3083, %v3094
        %s3097 = sld [smem:[#allocation4 + $0x4e]]
        %v3098 = vstv %s3097
        %v3099 = vmul.f32 %v2418, %v3098
        %v3100 = vmul.f32 %v2419, %v3098
        %v3103 = vrot.slane %v3099, 4
        %v3104 = vrot.slane %v3100, 4
        %v3105 = vsel %vm3067, %v3103, %v3104
        %3106 = vrot.lane.b32.xlu0 %v3105, 127
        %v3107 = vpop.permute.xlu0 %3106
        %v3109 = vadd.f32 %v3096, %v3107
        %s3110 = sld [smem:[#allocation4 + $0x1e]]
        %v3111 = vstv %s3110
        %v3112 = vmul.f32 %v2356, %v3111
        %v3113 = vmul.f32 %v2357, %v3111
        %v3116 = vrot.slane %v3112, 4
        %v3117 = vrot.slane %v3113, 4
        %v3118 = vsel %vm3067, %v3116, %v3117
        %3119 = vrot.lane.b32.xlu0 %v3118, 126
        %v3120 = vpop.permute.xlu0 %3119
        %v3122 = vadd.f32 %v3109, %v3120
        %s3123 = sld [smem:[#allocation4 + $0x4f]]
        %v3124 = vstv %s3123
        %v3125 = vmul.f32 %v2418, %v3124
        %v3126 = vmul.f32 %v2419, %v3124
        %v3129 = vrot.slane %v3125, 4
        %v3130 = vrot.slane %v3126, 4
        %v3131 = vsel %vm3067, %v3129, %v3130
        %3132 = vrot.lane.b32.xlu0 %v3131, 126
        %v3133 = vpop.permute.xlu0 %3132
        %v3135 = vadd.f32 %v3122, %v3133
        %s3136 = sld [smem:[#allocation4 + $0x1f]]
        %v3137 = vstv %s3136
        %v3138 = vmul.f32 %v2356, %v3137
        %v3139 = vmul.f32 %v2357, %v3137
        %v3142 = vrot.slane %v3138, 4
        %v3143 = vrot.slane %v3139, 4
        %v3144 = vsel %vm3067, %v3142, %v3143
        %3145 = vrot.lane.b32.xlu0 %v3144, 125
        %v3146 = vpop.permute.xlu0 %3145
        %v3148 = vadd.f32 %v3135, %v3146
        %s3149 = sld [smem:[#allocation4 + $0x50]]
        %v3150 = vstv %s3149
        %v3151 = vmul.f32 %v2418, %v3150
        %v3152 = vmul.f32 %v2419, %v3150
        %v3155 = vrot.slane %v3151, 4
        %v3156 = vrot.slane %v3152, 4
        %v3157 = vsel %vm3067, %v3155, %v3156
        %3158 = vrot.lane.b32.xlu0 %v3157, 125
        %v3159 = vpop.permute.xlu0 %3158
        %v3161 = vadd.f32 %v3148, %v3159
        %s3162 = sld [smem:[#allocation4 + $0x20]]
        %v3163 = vstv %s3162
        %v3164 = vmul.f32 %v2356, %v3163
        %v3165 = vmul.f32 %v2357, %v3163
        %v3168 = vrot.slane %v3164, 4
        %v3169 = vrot.slane %v3165, 4
        %v3170 = vsel %vm3067, %v3168, %v3169
        %3171 = vrot.lane.b32.xlu0 %v3170, 124
        %v3172 = vpop.permute.xlu0 %3171
        %v3174 = vadd.f32 %v3161, %v3172
        %s3175 = sld [smem:[#allocation4 + $0x51]]
        %v3176 = vstv %s3175
        %v3177 = vmul.f32 %v2418, %v3176
        %v3178 = vmul.f32 %v2419, %v3176
        %v3181 = vrot.slane %v3177, 4
        %v3182 = vrot.slane %v3178, 4
        %v3183 = vsel %vm3067, %v3181, %v3182
        %3184 = vrot.lane.b32.xlu0 %v3183, 124
        %v3185 = vpop.permute.xlu0 %3184
        %v3187 = vadd.f32 %v3174, %v3185
        %s3188 = sld [smem:[#allocation4 + $0x21]]
        %v3189 = vstv %s3188
        %v3190 = vmul.f32 %v2356, %v3189
        %v3191 = vmul.f32 %v2357, %v3189
        %v3194 = vrot.slane %v3190, 4
        %v3195 = vrot.slane %v3191, 4
        %v3196 = vsel %vm3067, %v3194, %v3195
        %3197 = vrot.lane.b32.xlu0 %v3196, 123
        %v3198 = vpop.permute.xlu0 %3197
        %v3200 = vadd.f32 %v3187, %v3198
        %s3201 = sld [smem:[#allocation4 + $0x52]]
        %v3202 = vstv %s3201
        %v3203 = vmul.f32 %v2418, %v3202
        %v3204 = vmul.f32 %v2419, %v3202
        %v3207 = vrot.slane %v3203, 4
        %v3208 = vrot.slane %v3204, 4
        %v3209 = vsel %vm3067, %v3207, %v3208
        %3210 = vrot.lane.b32.xlu0 %v3209, 123
        %v3211 = vpop.permute.xlu0 %3210
        %v3213 = vadd.f32 %v3200, %v3211
        %s3214 = sld [smem:[#allocation4 + $0x22]]
        %v3215 = vstv %s3214
        %v3216 = vmul.f32 %v2356, %v3215
        %v3217 = vmul.f32 %v2357, %v3215
        %v3220 = vrot.slane %v3216, 4
        %v3221 = vrot.slane %v3217, 4
        %v3222 = vsel %vm3067, %v3220, %v3221
        %3223 = vrot.lane.b32.xlu0 %v3222, 122
        %v3224 = vpop.permute.xlu0 %3223
        %v3226 = vadd.f32 %v3213, %v3224
        %s3227 = sld [smem:[#allocation4 + $0x53]]
        %v3228 = vstv %s3227
        %v3229 = vmul.f32 %v2418, %v3228
        %v3230 = vmul.f32 %v2419, %v3228
        %v3233 = vrot.slane %v3229, 4
        %v3234 = vrot.slane %v3230, 4
        %v3235 = vsel %vm3067, %v3233, %v3234
        %3236 = vrot.lane.b32.xlu0 %v3235, 122
        %v3237 = vpop.permute.xlu0 %3236
        %v3239 = vadd.f32 %v3226, %v3237
        %s3240 = sld [smem:[#allocation4 + $0x23]]
        %v3241 = vstv %s3240
        %v3242 = vmul.f32 %v2356, %v3241
        %v3243 = vmul.f32 %v2357, %v3241
        %v3246 = vrot.slane %v3242, 5
        %v3247 = vrot.slane %v3243, 5
        %v3248 = vsel %vm2341, %v3246, %v3247
        %v3250 = vadd.f32 %v3239, %v3248
        %s3251 = sld [smem:[#allocation4 + $0x54]]
        %v3252 = vstv %s3251
        %v3253 = vmul.f32 %v2418, %v3252
        %v3254 = vmul.f32 %v2419, %v3252
        %v3257 = vrot.slane %v3253, 5
        %v3258 = vrot.slane %v3254, 5
        %v3259 = vsel %vm2341, %v3257, %v3258
        %v3261 = vadd.f32 %v3250, %v3259
        %s3262 = sld [smem:[#allocation4 + $0x24]]
        %v3263 = vstv %s3262
        %v3264 = vmul.f32 %v2356, %v3263
        %v3265 = vmul.f32 %v2357, %v3263
        %v3268 = vrot.slane %v3264, 5
        %v3269 = vrot.slane %v3265, 5
        %v3270 = vsel %vm2341, %v3268, %v3269
        %3271 = vrot.lane.b32.xlu0 %v3270, 127
        %v3272 = vpop.permute.xlu0 %3271
        %v3274 = vadd.f32 %v3261, %v3272
        %s3275 = sld [smem:[#allocation4 + $0x55]]
        %v3276 = vstv %s3275
        %v3277 = vmul.f32 %v2418, %v3276
        %v3278 = vmul.f32 %v2419, %v3276
        %v3281 = vrot.slane %v3277, 5
        %v3282 = vrot.slane %v3278, 5
        %v3283 = vsel %vm2341, %v3281, %v3282
        %3284 = vrot.lane.b32.xlu0 %v3283, 127
        %v3285 = vpop.permute.xlu0 %3284
        %v3287 = vadd.f32 %v3274, %v3285
        %s3288 = sld [smem:[#allocation4 + $0x25]]
        %v3289 = vstv %s3288
        %v3290 = vmul.f32 %v2356, %v3289
        %v3291 = vmul.f32 %v2357, %v3289
        %v3294 = vrot.slane %v3290, 5
        %v3295 = vrot.slane %v3291, 5
        %v3296 = vsel %vm2341, %v3294, %v3295
        %3297 = vrot.lane.b32.xlu0 %v3296, 126
        %v3298 = vpop.permute.xlu0 %3297
        %v3300 = vadd.f32 %v3287, %v3298
        %s3301 = sld [smem:[#allocation4 + $0x56]]
        %v3302 = vstv %s3301
        %v3303 = vmul.f32 %v2418, %v3302
        %v3304 = vmul.f32 %v2419, %v3302
        %v3307 = vrot.slane %v3303, 5
        %v3308 = vrot.slane %v3304, 5
        %v3309 = vsel %vm2341, %v3307, %v3308
        %3310 = vrot.lane.b32.xlu0 %v3309, 126
        %v3311 = vpop.permute.xlu0 %3310
        %v3313 = vadd.f32 %v3300, %v3311
        %s3314 = sld [smem:[#allocation4 + $0x26]]
        %v3315 = vstv %s3314
        %v3316 = vmul.f32 %v2356, %v3315
        %v3317 = vmul.f32 %v2357, %v3315
        %v3320 = vrot.slane %v3316, 5
        %v3321 = vrot.slane %v3317, 5
        %v3322 = vsel %vm2341, %v3320, %v3321
        %3323 = vrot.lane.b32.xlu0 %v3322, 125
        %v3324 = vpop.permute.xlu0 %3323
        %v3326 = vadd.f32 %v3313, %v3324
        %s3327 = sld [smem:[#allocation4 + $0x57]]
        %v3328 = vstv %s3327
        %v3329 = vmul.f32 %v2418, %v3328
        %v3330 = vmul.f32 %v2419, %v3328
        %v3333 = vrot.slane %v3329, 5
        %v3334 = vrot.slane %v3330, 5
        %v3335 = vsel %vm2341, %v3333, %v3334
        %3336 = vrot.lane.b32.xlu0 %v3335, 125
        %v3337 = vpop.permute.xlu0 %3336
        %v3339 = vadd.f32 %v3326, %v3337
        %s3340 = sld [smem:[#allocation4 + $0x27]]
        %v3341 = vstv %s3340
        %v3342 = vmul.f32 %v2356, %v3341
        %v3343 = vmul.f32 %v2357, %v3341
        %v3346 = vrot.slane %v3342, 5
        %v3347 = vrot.slane %v3343, 5
        %v3348 = vsel %vm2341, %v3346, %v3347
        %3349 = vrot.lane.b32.xlu0 %v3348, 124
        %v3350 = vpop.permute.xlu0 %3349
        %v3352 = vadd.f32 %v3339, %v3350
        %s3353 = sld [smem:[#allocation4 + $0x58]]
        %v3354 = vstv %s3353
        %v3355 = vmul.f32 %v2418, %v3354
        %v3356 = vmul.f32 %v2419, %v3354
        %v3359 = vrot.slane %v3355, 5
        %v3360 = vrot.slane %v3356, 5
        %v3361 = vsel %vm2341, %v3359, %v3360
        %3362 = vrot.lane.b32.xlu0 %v3361, 124
        %v3363 = vpop.permute.xlu0 %3362
        %v3365 = vadd.f32 %v3352, %v3363
        %s3366 = sld [smem:[#allocation4 + $0x28]]
        %v3367 = vstv %s3366
        %v3368 = vmul.f32 %v2356, %v3367
        %v3369 = vmul.f32 %v2357, %v3367
        %v3372 = vrot.slane %v3368, 5
        %v3373 = vrot.slane %v3369, 5
        %v3374 = vsel %vm2341, %v3372, %v3373
        %3375 = vrot.lane.b32.xlu0 %v3374, 123
        %v3376 = vpop.permute.xlu0 %3375
        %v3378 = vadd.f32 %v3365, %v3376
        %s3379 = sld [smem:[#allocation4 + $0x59]]
        %v3380 = vstv %s3379
        %v3381 = vmul.f32 %v2418, %v3380
        %v3382 = vmul.f32 %v2419, %v3380
        %v3385 = vrot.slane %v3381, 5
        %v3386 = vrot.slane %v3382, 5
        %v3387 = vsel %vm2341, %v3385, %v3386
        %3388 = vrot.lane.b32.xlu0 %v3387, 123
        %v3389 = vpop.permute.xlu0 %3388
        %v3391 = vadd.f32 %v3378, %v3389
        %s3392 = sld [smem:[#allocation4 + $0x29]]
        %v3393 = vstv %s3392
        %v3394 = vmul.f32 %v2356, %v3393
        %v3395 = vmul.f32 %v2357, %v3393
        %v3398 = vrot.slane %v3394, 5
        %v3399 = vrot.slane %v3395, 5
        %v3400 = vsel %vm2341, %v3398, %v3399
        %3401 = vrot.lane.b32.xlu0 %v3400, 122
        %v3402 = vpop.permute.xlu0 %3401
        %v3404 = vadd.f32 %v3391, %v3402
        %s3405 = sld [smem:[#allocation4 + $0x5a]]
        %v3406 = vstv %s3405
        %v3407 = vmul.f32 %v2418, %v3406
        %v3408 = vmul.f32 %v2419, %v3406
        %v3411 = vrot.slane %v3407, 5
        %v3412 = vrot.slane %v3408, 5
        %v3413 = vsel %vm2341, %v3411, %v3412
        %3414 = vrot.lane.b32.xlu0 %v3413, 122
        %v3415 = vpop.permute.xlu0 %3414
        %v3417 = vadd.f32 %v3404, %v3415
        %s3418 = sld [smem:[#allocation4 + $0x2a]]
        %v3419 = vstv %s3418
        %v3420 = vmul.f32 %v2356, %v3419
        %v3421 = vmul.f32 %v2357, %v3419
        %vm3424 = vcmask 1041408
        %v3425 = vrot.slane %v3420, 6
        %v3426 = vrot.slane %v3421, 6
        %v3427 = vsel %vm3424, %v3425, %v3426
        %v3429 = vadd.f32 %v3417, %v3427
        %s3430 = sld [smem:[#allocation4 + $0x5b]]
        %v3431 = vstv %s3430
        %v3432 = vmul.f32 %v2418, %v3431
        %v3433 = vmul.f32 %v2419, %v3431
        %v3436 = vrot.slane %v3432, 6
        %v3437 = vrot.slane %v3433, 6
        %v3438 = vsel %vm3424, %v3436, %v3437
        %v3440 = vadd.f32 %v3429, %v3438
        %s3441 = sld [smem:[#allocation4 + $0x2b]]
        %v3442 = vstv %s3441
        %v3443 = vmul.f32 %v2356, %v3442
        %v3444 = vmul.f32 %v2357, %v3442
        %v3447 = vrot.slane %v3443, 6
        %v3448 = vrot.slane %v3444, 6
        %v3449 = vsel %vm3424, %v3447, %v3448
        %3450 = vrot.lane.b32.xlu0 %v3449, 127
        %v3451 = vpop.permute.xlu0 %3450
        %v3453 = vadd.f32 %v3440, %v3451
        %s3454 = sld [smem:[#allocation4 + $0x5c]]
        %v3455 = vstv %s3454
        %v3456 = vmul.f32 %v2418, %v3455
        %v3457 = vmul.f32 %v2419, %v3455
        %v3460 = vrot.slane %v3456, 6
        %v3461 = vrot.slane %v3457, 6
        %v3462 = vsel %vm3424, %v3460, %v3461
        %3463 = vrot.lane.b32.xlu0 %v3462, 127
        %v3464 = vpop.permute.xlu0 %3463
        %v3466 = vadd.f32 %v3453, %v3464
        %s3467 = sld [smem:[#allocation4 + $0x2c]]
        %v3468 = vstv %s3467
        %v3469 = vmul.f32 %v2356, %v3468
        %v3470 = vmul.f32 %v2357, %v3468
        %v3473 = vrot.slane %v3469, 6
        %v3474 = vrot.slane %v3470, 6
        %v3475 = vsel %vm3424, %v3473, %v3474
        %3476 = vrot.lane.b32.xlu0 %v3475, 126
        %v3477 = vpop.permute.xlu0 %3476
        %v3479 = vadd.f32 %v3466, %v3477
        %s3480 = sld [smem:[#allocation4 + $0x5d]]
        %v3481 = vstv %s3480
        %v3482 = vmul.f32 %v2418, %v3481
        %v3483 = vmul.f32 %v2419, %v3481
        %v3486 = vrot.slane %v3482, 6
        %v3487 = vrot.slane %v3483, 6
        %v3488 = vsel %vm3424, %v3486, %v3487
        %3489 = vrot.lane.b32.xlu0 %v3488, 126
        %v3490 = vpop.permute.xlu0 %3489
        %v3492 = vadd.f32 %v3479, %v3490
        %s3493 = sld [smem:[#allocation4 + $0x2d]]
        %v3494 = vstv %s3493
        %v3495 = vmul.f32 %v2356, %v3494
        %v3496 = vmul.f32 %v2357, %v3494
        %v3499 = vrot.slane %v3495, 6
        %v3500 = vrot.slane %v3496, 6
        %v3501 = vsel %vm3424, %v3499, %v3500
        %3502 = vrot.lane.b32.xlu0 %v3501, 125
        %v3503 = vpop.permute.xlu0 %3502
        %v3505 = vadd.f32 %v3492, %v3503
        %s3506 = sld [smem:[#allocation4 + $0x5e]]
        %v3507 = vstv %s3506
        %v3508 = vmul.f32 %v2418, %v3507
        %v3509 = vmul.f32 %v2419, %v3507
        %v3512 = vrot.slane %v3508, 6
        %v3513 = vrot.slane %v3509, 6
        %v3514 = vsel %vm3424, %v3512, %v3513
        %3515 = vrot.lane.b32.xlu0 %v3514, 125
        %v3516 = vpop.permute.xlu0 %3515
        %v3518 = vadd.f32 %v3505, %v3516
        %s3519 = sld [smem:[#allocation4 + $0x2e]]
        %v3520 = vstv %s3519
        %v3521 = vmul.f32 %v2356, %v3520
        %v3522 = vmul.f32 %v2357, %v3520
        %v3525 = vrot.slane %v3521, 6
        %v3526 = vrot.slane %v3522, 6
        %v3527 = vsel %vm3424, %v3525, %v3526
        %3528 = vrot.lane.b32.xlu0 %v3527, 124
        %v3529 = vpop.permute.xlu0 %3528
        %v3531 = vadd.f32 %v3518, %v3529
        %s3532 = sld [smem:[#allocation4 + $0x5f]]
        %v3533 = vstv %s3532
        %v3534 = vmul.f32 %v2418, %v3533
        %v3535 = vmul.f32 %v2419, %v3533
        %v3538 = vrot.slane %v3534, 6
        %v3539 = vrot.slane %v3535, 6
        %v3540 = vsel %vm3424, %v3538, %v3539
        %3541 = vrot.lane.b32.xlu0 %v3540, 124
        %v3542 = vpop.permute.xlu0 %3541
        %v3544 = vadd.f32 %v3531, %v3542
        %s3545 = sld [smem:[#allocation4 + $0x2f]]
        %v3546 = vstv %s3545
        %v3547 = vmul.f32 %v2356, %v3546
        %v3548 = vmul.f32 %v2357, %v3546
        %v3551 = vrot.slane %v3547, 6
        %v3552 = vrot.slane %v3548, 6
        %v3553 = vsel %vm3424, %v3551, %v3552
        %3554 = vrot.lane.b32.xlu0 %v3553, 123
        %v3555 = vpop.permute.xlu0 %3554
        %v3557 = vadd.f32 %v3544, %v3555
        %s3558 = sld [smem:[#allocation4 + $0x60]]
        %v3559 = vstv %s3558
        %v3560 = vmul.f32 %v2418, %v3559
        %v3561 = vmul.f32 %v2419, %v3559
        %v3564 = vrot.slane %v3560, 6
        %v3565 = vrot.slane %v3561, 6
        %v3566 = vsel %vm3424, %v3564, %v3565
        %3567 = vrot.lane.b32.xlu0 %v3566, 123
        %v3568 = vpop.permute.xlu0 %3567
        %v3570 = vadd.f32 %v3557, %v3568
        %s3571 = sld [smem:[#allocation4 + $0x30]]
        %v3572 = vstv %s3571
        %v3573 = vmul.f32 %v2356, %v3572
        %v3574 = vmul.f32 %v2357, %v3572
        %v3577 = vrot.slane %v3573, 6
        %v3578 = vrot.slane %v3574, 6
        %v3579 = vsel %vm3424, %v3577, %v3578
        %3580 = vrot.lane.b32.xlu0 %v3579, 122
        %v3581 = vpop.permute.xlu0 %3580
        %v3583 = vadd.f32 %v3570, %v3581
        %s3584 = sld [smem:[#allocation4 + $0x61]]
        %v3585 = vstv %s3584
        %v3586 = vmul.f32 %v2418, %v3585
        %v3587 = vmul.f32 %v2419, %v3585
        %v3590 = vrot.slane %v3586, 6
        %v3591 = vrot.slane %v3587, 6
        %v3592 = vsel %vm3424, %v3590, %v3591
        %3593 = vrot.lane.b32.xlu0 %v3592, 122
        %v3594 = vpop.permute.xlu0 %3593
        %v3596 = vadd.f32 %v3583, %v3594
        %s3597 = sld [smem:[#allocation3]]
        %v3598 = vstv %s3597
        %v3599 = vadd.f32 %v3596, %v3598
        %v3600 = vsub.f32 0.0, %v3599
        %v3601 = vmul.f32 %v3600, 1.442695
        %v3602 = vpow.pop %v3601
        %v3603 = vadd.f32 %v3602, 1.0
        %v3604 = vrcp.pop %v3603
        %v3605 = vlaneseq
        %v3606 = vshrl.u32 %v3605, 7
        %v3607 = vsub.s32 0, %v3606
        %v3608 = vrot.slane %v3604, %v3607
        %3610 = vbcast.lane.b32.xlu0 %v3608, 256
        %v3611 = vpop.permute.xlu0 %3610
        %v3612 = vlaneseq
        %v3613 = vshrl.u32 %v3612, 7
        %v3614 = vsub.s32 1, %v3613
        %v3615 = vrot.slane %v3604, %v3614
        %3617 = vbcast.lane.b32.xlu0 %v3615, 256
        %v3618 = vpop.permute.xlu0 %3617
        %v3619 = vlaneseq
        %v3620 = vshrl.u32 %v3619, 7
        %v3621 = vsub.s32 2, %v3620
        %v3622 = vrot.slane %v3604, %v3621
        %3624 = vbcast.lane.b32.xlu0 %v3622, 256
        %v3625 = vpop.permute.xlu0 %3624
        %v3626 = vlaneseq
        %v3627 = vshrl.u32 %v3626, 7
        %v3628 = vsub.s32 3, %v3627
        %v3629 = vrot.slane %v3604, %v3628
        %3631 = vbcast.lane.b32.xlu0 %v3629, 256
        %v3632 = vpop.permute.xlu0 %3631
        %v3633 = vlaneseq
        %v3634 = vshrl.u32 %v3633, 7
        %v3635 = vsub.s32 4, %v3634
        %v3636 = vrot.slane %v3604, %v3635
        %3638 = vbcast.lane.b32.xlu0 %v3636, 256
        %v3639 = vpop.permute.xlu0 %3638
        %v3640 = vlaneseq
        %v3641 = vshrl.u32 %v3640, 7
        %v3642 = vsub.s32 5, %v3641
        %v3643 = vrot.slane %v3604, %v3642
        %3645 = vbcast.lane.b32.xlu0 %v3643, 256
        %v3646 = vpop.permute.xlu0 %3645
        %v3647 = vlaneseq
        %v3648 = vshrl.u32 %v3647, 7
        %v3649 = vsub.s32 6, %v3648
        %v3650 = vrot.slane %v3604, %v3649
        %3652 = vbcast.lane.b32.xlu0 %v3650, 256
        %v3653 = vpop.permute.xlu0 %3652
        %v3654 = vlaneseq
        %v3655 = vshrl.u32 %v3654, 7
        %v3656 = vsub.s32 7, %v3655
        %v3657 = vrot.slane %v3604, %v3656
        %3659 = vbcast.lane.b32.xlu0 %v3657, 256
        %v3660 = vpop.permute.xlu0 %3659
        %v3661 = vmul.f32 %v2228, %v3611
        %v3662 = vmul.f32 %v2229, %v3618
        %v3663 = vmul.f32 %v2230, %v3625
        %v3664 = vmul.f32 %v2231, %v3632
        %v3665 = vmul.f32 %v2232, %v3639
        %v3666 = vmul.f32 %v2233, %v3646
        %v3667 = vmul.f32 %v2234, %v3653
        %v3668 = vmul.f32 %v2235, %v3660
        %v3669 = vld [vmem:[%s534] sm:$0xff]
        %v3670 = vld [vmem:[%s534 + $0x8] sm:$0xff]
        %v3671 = vld [vmem:[%s534 + $0x10] sm:$0xff]
        %v3672 = vld [vmem:[%s534 + $0x18] sm:$0xff]
        %v3673 = vld [vmem:[%s534 + $0x20] sm:$0xff]
        %v3674 = vld [vmem:[%s534 + $0x28] sm:$0xff]
        %v3675 = vld [vmem:[%s534 + $0x30] sm:$0xff]
        %v3676 = vld [vmem:[%s534 + $0x38] sm:$0xff]
        %v3677 = vadd.f32 %v3661, %v3669
        %v3678 = vadd.f32 %v3662, %v3670
        %v3679 = vadd.f32 %v3663, %v3671
        %v3680 = vadd.f32 %v3664, %v3672
        %v3681 = vadd.f32 %v3665, %v3673
        %v3682 = vadd.f32 %v3666, %v3674
        %v3683 = vadd.f32 %v3667, %v3675
        %v3684 = vadd.f32 %v3668, %v3676
        %v3685 = vmax.f32 %v3677, 0.0
        %v3686 = vmax.f32 %v3678, 0.0
        %v3687 = vmax.f32 %v3679, 0.0
        %v3688 = vmax.f32 %v3680, 0.0
        %v3689 = vmax.f32 %v3681, 0.0
        %v3690 = vmax.f32 %v3682, 0.0
        %v3691 = vmax.f32 %v3683, 0.0
        %v3692 = vmax.f32 %v3684, 0.0
        %3693 = vst [vmem:[%s529] sm:$0xff] %v3685
        %3694 = vst [vmem:[%s529 + $0x8] sm:$0xff] %v3686
        %3695 = vst [vmem:[%s529 + $0x10] sm:$0xff] %v3687
        %3696 = vst [vmem:[%s529 + $0x18] sm:$0xff] %v3688
        %3697 = vst [vmem:[%s529 + $0x20] sm:$0xff] %v3689
        %3698 = vst [vmem:[%s529 + $0x28] sm:$0xff] %v3690
        %3699 = vst [vmem:[%s529 + $0x30] sm:$0xff] %v3691
        %3700 = vst [vmem:[%s529 + $0x38] sm:$0xff] %v3692
        %s3701 = sand.u32 %s381, 1
        %s3702 = scalar_lea.sflag [#allocation5], %s3701
        %s3703 = sand.u32 %s381, 1
        %s3704 = smul.addr %s3703, 64
        %s3705 = scalar_lea.vmem [#allocation7], %s3704
        // Predicated region
        $region89: #{bottleneck_cbam_forward.1} parent=83 // pred_check
          %p3706 = pneg %p391
        $region90: #{bottleneck_cbam_forward.1} parent=83 // pred_check_branch
          %3708 = sbr.rel (%p3706) target = $region92
        $region91: #{bottleneck_cbam_forward.1} parent=83 // pred_region
          %s3710 = ssub.s32 1024, 1024
          %3711 = vsyncadd %s3702, %s3710
          %s3712 = smul.addr %s32, 8
          %s3713 = smul.addr %s3712, 128
          %s3714 = scalar_lea.hbm %s16, %s3713
          %s3715 = sshll.u32 %s3705, 4
          %s3716 = int_to_ptr.vmem [resolvable:$true] %s3715
          %3721 = dma.vmem_to_hbm [thread:$0]  %s3716, 1024, %s3714, %s3702, 128, 128, 8
        $region92: #{bottleneck_cbam_forward.1} parent=83 // pred_fallthru
          _
      $region84: #{bottleneck_cbam_forward.1} parent=5 // pred_fallthru
        _
      %p3722 = scmp.le.s32.totalorder 2, %s27
      // Predicated region
      $region93: #{bottleneck_cbam_forward.1} parent=5 // pred_check
        %p3723 = pneg %p3722
      $region94: #{bottleneck_cbam_forward.1} parent=5 // pred_check_branch
        %3725 = sbr.rel (%p3723) target = $region96
      $region95: #{bottleneck_cbam_forward.1} parent=5 // pred_region
        %s3726 = ssub.s32 %s27, 2
        // Predicated region
        $region97: #{bottleneck_cbam_forward.1} parent=95 // pred_check
          %p3727 = pneg %p397
        $region98: #{bottleneck_cbam_forward.1} parent=95 // pred_check_branch
          %3729 = sbr.rel (%p3727) target = $region100
        $region99: #{bottleneck_cbam_forward.1} parent=95 // pred_region
          %s3730 = sand.u32 %s382, 1
          %s3731 = scalar_lea.sflag [#allocation5], %s3730
          %s3732 = sand.u32 %s382, 1
          %s3733 = smul.addr %s3732, 64
          %s3734 = scalar_lea.vmem [#allocation7], %s3733
          %3735 = dma.done %s3731, 1024
        $region100: #{bottleneck_cbam_forward.1} parent=95 // pred_fallthru
          _
      $region96: #{bottleneck_cbam_forward.1} parent=5 // pred_fallthru
        _
    $region6: #{bottleneck_cbam_forward.1} parent=1 // loop_footer
      %s31 = sadd.s32 1, %s27
    $region7: #{bottleneck_cbam_forward.1} parent=1 // loop_footer_branch
      %26 = sbr.rel target = $region3
    $region8: #{bottleneck_cbam_forward.1} parent=1 // loop_exit
      _
    %3736 = vsyncpa [#allocation5], 1
    %s3737 = scalar_lea.sflag [#allocation5], 1
    %3738 = vsyncpa %s3737, 1
    %3739 = vsyncpa [#allocation6], 1
    %s3740 = scalar_lea.sflag [#allocation6], 1
    %3741 = vsyncpa %s3740, 1

</llo_original>
